<compile_context>
chip_gen: v5e
topology: v5e:2x2
jax: 0.10.0
libtpu: 0.0.40
codegen_flags: <defaults>
</compile_context>

<pallas_src>
import functools

import jax
import jax.numpy as jnp
import numpy as np
from jax import lax
from jax.experimental import pallas as pl
from jax.experimental.pallas import tpu as pltpu


def _crf_kernel(feats_ref, trans_ref, path_ref, fwd_ref, maxll_ref, psi_ref, *,
                start_id):
    # feats_ref : (T, L, Bt)  f32   time-major, batch on the lane axis
    # trans_ref : (L, L)      f32
    # path_ref  : (T, Bt)     int32
    # fwd_ref   : (1, Bt)     f32   log partition function per batch element
    # maxll_ref : (1, Bt)     f32   Viterbi max score per batch element
    # psi_ref   : (T, L, Bt)  int32 VMEM scratch (Viterbi backpointers)
    T, L, Bt = feats_ref.shape

    # ---- hoisted loop invariants (broadcast_in_dim is not CSE'd by JAX) ----
    trans = trans_ref[...]                                               # (L, L)
    trans_b = jnp.broadcast_to(trans[:, :, None], (L, L, Bt))            # (to, from, b)
    from_iota = lax.broadcasted_iota(jnp.int32, (L, L, Bt), 1)           # source-label idx
    lab_iota = lax.broadcasted_iota(jnp.int32, (L, Bt), 0)               # label idx (sublanes)

    init = jnp.where(lab_iota == start_id,
                     jnp.float32(0.0), jnp.float32(-10000.0))            # (L, Bt)

    unroll = T <= 32   # short fixed T: let the LLO scheduler overlap EUP/VPU work

    # ---- fused alpha (partition) + Viterbi recursion over time ----
    def step(t, carry):
        alpha, delta = carry
        f_t = feats_ref[t]                                               # (L, Bt)

        # alpha recursion: logsumexp over source labels (axis=1)
        M = trans_b + alpha[None, :, :]                                  # (L, L, Bt)
        m = jnp.max(M, axis=1)                                           # (L, Bt)
        alpha = m + jnp.log(jnp.sum(jnp.exp(M - m[:, None, :]), axis=1)) + f_t

        # Viterbi recursion: max + first-occurrence argmax over source labels
        # (single pass over V: one max-reduce, one compare/select, one min-reduce;
        #  iota is hoisted, no fused hardware argmax available)
        V = trans_b + delta[None, :, :]                                  # (L, L, Bt)
        best = jnp.max(V, axis=1)                                        # (L, Bt)
        psi_t = jnp.min(jnp.where(V == best[:, None, :], from_iota, L), axis=1)
        psi_ref[pl.ds(t, 1), :, :] = psi_t[None, :, :].astype(jnp.int32)
        delta = best + f_t
        return alpha, delta

    alpha, delta = lax.fori_loop(1, T, step, (init, init), unroll=unroll)

    # ---- log partition function per batch element ----
    m0 = jnp.max(alpha, axis=0, keepdims=True)                           # (1, Bt)
    fwd_ref[...] = m0 + jnp.log(jnp.sum(jnp.exp(alpha - m0), axis=0, keepdims=True))

    # ---- best final score + backtracking (lane-dense (T, B) stores) ----
    maxll = jnp.max(delta, axis=0, keepdims=True)                        # (1, Bt)
    maxll_ref[...] = maxll
    last = jnp.min(jnp.where(delta == maxll, lab_iota, L),
                   axis=0, keepdims=True).astype(jnp.int32)              # (1, Bt)
    path_ref[T - 1:T, :] = last

    def back(i, prev):
        t = T - 2 - i
        psi_next = psi_ref[t + 1]                                        # (L, Bt)
        sel = lab_iota == prev                                           # select row prev[b]
        cur = jnp.sum(jnp.where(sel, psi_next, 0), axis=0, keepdims=True)  # (1, Bt)
        path_ref[pl.ds(t, 1), :] = cur
        return cur

    lax.fori_loop(0, T - 1, back, last, unroll=unroll)


@functools.partial(jax.jit, static_argnums=(3,))
def old_transformer_crf_forward(feats, label_ids, transitions, start_label_id):
    """feats: (B, T, L) f32, label_ids: (B, T) int, transitions: (L, L) f32.

    Returns (path (B,T) int32, max_logLL (B,) f32, loss scalar f32) — same
    semantics as Old_Transformer_CRF.forward.
    """
    B, T, L = feats.shape
    feats32 = feats.astype(jnp.float32)
    trans32 = transitions.astype(jnp.float32)
    feats_t = jnp.transpose(feats32, (1, 2, 0))                          # (T, L, B)

    # Batch tile: 128 lanes when possible, otherwise whole batch (toy sizes).
    b_tile = 128 if B % 128 == 0 else B
    grid = (B // b_tile,)

    kernel = functools.partial(_crf_kernel, start_id=int(start_label_id))
    path_tb, fwd, maxll = pl.pallas_call(
        kernel,
        grid=grid,
        in_specs=[
            pl.BlockSpec((T, L, b_tile), lambda i: (0, 0, i)),
            pl.BlockSpec((L, L), lambda i: (0, 0)),
        ],
        out_specs=(
            pl.BlockSpec((T, b_tile), lambda i: (0, i)),
            pl.BlockSpec((1, b_tile), lambda i: (0, i)),
            pl.BlockSpec((1, b_tile), lambda i: (0, i)),
        ),
        out_shape=(
            jax.ShapeDtypeStruct((T, B), jnp.int32),
            jax.ShapeDtypeStruct((1, B), jnp.float32),
            jax.ShapeDtypeStruct((1, B), jnp.float32),
        ),
        scratch_shapes=[pltpu.VMEM((T, L, b_tile), jnp.int32)],
        compiler_params=pltpu.CompilerParams(
            dimension_semantics=("parallel",)),
    )(feats_t, trans32)

    # Gold path score in plain JAX (trivial gather+sum; keeps it off the serial
    # in-kernel critical path and removes the one-hot label input entirely).
    lab = label_ids.astype(jnp.int32)
    trans_sc = trans32[lab[:, 1:], lab[:, :-1]]                          # (B, T-1)
    feat_sc = jnp.take_along_axis(feats32[:, 1:, :],
                                  lab[:, 1:, None], axis=-1)[..., 0]     # (B, T-1)
    gold = jnp.sum(trans_sc + feat_sc, axis=1)                           # (B,)

    loss = jnp.mean(fwd[0] - gold)
    # TODO(synk): PyTorch returns path as int64 (torch.long); int32 is used here.
    return path_tb.T, maxll[0], loss


def _reference(feats, label_ids, transitions, start_id):
    """Pure-JAX replica of the PyTorch module for verification."""
    B, T, L = feats.shape

    def lse(x):
        m = jnp.max(x, axis=-1)
        return m + jnp.log(jnp.sum(jnp.exp(x - m[..., None]), axis=-1))

    alpha = jnp.full((B, L), -10000.0).at[:, start_id].set(0.0)
    for t in range(1, T):
        alpha = lse(transitions[None] + alpha[:, None, :]) + feats[:, t]
    fwd = lse(alpha)                                                     # (B,)

    delta = jnp.full((B, L), -10000.0).at[:, start_id].set(0.0)
    psis = [jnp.zeros((B, L), jnp.int32)]
    gold = jnp.zeros((B,))
    barange = jnp.arange(B)
    for t in range(1, T):
        gold = gold + transitions[label_ids[:, t], label_ids[:, t - 1]] \
                    + feats[barange, t, label_ids[:, t]]
        V = transitions[None] + delta[:, None, :]
        psis.append(jnp.argmax(V, axis=-1).astype(jnp.int32))
        delta = jnp.max(V, axis=-1) + feats[:, t]
    maxll = jnp.max(delta, axis=-1)
    path = [None] * T
    path[T - 1] = jnp.argmax(delta, axis=-1).astype(jnp.int32)
    for t in range(T - 2, -1, -1):
        path[t] = psis[t + 1][barange, path[t + 1]]
    path = jnp.stack(path, axis=1)
    loss = jnp.mean(fwd - gold)
    return path, maxll, loss


if __name__ == "__main__":
    B, T, L = 2, 8, 8                # batch, seq len, num_labels
    START_LABEL_ID = 5               # pretend config.label2idx['CLS'] == 5

    key = jax.random.PRNGKey(0)
    k1, k2, k3 = jax.random.split(key, 3)
    transitions = jax.random.normal(k1, (L, L), dtype=jnp.float32)   # nn.Parameter randn(L, L)
    feats = jax.random.normal(k2, (B, T, L), dtype=jnp.float32)
    label_ids = jax.random.randint(k3, (B, T), 0, L, dtype=jnp.int32)

    path, maxll, loss = old_transformer_crf_forward(
        feats, label_ids, transitions, START_LABEL_ID)
    jax.block_until_ready((path, maxll, loss))

    ref_path, ref_maxll, ref_loss = _reference(
        feats, label_ids, transitions, START_LABEL_ID)

    assert np.array_equal(np.asarray(path), np.asarray(ref_path)), "path mismatch"
    assert np.allclose(np.asarray(maxll), np.asarray(ref_maxll),
                       rtol=1e-3, atol=1e-2), "max_logLL mismatch"
    assert np.allclose(np.asarray(loss), np.asarray(ref_loss),
                       rtol=1e-3, atol=1e-2), "loss mismatch"

    print("KERNEL_OK")
</pallas_src>

<mosaic_0001>
module attributes {stable_mosaic.version = 11 : i64} {
  func.func @_crf_kernel(%arg0: i32, %arg1: memref<8x8x2xf32, #tpu.memory_space<vmem>>, %arg2: memref<8x8xf32, #tpu.memory_space<vmem>>, %arg3: memref<8x2xi32, #tpu.memory_space<vmem>>, %arg4: memref<1x2xf32, #tpu.memory_space<vmem>>, %arg5: memref<1x2xf32, #tpu.memory_space<vmem>>, %arg6: memref<8x8x2xi32, #tpu.memory_space<vmem>>) attributes {dimension_semantics = [#tpu.dimension_semantics<parallel>], iteration_bounds = array<i64: 1>, scalar_prefetch = 0 : i64, scratch_operands = 1 : i64, tpu.core_type = #tpu.core_type<tc>, window_params = [{transform_indices = @transform_0, window_bounds = array<i64: 8, 8, 2>}, {pipeline_mode = #tpu.pipeline_mode<synchronous>, transform_indices = @transform_1, window_bounds = array<i64: 8, 8>}, {transform_indices = @transform_2, window_bounds = array<i64: 8, 2>}, {transform_indices = @transform_3, window_bounds = array<i64: 1, 2>}, {transform_indices = @transform_4, window_bounds = array<i64: 1, 2>}]} {
    %c0 = arith.constant 0 : index
    %c0_0 = arith.constant 0 : index
    %0 = vector.load %arg2[%c0, %c0_0] : memref<8x8xf32, #tpu.memory_space<vmem>>, vector<8x8xf32>
    %1 = vector.shape_cast %0 : vector<8x8xf32> to vector<8x8x1xf32>
    %2 = vector.shape_cast %1 : vector<8x8x1xf32> to vector<8x8x1xf32>
    %3 = vector.broadcast %2 : vector<8x8x1xf32> to vector<8x8x2xf32>
    %4 = tpu.iota {dimensions = array<i32: 1>} : vector<8x8x2xi32>
    %5 = tpu.iota {dimensions = array<i32: 0>} : vector<8x2xi32>
    %c5_i32 = arith.constant 5 : i32
    %6 = vector.broadcast %c5_i32 : i32 to vector<8x2xi32>
    %7 = arith.cmpi eq, %5, %6 : vector<8x2xi32>
    %cst = arith.constant 0.000000e+00 : f32
    %cst_1 = arith.constant -1.000000e+04 : f32
    %8 = vector.broadcast %cst : f32 to vector<8x2xf32>
    %9 = vector.broadcast %cst_1 : f32 to vector<8x2xf32>
    %10 = arith.select %7, %8, %9 : vector<8x2xi1>, vector<8x2xf32>
    %c1_i32 = arith.constant 1 : i32
    %11 = arith.index_cast %c1_i32 : i32 to index
    %c0_2 = arith.constant 0 : index
    %c0_3 = arith.constant 0 : index
    %12 = vector.load %arg1[%11, %c0_2, %c0_3] : memref<8x8x2xf32, #tpu.memory_space<vmem>>, vector<1x8x2xf32>
    %13 = vector.shape_cast %12 : vector<1x8x2xf32> to vector<8x2xf32>
    %14 = vector.shape_cast %10 : vector<8x2xf32> to vector<1x8x2xf32>
    %15 = vector.broadcast %14 : vector<1x8x2xf32> to vector<8x8x2xf32>
    %16 = arith.addf %3, %15 : vector<8x8x2xf32>
    %cst_4 = arith.constant dense<0xFF800000> : vector<8x2xf32>
    %17 = vector.multi_reduction <maximumf>, %16, %cst_4 [1] : vector<8x8x2xf32> to vector<8x2xf32>
    %18 = vector.shape_cast %17 : vector<8x2xf32> to vector<8x1x2xf32>
    %19 = vector.broadcast %18 : vector<8x1x2xf32> to vector<8x8x2xf32>
    %20 = arith.subf %16, %19 : vector<8x8x2xf32>
    %21 = math.exp %20 : vector<8x8x2xf32>
    %cst_5 = arith.constant dense<0.000000e+00> : vector<8x2xf32>
    %22 = vector.multi_reduction <add>, %21, %cst_5 [1] : vector<8x8x2xf32> to vector<8x2xf32>
    %23 = math.log %22 : vector<8x2xf32>
    %24 = arith.addf %17, %23 : vector<8x2xf32>
    %25 = arith.addf %24, %13 : vector<8x2xf32>
    %26 = vector.shape_cast %10 : vector<8x2xf32> to vector<1x8x2xf32>
    %27 = vector.broadcast %26 : vector<1x8x2xf32> to vector<8x8x2xf32>
    %28 = arith.addf %3, %27 : vector<8x8x2xf32>
    %cst_6 = arith.constant dense<0xFF800000> : vector<8x2xf32>
    %29 = vector.multi_reduction <maximumf>, %28, %cst_6 [1] : vector<8x8x2xf32> to vector<8x2xf32>
    %30 = vector.shape_cast %29 : vector<8x2xf32> to vector<8x1x2xf32>
    %31 = vector.broadcast %30 : vector<8x1x2xf32> to vector<8x8x2xf32>
    %32 = arith.cmpf oeq, %28, %31 : vector<8x8x2xf32>
    %c8_i32 = arith.constant 8 : i32
    %33 = vector.broadcast %c8_i32 : i32 to vector<8x8x2xi32>
    %34 = arith.select %32, %4, %33 : vector<8x8x2xi1>, vector<8x8x2xi32>
    %cst_7 = arith.constant dense<2147483647> : vector<8x2xi32>
    %35 = vector.multi_reduction <minsi>, %34, %cst_7 [1] : vector<8x8x2xi32> to vector<8x2xi32>
    %36 = vector.shape_cast %35 : vector<8x2xi32> to vector<1x8x2xi32>
    %37 = arith.index_cast %c1_i32 : i32 to index
    %c0_8 = arith.constant 0 : index
    %c0_9 = arith.constant 0 : index
    %38 = vector.load %arg6[%37, %c0_8, %c0_9] : memref<8x8x2xi32, #tpu.memory_space<vmem>>, vector<1x8x2xi32>
    tpu.vector_store %arg6[%37, %c0_8, %c0_9], %36 {strides = array<i32>} : memref<8x8x2xi32, #tpu.memory_space<vmem>>, vector<1x8x2xi32>,
    %39 = arith.addf %29, %13 : vector<8x2xf32>
    %c2_i32 = arith.constant 2 : i32
    %40 = arith.index_cast %c2_i32 : i32 to index
    %c0_10 = arith.constant 0 : index
    %c0_11 = arith.constant 0 : index
    %41 = vector.load %arg1[%40, %c0_10, %c0_11] : memref<8x8x2xf32, #tpu.memory_space<vmem>>, vector<1x8x2xf32>
    %42 = vector.shape_cast %41 : vector<1x8x2xf32> to vector<8x2xf32>
    %43 = vector.shape_cast %25 : vector<8x2xf32> to vector<1x8x2xf32>
    %44 = vector.broadcast %43 : vector<1x8x2xf32> to vector<8x8x2xf32>
    %45 = arith.addf %3, %44 : vector<8x8x2xf32>
    %cst_12 = arith.constant dense<0xFF800000> : vector<8x2xf32>
    %46 = vector.multi_reduction <maximumf>, %45, %cst_12 [1] : vector<8x8x2xf32> to vector<8x2xf32>
    %47 = vector.shape_cast %46 : vector<8x2xf32> to vector<8x1x2xf32>
    %48 = vector.broadcast %47 : vector<8x1x2xf32> to vector<8x8x2xf32>
    %49 = arith.subf %45, %48 : vector<8x8x2xf32>
    %50 = math.exp %49 : vector<8x8x2xf32>
    %cst_13 = arith.constant dense<0.000000e+00> : vector<8x2xf32>
    %51 = vector.multi_reduction <add>, %50, %cst_13 [1] : vector<8x8x2xf32> to vector<8x2xf32>
    %52 = math.log %51 : vector<8x2xf32>
    %53 = arith.addf %46, %52 : vector<8x2xf32>
    %54 = arith.addf %53, %42 : vector<8x2xf32>
    %55 = vector.shape_cast %39 : vector<8x2xf32> to vector<1x8x2xf32>
    %56 = vector.broadcast %55 : vector<1x8x2xf32> to vector<8x8x2xf32>
    %57 = arith.addf %3, %56 : vector<8x8x2xf32>
    %cst_14 = arith.constant dense<0xFF800000> : vector<8x2xf32>
    %58 = vector.multi_reduction <maximumf>, %57, %cst_14 [1] : vector<8x8x2xf32> to vector<8x2xf32>
    %59 = vector.shape_cast %58 : vector<8x2xf32> to vector<8x1x2xf32>
    %60 = vector.broadcast %59 : vector<8x1x2xf32> to vector<8x8x2xf32>
    %61 = arith.cmpf oeq, %57, %60 : vector<8x8x2xf32>
    %c8_i32_15 = arith.constant 8 : i32
    %62 = vector.broadcast %c8_i32_15 : i32 to vector<8x8x2xi32>
    %63 = arith.select %61, %4, %62 : vector<8x8x2xi1>, vector<8x8x2xi32>
    %cst_16 = arith.constant dense<2147483647> : vector<8x2xi32>
    %64 = vector.multi_reduction <minsi>, %63, %cst_16 [1] : vector<8x8x2xi32> to vector<8x2xi32>
    %65 = vector.shape_cast %64 : vector<8x2xi32> to vector<1x8x2xi32>
    %66 = arith.index_cast %c2_i32 : i32 to index
    %c0_17 = arith.constant 0 : index
    %c0_18 = arith.constant 0 : index
    %67 = vector.load %arg6[%66, %c0_17, %c0_18] : memref<8x8x2xi32, #tpu.memory_space<vmem>>, vector<1x8x2xi32>
    tpu.vector_store %arg6[%66, %c0_17, %c0_18], %65 {strides = array<i32>} : memref<8x8x2xi32, #tpu.memory_space<vmem>>, vector<1x8x2xi32>,
    %68 = arith.addf %58, %42 : vector<8x2xf32>
    %c3_i32 = arith.constant 3 : i32
    %69 = arith.index_cast %c3_i32 : i32 to index
    %c0_19 = arith.constant 0 : index
    %c0_20 = arith.constant 0 : index
    %70 = vector.load %arg1[%69, %c0_19, %c0_20] : memref<8x8x2xf32, #tpu.memory_space<vmem>>, vector<1x8x2xf32>
    %71 = vector.shape_cast %70 : vector<1x8x2xf32> to vector<8x2xf32>
    %72 = vector.shape_cast %54 : vector<8x2xf32> to vector<1x8x2xf32>
    %73 = vector.broadcast %72 : vector<1x8x2xf32> to vector<8x8x2xf32>
    %74 = arith.addf %3, %73 : vector<8x8x2xf32>
    %cst_21 = arith.constant dense<0xFF800000> : vector<8x2xf32>
    %75 = vector.multi_reduction <maximumf>, %74, %cst_21 [1] : vector<8x8x2xf32> to vector<8x2xf32>
    %76 = vector.shape_cast %75 : vector<8x2xf32> to vector<8x1x2xf32>
    %77 = vector.broadcast %76 : vector<8x1x2xf32> to vector<8x8x2xf32>
    %78 = arith.subf %74, %77 : vector<8x8x2xf32>
    %79 = math.exp %78 : vector<8x8x2xf32>
    %cst_22 = arith.constant dense<0.000000e+00> : vector<8x2xf32>
    %80 = vector.multi_reduction <add>, %79, %cst_22 [1] : vector<8x8x2xf32> to vector<8x2xf32>
    %81 = math.log %80 : vector<8x2xf32>
    %82 = arith.addf %75, %81 : vector<8x2xf32>
    %83 = arith.addf %82, %71 : vector<8x2xf32>
    %84 = vector.shape_cast %68 : vector<8x2xf32> to vector<1x8x2xf32>
    %85 = vector.broadcast %84 : vector<1x8x2xf32> to vector<8x8x2xf32>
    %86 = arith.addf %3, %85 : vector<8x8x2xf32>
    %cst_23 = arith.constant dense<0xFF800000> : vector<8x2xf32>
    %87 = vector.multi_reduction <maximumf>, %86, %cst_23 [1] : vector<8x8x2xf32> to vector<8x2xf32>
    %88 = vector.shape_cast %87 : vector<8x2xf32> to vector<8x1x2xf32>
    %89 = vector.broadcast %88 : vector<8x1x2xf32> to vector<8x8x2xf32>
    %90 = arith.cmpf oeq, %86, %89 : vector<8x8x2xf32>
    %c8_i32_24 = arith.constant 8 : i32
    %91 = vector.broadcast %c8_i32_24 : i32 to vector<8x8x2xi32>
    %92 = arith.select %90, %4, %91 : vector<8x8x2xi1>, vector<8x8x2xi32>
    %cst_25 = arith.constant dense<2147483647> : vector<8x2xi32>
    %93 = vector.multi_reduction <minsi>, %92, %cst_25 [1] : vector<8x8x2xi32> to vector<8x2xi32>
    %94 = vector.shape_cast %93 : vector<8x2xi32> to vector<1x8x2xi32>
    %95 = arith.index_cast %c3_i32 : i32 to index
    %c0_26 = arith.constant 0 : index
    %c0_27 = arith.constant 0 : index
    %96 = vector.load %arg6[%95, %c0_26, %c0_27] : memref<8x8x2xi32, #tpu.memory_space<vmem>>, vector<1x8x2xi32>
    tpu.vector_store %arg6[%95, %c0_26, %c0_27], %94 {strides = array<i32>} : memref<8x8x2xi32, #tpu.memory_space<vmem>>, vector<1x8x2xi32>,
    %97 = arith.addf %87, %71 : vector<8x2xf32>
    %c4_i32 = arith.constant 4 : i32
    %98 = arith.index_cast %c4_i32 : i32 to index
    %c0_28 = arith.constant 0 : index
    %c0_29 = arith.constant 0 : index
    %99 = vector.load %arg1[%98, %c0_28, %c0_29] : memref<8x8x2xf32, #tpu.memory_space<vmem>>, vector<1x8x2xf32>
    %100 = vector.shape_cast %99 : vector<1x8x2xf32> to vector<8x2xf32>
    %101 = vector.shape_cast %83 : vector<8x2xf32> to vector<1x8x2xf32>
    %102 = vector.broadcast %101 : vector<1x8x2xf32> to vector<8x8x2xf32>
    %103 = arith.addf %3, %102 : vector<8x8x2xf32>
    %cst_30 = arith.constant dense<0xFF800000> : vector<8x2xf32>
    %104 = vector.multi_reduction <maximumf>, %103, %cst_30 [1] : vector<8x8x2xf32> to vector<8x2xf32>
    %105 = vector.shape_cast %104 : vector<8x2xf32> to vector<8x1x2xf32>
    %106 = vector.broadcast %105 : vector<8x1x2xf32> to vector<8x8x2xf32>
    %107 = arith.subf %103, %106 : vector<8x8x2xf32>
    %108 = math.exp %107 : vector<8x8x2xf32>
    %cst_31 = arith.constant dense<0.000000e+00> : vector<8x2xf32>
    %109 = vector.multi_reduction <add>, %108, %cst_31 [1] : vector<8x8x2xf32> to vector<8x2xf32>
    %110 = math.log %109 : vector<8x2xf32>
    %111 = arith.addf %104, %110 : vector<8x2xf32>
    %112 = arith.addf %111, %100 : vector<8x2xf32>
    %113 = vector.shape_cast %97 : vector<8x2xf32> to vector<1x8x2xf32>
    %114 = vector.broadcast %113 : vector<1x8x2xf32> to vector<8x8x2xf32>
    %115 = arith.addf %3, %114 : vector<8x8x2xf32>
    %cst_32 = arith.constant dense<0xFF800000> : vector<8x2xf32>
    %116 = vector.multi_reduction <maximumf>, %115, %cst_32 [1] : vector<8x8x2xf32> to vector<8x2xf32>
    %117 = vector.shape_cast %116 : vector<8x2xf32> to vector<8x1x2xf32>
    %118 = vector.broadcast %117 : vector<8x1x2xf32> to vector<8x8x2xf32>
    %119 = arith.cmpf oeq, %115, %118 : vector<8x8x2xf32>
    %c8_i32_33 = arith.constant 8 : i32
    %120 = vector.broadcast %c8_i32_33 : i32 to vector<8x8x2xi32>
    %121 = arith.select %119, %4, %120 : vector<8x8x2xi1>, vector<8x8x2xi32>
    %cst_34 = arith.constant dense<2147483647> : vector<8x2xi32>
    %122 = vector.multi_reduction <minsi>, %121, %cst_34 [1] : vector<8x8x2xi32> to vector<8x2xi32>
    %123 = vector.shape_cast %122 : vector<8x2xi32> to vector<1x8x2xi32>
    %124 = arith.index_cast %c4_i32 : i32 to index
    %c0_35 = arith.constant 0 : index
    %c0_36 = arith.constant 0 : index
    %125 = vector.load %arg6[%124, %c0_35, %c0_36] : memref<8x8x2xi32, #tpu.memory_space<vmem>>, vector<1x8x2xi32>
    tpu.vector_store %arg6[%124, %c0_35, %c0_36], %123 {strides = array<i32>} : memref<8x8x2xi32, #tpu.memory_space<vmem>>, vector<1x8x2xi32>,
    %126 = arith.addf %116, %100 : vector<8x2xf32>
    %c5_i32_37 = arith.constant 5 : i32
    %127 = arith.index_cast %c5_i32_37 : i32 to index
    %c0_38 = arith.constant 0 : index
    %c0_39 = arith.constant 0 : index
    %128 = vector.load %arg1[%127, %c0_38, %c0_39] : memref<8x8x2xf32, #tpu.memory_space<vmem>>, vector<1x8x2xf32>
    %129 = vector.shape_cast %128 : vector<1x8x2xf32> to vector<8x2xf32>
    %130 = vector.shape_cast %112 : vector<8x2xf32> to vector<1x8x2xf32>
    %131 = vector.broadcast %130 : vector<1x8x2xf32> to vector<8x8x2xf32>
    %132 = arith.addf %3, %131 : vector<8x8x2xf32>
    %cst_40 = arith.constant dense<0xFF800000> : vector<8x2xf32>
    %133 = vector.multi_reduction <maximumf>, %132, %cst_40 [1] : vector<8x8x2xf32> to vector<8x2xf32>
    %134 = vector.shape_cast %133 : vector<8x2xf32> to vector<8x1x2xf32>
    %135 = vector.broadcast %134 : vector<8x1x2xf32> to vector<8x8x2xf32>
    %136 = arith.subf %132, %135 : vector<8x8x2xf32>
    %137 = math.exp %136 : vector<8x8x2xf32>
    %cst_41 = arith.constant dense<0.000000e+00> : vector<8x2xf32>
    %138 = vector.multi_reduction <add>, %137, %cst_41 [1] : vector<8x8x2xf32> to vector<8x2xf32>
    %139 = math.log %138 : vector<8x2xf32>
    %140 = arith.addf %133, %139 : vector<8x2xf32>
    %141 = arith.addf %140, %129 : vector<8x2xf32>
    %142 = vector.shape_cast %126 : vector<8x2xf32> to vector<1x8x2xf32>
    %143 = vector.broadcast %142 : vector<1x8x2xf32> to vector<8x8x2xf32>
    %144 = arith.addf %3, %143 : vector<8x8x2xf32>
    %cst_42 = arith.constant dense<0xFF800000> : vector<8x2xf32>
    %145 = vector.multi_reduction <maximumf>, %144, %cst_42 [1] : vector<8x8x2xf32> to vector<8x2xf32>
    %146 = vector.shape_cast %145 : vector<8x2xf32> to vector<8x1x2xf32>
    %147 = vector.broadcast %146 : vector<8x1x2xf32> to vector<8x8x2xf32>
    %148 = arith.cmpf oeq, %144, %147 : vector<8x8x2xf32>
    %c8_i32_43 = arith.constant 8 : i32
    %149 = vector.broadcast %c8_i32_43 : i32 to vector<8x8x2xi32>
    %150 = arith.select %148, %4, %149 : vector<8x8x2xi1>, vector<8x8x2xi32>
    %cst_44 = arith.constant dense<2147483647> : vector<8x2xi32>
    %151 = vector.multi_reduction <minsi>, %150, %cst_44 [1] : vector<8x8x2xi32> to vector<8x2xi32>
    %152 = vector.shape_cast %151 : vector<8x2xi32> to vector<1x8x2xi32>
    %153 = arith.index_cast %c5_i32_37 : i32 to index
    %c0_45 = arith.constant 0 : index
    %c0_46 = arith.constant 0 : index
    %154 = vector.load %arg6[%153, %c0_45, %c0_46] : memref<8x8x2xi32, #tpu.memory_space<vmem>>, vector<1x8x2xi32>
    tpu.vector_store %arg6[%153, %c0_45, %c0_46], %152 {strides = array<i32>} : memref<8x8x2xi32, #tpu.memory_space<vmem>>, vector<1x8x2xi32>,
    %155 = arith.addf %145, %129 : vector<8x2xf32>
    %c6_i32 = arith.constant 6 : i32
    %156 = arith.index_cast %c6_i32 : i32 to index
    %c0_47 = arith.constant 0 : index
    %c0_48 = arith.constant 0 : index
    %157 = vector.load %arg1[%156, %c0_47, %c0_48] : memref<8x8x2xf32, #tpu.memory_space<vmem>>, vector<1x8x2xf32>
    %158 = vector.shape_cast %157 : vector<1x8x2xf32> to vector<8x2xf32>
    %159 = vector.shape_cast %141 : vector<8x2xf32> to vector<1x8x2xf32>
    %160 = vector.broadcast %159 : vector<1x8x2xf32> to vector<8x8x2xf32>
    %161 = arith.addf %3, %160 : vector<8x8x2xf32>
    %cst_49 = arith.constant dense<0xFF800000> : vector<8x2xf32>
    %162 = vector.multi_reduction <maximumf>, %161, %cst_49 [1] : vector<8x8x2xf32> to vector<8x2xf32>
    %163 = vector.shape_cast %162 : vector<8x2xf32> to vector<8x1x2xf32>
    %164 = vector.broadcast %163 : vector<8x1x2xf32> to vector<8x8x2xf32>
    %165 = arith.subf %161, %164 : vector<8x8x2xf32>
    %166 = math.exp %165 : vector<8x8x2xf32>
    %cst_50 = arith.constant dense<0.000000e+00> : vector<8x2xf32>
    %167 = vector.multi_reduction <add>, %166, %cst_50 [1] : vector<8x8x2xf32> to vector<8x2xf32>
    %168 = math.log %167 : vector<8x2xf32>
    %169 = arith.addf %162, %168 : vector<8x2xf32>
    %170 = arith.addf %169, %158 : vector<8x2xf32>
    %171 = vector.shape_cast %155 : vector<8x2xf32> to vector<1x8x2xf32>
    %172 = vector.broadcast %171 : vector<1x8x2xf32> to vector<8x8x2xf32>
    %173 = arith.addf %3, %172 : vector<8x8x2xf32>
    %cst_51 = arith.constant dense<0xFF800000> : vector<8x2xf32>
    %174 = vector.multi_reduction <maximumf>, %173, %cst_51 [1] : vector<8x8x2xf32> to vector<8x2xf32>
    %175 = vector.shape_cast %174 : vector<8x2xf32> to vector<8x1x2xf32>
    %176 = vector.broadcast %175 : vector<8x1x2xf32> to vector<8x8x2xf32>
    %177 = arith.cmpf oeq, %173, %176 : vector<8x8x2xf32>
    %c8_i32_52 = arith.constant 8 : i32
    %178 = vector.broadcast %c8_i32_52 : i32 to vector<8x8x2xi32>
    %179 = arith.select %177, %4, %178 : vector<8x8x2xi1>, vector<8x8x2xi32>
    %cst_53 = arith.constant dense<2147483647> : vector<8x2xi32>
    %180 = vector.multi_reduction <minsi>, %179, %cst_53 [1] : vector<8x8x2xi32> to vector<8x2xi32>
    %181 = vector.shape_cast %180 : vector<8x2xi32> to vector<1x8x2xi32>
    %182 = arith.index_cast %c6_i32 : i32 to index
    %c0_54 = arith.constant 0 : index
    %c0_55 = arith.constant 0 : index
    %183 = vector.load %arg6[%182, %c0_54, %c0_55] : memref<8x8x2xi32, #tpu.memory_space<vmem>>, vector<1x8x2xi32>
    tpu.vector_store %arg6[%182, %c0_54, %c0_55], %181 {strides = array<i32>} : memref<8x8x2xi32, #tpu.memory_space<vmem>>, vector<1x8x2xi32>,
    %184 = arith.addf %174, %158 : vector<8x2xf32>
    %c7_i32 = arith.constant 7 : i32
    %185 = arith.index_cast %c7_i32 : i32 to index
    %c0_56 = arith.constant 0 : index
    %c0_57 = arith.constant 0 : index
    %186 = vector.load %arg1[%185, %c0_56, %c0_57] : memref<8x8x2xf32, #tpu.memory_space<vmem>>, vector<1x8x2xf32>
    %187 = vector.shape_cast %186 : vector<1x8x2xf32> to vector<8x2xf32>
    %188 = vector.shape_cast %170 : vector<8x2xf32> to vector<1x8x2xf32>
    %189 = vector.broadcast %188 : vector<1x8x2xf32> to vector<8x8x2xf32>
    %190 = arith.addf %3, %189 : vector<8x8x2xf32>
    %cst_58 = arith.constant dense<0xFF800000> : vector<8x2xf32>
    %191 = vector.multi_reduction <maximumf>, %190, %cst_58 [1] : vector<8x8x2xf32> to vector<8x2xf32>
    %192 = vector.shape_cast %191 : vector<8x2xf32> to vector<8x1x2xf32>
    %193 = vector.broadcast %192 : vector<8x1x2xf32> to vector<8x8x2xf32>
    %194 = arith.subf %190, %193 : vector<8x8x2xf32>
    %195 = math.exp %194 : vector<8x8x2xf32>
    %cst_59 = arith.constant dense<0.000000e+00> : vector<8x2xf32>
    %196 = vector.multi_reduction <add>, %195, %cst_59 [1] : vector<8x8x2xf32> to vector<8x2xf32>
    %197 = math.log %196 : vector<8x2xf32>
    %198 = arith.addf %191, %197 : vector<8x2xf32>
    %199 = arith.addf %198, %187 : vector<8x2xf32>
    %200 = vector.shape_cast %184 : vector<8x2xf32> to vector<1x8x2xf32>
    %201 = vector.broadcast %200 : vector<1x8x2xf32> to vector<8x8x2xf32>
    %202 = arith.addf %3, %201 : vector<8x8x2xf32>
    %cst_60 = arith.constant dense<0xFF800000> : vector<8x2xf32>
    %203 = vector.multi_reduction <maximumf>, %202, %cst_60 [1] : vector<8x8x2xf32> to vector<8x2xf32>
    %204 = vector.shape_cast %203 : vector<8x2xf32> to vector<8x1x2xf32>
    %205 = vector.broadcast %204 : vector<8x1x2xf32> to vector<8x8x2xf32>
    %206 = arith.cmpf oeq, %202, %205 : vector<8x8x2xf32>
    %c8_i32_61 = arith.constant 8 : i32
    %207 = vector.broadcast %c8_i32_61 : i32 to vector<8x8x2xi32>
    %208 = arith.select %206, %4, %207 : vector<8x8x2xi1>, vector<8x8x2xi32>
    %cst_62 = arith.constant dense<2147483647> : vector<8x2xi32>
    %209 = vector.multi_reduction <minsi>, %208, %cst_62 [1] : vector<8x8x2xi32> to vector<8x2xi32>
    %210 = vector.shape_cast %209 : vector<8x2xi32> to vector<1x8x2xi32>
    %211 = arith.index_cast %c7_i32 : i32 to index
    %c0_63 = arith.constant 0 : index
    %c0_64 = arith.constant 0 : index
    %212 = vector.load %arg6[%211, %c0_63, %c0_64] : memref<8x8x2xi32, #tpu.memory_space<vmem>>, vector<1x8x2xi32>
    tpu.vector_store %arg6[%211, %c0_63, %c0_64], %210 {strides = array<i32>} : memref<8x8x2xi32, #tpu.memory_space<vmem>>, vector<1x8x2xi32>,
    %213 = arith.addf %203, %187 : vector<8x2xf32>
    %c7_i32_65 = arith.constant 7 : i32
    %cst_66 = arith.constant dense<0xFF800000> : vector<2xf32>
    %214 = vector.multi_reduction <maximumf>, %199, %cst_66 [0] : vector<8x2xf32> to vector<2xf32>
    %215 = vector.shape_cast %214 : vector<2xf32> to vector<1x2xf32>
    %216 = vector.broadcast %215 : vector<1x2xf32> to vector<8x2xf32>
    %217 = arith.subf %199, %216 : vector<8x2xf32>
    %218 = math.exp %217 : vector<8x2xf32>
    %cst_67 = arith.constant dense<0.000000e+00> : vector<2xf32>
    %219 = vector.multi_reduction <add>, %218, %cst_67 [0] : vector<8x2xf32> to vector<2xf32>
    %220 = vector.shape_cast %219 : vector<2xf32> to vector<1x2xf32>
    %221 = math.log %220 : vector<1x2xf32>
    %222 = arith.addf %215, %221 : vector<1x2xf32>
    %c0_68 = arith.constant 0 : index
    %c0_69 = arith.constant 0 : index
    %223 = vector.load %arg4[%c0_68, %c0_69] : memref<1x2xf32, #tpu.memory_space<vmem>>, vector<1x2xf32>
    tpu.vector_store %arg4[%c0_68, %c0_69], %222 {strides = array<i32>} : memref<1x2xf32, #tpu.memory_space<vmem>>, vector<1x2xf32>,
    %cst_70 = arith.constant dense<0xFF800000> : vector<2xf32>
    %224 = vector.multi_reduction <maximumf>, %213, %cst_70 [0] : vector<8x2xf32> to vector<2xf32>
    %225 = vector.shape_cast %224 : vector<2xf32> to vector<1x2xf32>
    %c0_71 = arith.constant 0 : index
    %c0_72 = arith.constant 0 : index
    %226 = vector.load %arg5[%c0_71, %c0_72] : memref<1x2xf32, #tpu.memory_space<vmem>>, vector<1x2xf32>
    tpu.vector_store %arg5[%c0_71, %c0_72], %225 {strides = array<i32>} : memref<1x2xf32, #tpu.memory_space<vmem>>, vector<1x2xf32>,
    %227 = vector.broadcast %225 : vector<1x2xf32> to vector<8x2xf32>
    %228 = arith.cmpf oeq, %213, %227 : vector<8x2xf32>
    %c8_i32_73 = arith.constant 8 : i32
    %229 = vector.broadcast %c8_i32_73 : i32 to vector<8x2xi32>
    %230 = arith.select %228, %5, %229 : vector<8x2xi1>, vector<8x2xi32>
    %cst_74 = arith.constant dense<2147483647> : vector<2xi32>
    %231 = vector.multi_reduction <minsi>, %230, %cst_74 [0] : vector<8x2xi32> to vector<2xi32>
    %232 = vector.shape_cast %231 : vector<2xi32> to vector<1x2xi32>
    %c7 = arith.constant 7 : index
    %c0_75 = arith.constant 0 : index
    %233 = vector.load %arg3[%c7, %c0_75] : memref<8x2xi32, #tpu.memory_space<vmem>>, vector<1x2xi32>
    tpu.vector_store %arg3[%c7, %c0_75], %232 {strides = array<i32>} : memref<8x2xi32, #tpu.memory_space<vmem>>, vector<1x2xi32>,
    %c0_i32 = arith.constant 0 : i32
    %c6_i32_76 = arith.constant 6 : i32
    %234 = arith.subi %c6_i32_76, %c0_i32 : i32
    %c1_i32_77 = arith.constant 1 : i32
    %235 = arith.addi %234, %c1_i32_77 : i32
    %236 = arith.index_cast %235 : i32 to index
    %c0_78 = arith.constant 0 : index
    %c0_79 = arith.constant 0 : index
    %237 = vector.load %arg6[%236, %c0_78, %c0_79] : memref<8x8x2xi32, #tpu.memory_space<vmem>>, vector<1x8x2xi32>
    %238 = vector.shape_cast %237 : vector<1x8x2xi32> to vector<8x2xi32>
    %239 = vector.broadcast %232 : vector<1x2xi32> to vector<8x2xi32>
    %240 = arith.cmpi eq, %5, %239 : vector<8x2xi32>
    %c0_i32_80 = arith.constant 0 : i32
    %241 = vector.broadcast %c0_i32_80 : i32 to vector<8x2xi32>
    %242 = arith.select %240, %238, %241 : vector<8x2xi1>, vector<8x2xi32>
    %cst_81 = arith.constant dense<0> : vector<2xi32>
    %243 = vector.multi_reduction <add>, %242, %cst_81 [0] : vector<8x2xi32> to vector<2xi32>
    %244 = vector.shape_cast %243 : vector<2xi32> to vector<1x2xi32>
    %245 = arith.index_cast %234 : i32 to index
    %c0_82 = arith.constant 0 : index
    %246 = vector.load %arg3[%245, %c0_82] : memref<8x2xi32, #tpu.memory_space<vmem>>, vector<1x2xi32>
    tpu.vector_store %arg3[%245, %c0_82], %244 {strides = array<i32>} : memref<8x2xi32, #tpu.memory_space<vmem>>, vector<1x2xi32>,
    %c1_i32_83 = arith.constant 1 : i32
    %c6_i32_84 = arith.constant 6 : i32
    %247 = arith.subi %c6_i32_84, %c1_i32_83 : i32
    %c1_i32_85 = arith.constant 1 : i32
    %248 = arith.addi %247, %c1_i32_85 : i32
    %249 = arith.index_cast %248 : i32 to index
    %c0_86 = arith.constant 0 : index
    %c0_87 = arith.constant 0 : index
    %250 = vector.load %arg6[%249, %c0_86, %c0_87] : memref<8x8x2xi32, #tpu.memory_space<vmem>>, vector<1x8x2xi32>
    %251 = vector.shape_cast %250 : vector<1x8x2xi32> to vector<8x2xi32>
    %252 = vector.broadcast %244 : vector<1x2xi32> to vector<8x2xi32>
    %253 = arith.cmpi eq, %5, %252 : vector<8x2xi32>
    %c0_i32_88 = arith.constant 0 : i32
    %254 = vector.broadcast %c0_i32_88 : i32 to vector<8x2xi32>
    %255 = arith.select %253, %251, %254 : vector<8x2xi1>, vector<8x2xi32>
    %cst_89 = arith.constant dense<0> : vector<2xi32>
    %256 = vector.multi_reduction <add>, %255, %cst_89 [0] : vector<8x2xi32> to vector<2xi32>
    %257 = vector.shape_cast %256 : vector<2xi32> to vector<1x2xi32>
    %258 = arith.index_cast %247 : i32 to index
    %c0_90 = arith.constant 0 : index
    %259 = vector.load %arg3[%258, %c0_90] : memref<8x2xi32, #tpu.memory_space<vmem>>, vector<1x2xi32>
    tpu.vector_store %arg3[%258, %c0_90], %257 {strides = array<i32>} : memref<8x2xi32, #tpu.memory_space<vmem>>, vector<1x2xi32>,
    %c2_i32_91 = arith.constant 2 : i32
    %c6_i32_92 = arith.constant 6 : i32
    %260 = arith.subi %c6_i32_92, %c2_i32_91 : i32
    %c1_i32_93 = arith.constant 1 : i32
    %261 = arith.addi %260, %c1_i32_93 : i32
    %262 = arith.index_cast %261 : i32 to index
    %c0_94 = arith.constant 0 : index
    %c0_95 = arith.constant 0 : index
    %263 = vector.load %arg6[%262, %c0_94, %c0_95] : memref<8x8x2xi32, #tpu.memory_space<vmem>>, vector<1x8x2xi32>
    %264 = vector.shape_cast %263 : vector<1x8x2xi32> to vector<8x2xi32>
    %265 = vector.broadcast %257 : vector<1x2xi32> to vector<8x2xi32>
    %266 = arith.cmpi eq, %5, %265 : vector<8x2xi32>
    %c0_i32_96 = arith.constant 0 : i32
    %267 = vector.broadcast %c0_i32_96 : i32 to vector<8x2xi32>
    %268 = arith.select %266, %264, %267 : vector<8x2xi1>, vector<8x2xi32>
    %cst_97 = arith.constant dense<0> : vector<2xi32>
    %269 = vector.multi_reduction <add>, %268, %cst_97 [0] : vector<8x2xi32> to vector<2xi32>
    %270 = vector.shape_cast %269 : vector<2xi32> to vector<1x2xi32>
    %271 = arith.index_cast %260 : i32 to index
    %c0_98 = arith.constant 0 : index
    %272 = vector.load %arg3[%271, %c0_98] : memref<8x2xi32, #tpu.memory_space<vmem>>, vector<1x2xi32>
    tpu.vector_store %arg3[%271, %c0_98], %270 {strides = array<i32>} : memref<8x2xi32, #tpu.memory_space<vmem>>, vector<1x2xi32>,
    %c3_i32_99 = arith.constant 3 : i32
    %c6_i32_100 = arith.constant 6 : i32
    %273 = arith.subi %c6_i32_100, %c3_i32_99 : i32
    %c1_i32_101 = arith.constant 1 : i32
    %274 = arith.addi %273, %c1_i32_101 : i32
    %275 = arith.index_cast %274 : i32 to index
    %c0_102 = arith.constant 0 : index
    %c0_103 = arith.constant 0 : index
    %276 = vector.load %arg6[%275, %c0_102, %c0_103] : memref<8x8x2xi32, #tpu.memory_space<vmem>>, vector<1x8x2xi32>
    %277 = vector.shape_cast %276 : vector<1x8x2xi32> to vector<8x2xi32>
    %278 = vector.broadcast %270 : vector<1x2xi32> to vector<8x2xi32>
    %279 = arith.cmpi eq, %5, %278 : vector<8x2xi32>
    %c0_i32_104 = arith.constant 0 : i32
    %280 = vector.broadcast %c0_i32_104 : i32 to vector<8x2xi32>
    %281 = arith.select %279, %277, %280 : vector<8x2xi1>, vector<8x2xi32>
    %cst_105 = arith.constant dense<0> : vector<2xi32>
    %282 = vector.multi_reduction <add>, %281, %cst_105 [0] : vector<8x2xi32> to vector<2xi32>
    %283 = vector.shape_cast %282 : vector<2xi32> to vector<1x2xi32>
    %284 = arith.index_cast %273 : i32 to index
    %c0_106 = arith.constant 0 : index
    %285 = vector.load %arg3[%284, %c0_106] : memref<8x2xi32, #tpu.memory_space<vmem>>, vector<1x2xi32>
    tpu.vector_store %arg3[%284, %c0_106], %283 {strides = array<i32>} : memref<8x2xi32, #tpu.memory_space<vmem>>, vector<1x2xi32>,
    %c4_i32_107 = arith.constant 4 : i32
    %c6_i32_108 = arith.constant 6 : i32
    %286 = arith.subi %c6_i32_108, %c4_i32_107 : i32
    %c1_i32_109 = arith.constant 1 : i32
    %287 = arith.addi %286, %c1_i32_109 : i32
    %288 = arith.index_cast %287 : i32 to index
    %c0_110 = arith.constant 0 : index
    %c0_111 = arith.constant 0 : index
    %289 = vector.load %arg6[%288, %c0_110, %c0_111] : memref<8x8x2xi32, #tpu.memory_space<vmem>>, vector<1x8x2xi32>
    %290 = vector.shape_cast %289 : vector<1x8x2xi32> to vector<8x2xi32>
    %291 = vector.broadcast %283 : vector<1x2xi32> to vector<8x2xi32>
    %292 = arith.cmpi eq, %5, %291 : vector<8x2xi32>
    %c0_i32_112 = arith.constant 0 : i32
    %293 = vector.broadcast %c0_i32_112 : i32 to vector<8x2xi32>
    %294 = arith.select %292, %290, %293 : vector<8x2xi1>, vector<8x2xi32>
    %cst_113 = arith.constant dense<0> : vector<2xi32>
    %295 = vector.multi_reduction <add>, %294, %cst_113 [0] : vector<8x2xi32> to vector<2xi32>
    %296 = vector.shape_cast %295 : vector<2xi32> to vector<1x2xi32>
    %297 = arith.index_cast %286 : i32 to index
    %c0_114 = arith.constant 0 : index
    %298 = vector.load %arg3[%297, %c0_114] : memref<8x2xi32, #tpu.memory_space<vmem>>, vector<1x2xi32>
    tpu.vector_store %arg3[%297, %c0_114], %296 {strides = array<i32>} : memref<8x2xi32, #tpu.memory_space<vmem>>, vector<1x2xi32>,
    %c5_i32_115 = arith.constant 5 : i32
    %c6_i32_116 = arith.constant 6 : i32
    %299 = arith.subi %c6_i32_116, %c5_i32_115 : i32
    %c1_i32_117 = arith.constant 1 : i32
    %300 = arith.addi %299, %c1_i32_117 : i32
    %301 = arith.index_cast %300 : i32 to index
    %c0_118 = arith.constant 0 : index
    %c0_119 = arith.constant 0 : index
    %302 = vector.load %arg6[%301, %c0_118, %c0_119] : memref<8x8x2xi32, #tpu.memory_space<vmem>>, vector<1x8x2xi32>
    %303 = vector.shape_cast %302 : vector<1x8x2xi32> to vector<8x2xi32>
    %304 = vector.broadcast %296 : vector<1x2xi32> to vector<8x2xi32>
    %305 = arith.cmpi eq, %5, %304 : vector<8x2xi32>
    %c0_i32_120 = arith.constant 0 : i32
    %306 = vector.broadcast %c0_i32_120 : i32 to vector<8x2xi32>
    %307 = arith.select %305, %303, %306 : vector<8x2xi1>, vector<8x2xi32>
    %cst_121 = arith.constant dense<0> : vector<2xi32>
    %308 = vector.multi_reduction <add>, %307, %cst_121 [0] : vector<8x2xi32> to vector<2xi32>
    %309 = vector.shape_cast %308 : vector<2xi32> to vector<1x2xi32>
    %310 = arith.index_cast %299 : i32 to index
    %c0_122 = arith.constant 0 : index
    %311 = vector.load %arg3[%310, %c0_122] : memref<8x2xi32, #tpu.memory_space<vmem>>, vector<1x2xi32>
    tpu.vector_store %arg3[%310, %c0_122], %309 {strides = array<i32>} : memref<8x2xi32, #tpu.memory_space<vmem>>, vector<1x2xi32>,
    %c6_i32_123 = arith.constant 6 : i32
    %c6_i32_124 = arith.constant 6 : i32
    %312 = arith.subi %c6_i32_124, %c6_i32_123 : i32
    %c1_i32_125 = arith.constant 1 : i32
    %313 = arith.addi %312, %c1_i32_125 : i32
    %314 = arith.index_cast %313 : i32 to index
    %c0_126 = arith.constant 0 : index
    %c0_127 = arith.constant 0 : index
    %315 = vector.load %arg6[%314, %c0_126, %c0_127] : memref<8x8x2xi32, #tpu.memory_space<vmem>>, vector<1x8x2xi32>
    %316 = vector.shape_cast %315 : vector<1x8x2xi32> to vector<8x2xi32>
    %317 = vector.broadcast %309 : vector<1x2xi32> to vector<8x2xi32>
    %318 = arith.cmpi eq, %5, %317 : vector<8x2xi32>
    %c0_i32_128 = arith.constant 0 : i32
    %319 = vector.broadcast %c0_i32_128 : i32 to vector<8x2xi32>
    %320 = arith.select %318, %316, %319 : vector<8x2xi1>, vector<8x2xi32>
    %cst_129 = arith.constant dense<0> : vector<2xi32>
    %321 = vector.multi_reduction <add>, %320, %cst_129 [0] : vector<8x2xi32> to vector<2xi32>
    %322 = vector.shape_cast %321 : vector<2xi32> to vector<1x2xi32>
    %323 = arith.index_cast %312 : i32 to index
    %c0_130 = arith.constant 0 : index
    %324 = vector.load %arg3[%323, %c0_130] : memref<8x2xi32, #tpu.memory_space<vmem>>, vector<1x2xi32>
    tpu.vector_store %arg3[%323, %c0_130], %322 {strides = array<i32>} : memref<8x2xi32, #tpu.memory_space<vmem>>, vector<1x2xi32>,
    %c7_i32_131 = arith.constant 7 : i32
    return
  }
  func.func @transform_0(%arg0: i32) -> (i32, i32, i32) {
    %c0_i32 = arith.constant 0 : i32
    %c0_i32_0 = arith.constant 0 : i32
    %c0_i32_1 = arith.constant 0 : i32
    return %c0_i32, %c0_i32_0, %arg0 : i32, i32, i32
  }
  func.func @transform_1(%arg0: i32) -> (i32, i32) {
    %c0_i32 = arith.constant 0 : i32
    %c0_i32_0 = arith.constant 0 : i32
    %c0_i32_1 = arith.constant 0 : i32
    return %c0_i32, %c0_i32_0 : i32, i32
  }
  func.func @transform_2(%arg0: i32) -> (i32, i32) {
    %c0_i32 = arith.constant 0 : i32
    %c0_i32_0 = arith.constant 0 : i32
    return %c0_i32, %arg0 : i32, i32
  }
  func.func @transform_3(%arg0: i32) -> (i32, i32) {
    %c0_i32 = arith.constant 0 : i32
    %c0_i32_0 = arith.constant 0 : i32
    return %c0_i32, %arg0 : i32, i32
  }
  func.func @transform_4(%arg0: i32) -> (i32, i32) {
    %c0_i32 = arith.constant 0 : i32
    %c0_i32_0 = arith.constant 0 : i32
    return %c0_i32, %arg0 : i32, i32
  }
}

</mosaic_0001>

<llo_original>
// kernel: old_transformer_crf_forward.1
$region0: #{old_transformer_crf_forward.1}
  #allocation0 [shape = 'u32[]', space=smem, size = 0x4, offset = 0x4, fixed_abs, tag = 'smem constant byte address 0x4 - core index']
  #allocation1 [shape = 'u32[72,128]{1,0:T(1,128)}', space=vmem, size = 0x9000, scoped, tag = 'internal scratch']
  #allocation2 [shape = 's32[8,8,2]{2,1,0:T(8,128)}', space=vmem, size = 0x8000, scoped, tag = 'scratch operand']
  %s0 = inlined_call_operand.vmem [shape: f32[8,8,2], index: 0, kind: input, shape index: {}]
  %s1 = inlined_call_operand.vmem [shape: f32[8,8], index: 1, kind: input, shape index: {}]
  %s2 = inlined_call_operand.vmem [shape: s32[8,2], index: 2, kind: output, shape index: {0}]
  %s3 = inlined_call_operand.vmem [shape: f32[1,2], index: 3, kind: output, shape index: {1}]
  %s4 = inlined_call_operand.hbm [shape: f32[1,2], index: 4, kind: output, shape index: {2}]
  %5 = xla_tuple %s2, %s3, %s4
  %s6 = sld [smem:[#allocation0]]
  $region34: #{old_transformer_crf_forward.1} parent=0
    _
  %s8 = ssub.s32 1, %s6
  %s9 = scalar_select 0, %s8, %s6
  $region1: #{old_transformer_crf_forward.1} parent=0
    #allocation3 [shape = 'u8[512]{0}', space=vmem, size = 0x400, scoped, tag = 'output window, operand 2, single buffered']
    #allocation4 [shape = 's32[1]{0}', space=sflag, size = 0x4, scoped, tag = 'scoped memory for old_transformer_crf_forward.1']
    %10 = vsyncpa [#allocation4], 0
    // Predicated region
    $region2: #{old_transformer_crf_forward.1} parent=1 // pred_check
      _
    $region3: #{old_transformer_crf_forward.1} parent=1 // pred_check_branch
      %12 = sbr.rel (0) target = $region5
    $region4: #{old_transformer_crf_forward.1} parent=1 // pred_region
      _
    $region5: #{old_transformer_crf_forward.1} parent=1 // pred_fallthru
      _
    // Predicated region
    $region6: #{old_transformer_crf_forward.1} parent=1 // pred_check
      _
    $region7: #{old_transformer_crf_forward.1} parent=1 // pred_check_branch
      %14 = sbr.rel (0) target = $region9
    $region8: #{old_transformer_crf_forward.1} parent=1 // pred_region
      _
    $region9: #{old_transformer_crf_forward.1} parent=1 // pred_fallthru
      _
    %v15 = vld [vmem:[%s1] sm:$0xff]
    %v16 = vperm.slane %v15, 0
    %v17 = vlaneseq
    %v18 = vshrl.u32 %v17, 7
    %20 = vset.pattern.permute.xlu0 %v18
    %21 = vperm.xlu0 %20, %v16
    %v22 = vpop.permute.xlu0 %21
    %v23 = vperm.slane %v15, 1
    %v24 = vlaneseq
    %v25 = vshrl.u32 %v24, 7
    %27 = vset.pattern.permute.xlu0 %v25
    %28 = vperm.xlu0 %27, %v23
    %v29 = vpop.permute.xlu0 %28
    %v30 = vperm.slane %v15, 2
    %v31 = vlaneseq
    %v32 = vshrl.u32 %v31, 7
    %34 = vset.pattern.permute.xlu0 %v32
    %35 = vperm.xlu0 %34, %v30
    %v36 = vpop.permute.xlu0 %35
    %v37 = vperm.slane %v15, 3
    %v38 = vlaneseq
    %v39 = vshrl.u32 %v38, 7
    %41 = vset.pattern.permute.xlu0 %v39
    %42 = vperm.xlu0 %41, %v37
    %v43 = vpop.permute.xlu0 %42
    %v44 = vperm.slane %v15, 4
    %v45 = vlaneseq
    %v46 = vshrl.u32 %v45, 7
    %48 = vset.pattern.permute.xlu0 %v46
    %49 = vperm.xlu0 %48, %v44
    %v50 = vpop.permute.xlu0 %49
    %v51 = vperm.slane %v15, 5
    %v52 = vlaneseq
    %v53 = vshrl.u32 %v52, 7
    %55 = vset.pattern.permute.xlu0 %v53
    %56 = vperm.xlu0 %55, %v51
    %v57 = vpop.permute.xlu0 %56
    %v58 = vperm.slane %v15, 6
    %v59 = vlaneseq
    %v60 = vshrl.u32 %v59, 7
    %62 = vset.pattern.permute.xlu0 %v60
    %63 = vperm.xlu0 %62, %v58
    %v64 = vpop.permute.xlu0 %63
    %v65 = vperm.slane %v15, 7
    %v66 = vlaneseq
    %v67 = vshrl.u32 %v66, 7
    %69 = vset.pattern.permute.xlu0 %v67
    %70 = vperm.xlu0 %69, %v65
    %v71 = vpop.permute.xlu0 %70
    %v72 = vlaneseq
    %v73 = vshrl.u32 %v72, 7
    %vm74 = vcmp.eq.s32.totalorder %v73, 5
    %v75 = vsel %vm74, 0.0, -10000.0
    %s76 = scalar_lea.vmem %s0, 8
    %v77 = vld [vmem:[%s76] sm:$0xff]
    %v78 = vadd.f32 %v22, %v75
    %v79 = vadd.f32 %v29, %v75
    %v80 = vadd.f32 %v36, %v75
    %v81 = vadd.f32 %v43, %v75
    %v82 = vadd.f32 %v50, %v75
    %v83 = vadd.f32 %v57, %v75
    %v84 = vadd.f32 %v64, %v75
    %v85 = vadd.f32 %v71, %v75
    %v86 = vrot.slane %v78, 4
    %v87 = vmax.f32 %v78, %v86
    %v88 = vrot.slane %v87, 2
    %v89 = vmax.f32 %v87, %v88
    %v90 = vrot.slane %v89, 1
    %v91 = vmax.f32 %v89, %v90
    %v92 = vrot.slane %v79, 4
    %v93 = vmax.f32 %v79, %v92
    %v94 = vrot.slane %v93, 2
    %v95 = vmax.f32 %v93, %v94
    %v96 = vrot.slane %v95, 1
    %v97 = vmax.f32 %v95, %v96
    %v98 = vrot.slane %v80, 4
    %v99 = vmax.f32 %v80, %v98
    %v100 = vrot.slane %v99, 2
    %v101 = vmax.f32 %v99, %v100
    %v102 = vrot.slane %v101, 1
    %v103 = vmax.f32 %v101, %v102
    %v104 = vrot.slane %v81, 4
    %v105 = vmax.f32 %v81, %v104
    %v106 = vrot.slane %v105, 2
    %v107 = vmax.f32 %v105, %v106
    %v108 = vrot.slane %v107, 1
    %v109 = vmax.f32 %v107, %v108
    %v110 = vrot.slane %v82, 4
    %v111 = vmax.f32 %v82, %v110
    %v112 = vrot.slane %v111, 2
    %v113 = vmax.f32 %v111, %v112
    %v114 = vrot.slane %v113, 1
    %v115 = vmax.f32 %v113, %v114
    %v116 = vrot.slane %v83, 4
    %v117 = vmax.f32 %v83, %v116
    %v118 = vrot.slane %v117, 2
    %v119 = vmax.f32 %v117, %v118
    %v120 = vrot.slane %v119, 1
    %v121 = vmax.f32 %v119, %v120
    %v122 = vrot.slane %v84, 4
    %v123 = vmax.f32 %v84, %v122
    %v124 = vrot.slane %v123, 2
    %v125 = vmax.f32 %v123, %v124
    %v126 = vrot.slane %v125, 1
    %v127 = vmax.f32 %v125, %v126
    %v128 = vrot.slane %v85, 4
    %v129 = vmax.f32 %v85, %v128
    %v130 = vrot.slane %v129, 2
    %v131 = vmax.f32 %v129, %v130
    %v132 = vrot.slane %v131, 1
    %v133 = vmax.f32 %v131, %v132
    %v134 = vsub.f32 %v78, %v91
    %v135 = vsub.f32 %v79, %v97
    %v136 = vsub.f32 %v80, %v103
    %v137 = vsub.f32 %v81, %v109
    %v138 = vsub.f32 %v82, %v115
    %v139 = vsub.f32 %v83, %v121
    %v140 = vsub.f32 %v84, %v127
    %v141 = vsub.f32 %v85, %v133
    %v142 = vmul.f32 %v134, 1.442695
    %v143 = vpow.pop %v142
    %v144 = vmul.f32 %v135, 1.442695
    %v145 = vpow.pop %v144
    %v146 = vmul.f32 %v136, 1.442695
    %v147 = vpow.pop %v146
    %v148 = vmul.f32 %v137, 1.442695
    %v149 = vpow.pop %v148
    %v150 = vmul.f32 %v138, 1.442695
    %v151 = vpow.pop %v150
    %v152 = vmul.f32 %v139, 1.442695
    %v153 = vpow.pop %v152
    %v154 = vmul.f32 %v140, 1.442695
    %v155 = vpow.pop %v154
    %v156 = vmul.f32 %v141, 1.442695
    %v157 = vpow.pop %v156
    %v158 = vrot.slane %v143, 4
    %v159 = vadd.f32 %v143, %v158
    %v160 = vrot.slane %v159, 2
    %v161 = vadd.f32 %v159, %v160
    %v162 = vrot.slane %v161, 1
    %v163 = vadd.f32 %v161, %v162
    %v164 = vrot.slane %v145, 4
    %v165 = vadd.f32 %v145, %v164
    %v166 = vrot.slane %v165, 2
    %v167 = vadd.f32 %v165, %v166
    %v168 = vrot.slane %v167, 1
    %v169 = vadd.f32 %v167, %v168
    %v170 = vrot.slane %v147, 4
    %v171 = vadd.f32 %v147, %v170
    %v172 = vrot.slane %v171, 2
    %v173 = vadd.f32 %v171, %v172
    %v174 = vrot.slane %v173, 1
    %v175 = vadd.f32 %v173, %v174
    %v176 = vrot.slane %v149, 4
    %v177 = vadd.f32 %v149, %v176
    %v178 = vrot.slane %v177, 2
    %v179 = vadd.f32 %v177, %v178
    %v180 = vrot.slane %v179, 1
    %v181 = vadd.f32 %v179, %v180
    %v182 = vrot.slane %v151, 4
    %v183 = vadd.f32 %v151, %v182
    %v184 = vrot.slane %v183, 2
    %v185 = vadd.f32 %v183, %v184
    %v186 = vrot.slane %v185, 1
    %v187 = vadd.f32 %v185, %v186
    %v188 = vrot.slane %v153, 4
    %v189 = vadd.f32 %v153, %v188
    %v190 = vrot.slane %v189, 2
    %v191 = vadd.f32 %v189, %v190
    %v192 = vrot.slane %v191, 1
    %v193 = vadd.f32 %v191, %v192
    %v194 = vrot.slane %v155, 4
    %v195 = vadd.f32 %v155, %v194
    %v196 = vrot.slane %v195, 2
    %v197 = vadd.f32 %v195, %v196
    %v198 = vrot.slane %v197, 1
    %v199 = vadd.f32 %v197, %v198
    %v200 = vrot.slane %v157, 4
    %v201 = vadd.f32 %v157, %v200
    %v202 = vrot.slane %v201, 2
    %v203 = vadd.f32 %v201, %v202
    %v204 = vrot.slane %v203, 1
    %v205 = vadd.f32 %v203, %v204
    %v206 = vlog2.pop %v163
    %v207 = vmul.f32 %v206, 0.6931472
    %v208 = vlog2.pop %v169
    %v209 = vmul.f32 %v208, 0.6931472
    %v210 = vlog2.pop %v175
    %v211 = vmul.f32 %v210, 0.6931472
    %v212 = vlog2.pop %v181
    %v213 = vmul.f32 %v212, 0.6931472
    %v214 = vlog2.pop %v187
    %v215 = vmul.f32 %v214, 0.6931472
    %v216 = vlog2.pop %v193
    %v217 = vmul.f32 %v216, 0.6931472
    %v218 = vlog2.pop %v199
    %v219 = vmul.f32 %v218, 0.6931472
    %v220 = vlog2.pop %v205
    %v221 = vmul.f32 %v220, 0.6931472
    %v222 = vadd.f32 %v91, %v207
    %v223 = vadd.f32 %v97, %v209
    %v224 = vadd.f32 %v103, %v211
    %v225 = vadd.f32 %v109, %v213
    %v226 = vadd.f32 %v115, %v215
    %v227 = vadd.f32 %v121, %v217
    %v228 = vadd.f32 %v127, %v219
    %v229 = vadd.f32 %v133, %v221
    %v231 = vrot.slane %v77, 1
    %v232 = vrot.slane %v77, 2
    %v233 = vrot.slane %v77, 3
    %v234 = vrot.slane %v77, 4
    %v235 = vrot.slane %v77, 5
    %v236 = vrot.slane %v77, 6
    %v237 = vrot.slane %v77, 7
    %v246 = vadd.f32 %v222, %v77
    %v247 = vadd.f32 %v223, %v231
    %v248 = vadd.f32 %v224, %v232
    %v249 = vadd.f32 %v225, %v233
    %v250 = vadd.f32 %v226, %v234
    %v251 = vadd.f32 %v227, %v235
    %v252 = vadd.f32 %v228, %v236
    %v253 = vadd.f32 %v229, %v237
    %vm254 = vcmp.eq.f32.partialorder %v78, %v91
    %vm255 = vcmp.eq.f32.partialorder %v79, %v97
    %vm256 = vcmp.eq.f32.partialorder %v80, %v103
    %vm257 = vcmp.eq.f32.partialorder %v81, %v109
    %vm258 = vcmp.eq.f32.partialorder %v82, %v115
    %vm259 = vcmp.eq.f32.partialorder %v83, %v121
    %vm260 = vcmp.eq.f32.partialorder %v84, %v127
    %vm261 = vcmp.eq.f32.partialorder %v85, %v133
    %v262 = vsel %vm254, %v73, 8
    %v263 = vsel %vm255, %v73, 8
    %v264 = vsel %vm256, %v73, 8
    %v265 = vsel %vm257, %v73, 8
    %v266 = vsel %vm258, %v73, 8
    %v267 = vsel %vm259, %v73, 8
    %v268 = vsel %vm260, %v73, 8
    %v269 = vsel %vm261, %v73, 8
    %v270 = vrot.slane %v262, 4
    %vm271 = vcmp.lt.s32.totalorder %v262, %v270
    %v272 = vsel %vm271, %v262, %v270
    %v273 = vrot.slane %v272, 2
    %vm274 = vcmp.lt.s32.totalorder %v272, %v273
    %v275 = vsel %vm274, %v272, %v273
    %v276 = vrot.slane %v275, 1
    %vm277 = vcmp.lt.s32.totalorder %v275, %v276
    %v278 = vsel %vm277, %v275, %v276
    %v279 = vrot.slane %v263, 4
    %vm280 = vcmp.lt.s32.totalorder %v263, %v279
    %v281 = vsel %vm280, %v263, %v279
    %v282 = vrot.slane %v281, 2
    %vm283 = vcmp.lt.s32.totalorder %v281, %v282
    %v284 = vsel %vm283, %v281, %v282
    %v285 = vrot.slane %v284, 1
    %vm286 = vcmp.lt.s32.totalorder %v284, %v285
    %v287 = vsel %vm286, %v284, %v285
    %v288 = vrot.slane %v264, 4
    %vm289 = vcmp.lt.s32.totalorder %v264, %v288
    %v290 = vsel %vm289, %v264, %v288
    %v291 = vrot.slane %v290, 2
    %vm292 = vcmp.lt.s32.totalorder %v290, %v291
    %v293 = vsel %vm292, %v290, %v291
    %v294 = vrot.slane %v293, 1
    %vm295 = vcmp.lt.s32.totalorder %v293, %v294
    %v296 = vsel %vm295, %v293, %v294
    %v297 = vrot.slane %v265, 4
    %vm298 = vcmp.lt.s32.totalorder %v265, %v297
    %v299 = vsel %vm298, %v265, %v297
    %v300 = vrot.slane %v299, 2
    %vm301 = vcmp.lt.s32.totalorder %v299, %v300
    %v302 = vsel %vm301, %v299, %v300
    %v303 = vrot.slane %v302, 1
    %vm304 = vcmp.lt.s32.totalorder %v302, %v303
    %v305 = vsel %vm304, %v302, %v303
    %v306 = vrot.slane %v266, 4
    %vm307 = vcmp.lt.s32.totalorder %v266, %v306
    %v308 = vsel %vm307, %v266, %v306
    %v309 = vrot.slane %v308, 2
    %vm310 = vcmp.lt.s32.totalorder %v308, %v309
    %v311 = vsel %vm310, %v308, %v309
    %v312 = vrot.slane %v311, 1
    %vm313 = vcmp.lt.s32.totalorder %v311, %v312
    %v314 = vsel %vm313, %v311, %v312
    %v315 = vrot.slane %v267, 4
    %vm316 = vcmp.lt.s32.totalorder %v267, %v315
    %v317 = vsel %vm316, %v267, %v315
    %v318 = vrot.slane %v317, 2
    %vm319 = vcmp.lt.s32.totalorder %v317, %v318
    %v320 = vsel %vm319, %v317, %v318
    %v321 = vrot.slane %v320, 1
    %vm322 = vcmp.lt.s32.totalorder %v320, %v321
    %v323 = vsel %vm322, %v320, %v321
    %v324 = vrot.slane %v268, 4
    %vm325 = vcmp.lt.s32.totalorder %v268, %v324
    %v326 = vsel %vm325, %v268, %v324
    %v327 = vrot.slane %v326, 2
    %vm328 = vcmp.lt.s32.totalorder %v326, %v327
    %v329 = vsel %vm328, %v326, %v327
    %v330 = vrot.slane %v329, 1
    %vm331 = vcmp.lt.s32.totalorder %v329, %v330
    %v332 = vsel %vm331, %v329, %v330
    %v333 = vrot.slane %v269, 4
    %vm334 = vcmp.lt.s32.totalorder %v269, %v333
    %v335 = vsel %vm334, %v269, %v333
    %v336 = vrot.slane %v335, 2
    %vm337 = vcmp.lt.s32.totalorder %v335, %v336
    %v338 = vsel %vm337, %v335, %v336
    %v339 = vrot.slane %v338, 1
    %vm340 = vcmp.lt.s32.totalorder %v338, %v339
    %v341 = vsel %vm340, %v338, %v339
    %vm342 = vcmask 1041409
    %v343 = vsel %vm342, %v287, %v278
    %vm344 = vcmask 1042434
    %v345 = vsel %vm344, %v296, %v343
    %vm346 = vcmask 1043459
    %v347 = vsel %vm346, %v305, %v345
    %vm348 = vcmask 1044484
    %v349 = vsel %vm348, %v314, %v347
    %vm350 = vcmask 1045509
    %v351 = vsel %vm350, %v323, %v349
    %vm352 = vcmask 1046534
    %v353 = vsel %vm352, %v332, %v351
    %vm354 = vcmask 1047559
    %v355 = vsel %vm354, %v341, %v353
    %s356 = scalar_lea.vmem [#allocation2], 8
    %vm357 = vcmask 15360
    %358 = vst.msk [vmem:[%s356] sm:$0xff] %vm357, %v355
    %v359 = vadd.f32 %v91, %v77
    %v360 = vadd.f32 %v97, %v231
    %v361 = vadd.f32 %v103, %v232
    %v362 = vadd.f32 %v109, %v233
    %v363 = vadd.f32 %v115, %v234
    %v364 = vadd.f32 %v121, %v235
    %v365 = vadd.f32 %v127, %v236
    %v366 = vadd.f32 %v133, %v237
    %s367 = scalar_lea.vmem %s0, 16
    %v368 = vld [vmem:[%s367] sm:$0xff]
    %v377 = vrot.slane %v247, 7
    %v378 = vsel %vm342, %v377, %v246
    %v379 = vrot.slane %v248, 6
    %v380 = vsel %vm344, %v379, %v378
    %v381 = vrot.slane %v249, 5
    %v382 = vsel %vm346, %v381, %v380
    %v383 = vrot.slane %v250, 4
    %v384 = vsel %vm348, %v383, %v382
    %v385 = vrot.slane %v251, 3
    %v386 = vsel %vm350, %v385, %v384
    %v387 = vrot.slane %v252, 2
    %v388 = vsel %vm352, %v387, %v386
    %v389 = vrot.slane %v253, 1
    %v390 = vsel %vm354, %v389, %v388
    %v392 = vadd.f32 %v22, %v390
    %v393 = vadd.f32 %v29, %v390
    %v394 = vadd.f32 %v36, %v390
    %v395 = vadd.f32 %v43, %v390
    %v396 = vadd.f32 %v50, %v390
    %v397 = vadd.f32 %v57, %v390
    %v398 = vadd.f32 %v64, %v390
    %v399 = vadd.f32 %v71, %v390
    %v400 = vsel %vm357, %v392, -inf
    %v401 = vrot.slane %v400, 4
    %v402 = vmax.f32 %v400, %v401
    %v403 = vrot.slane %v402, 2
    %v404 = vmax.f32 %v402, %v403
    %v405 = vrot.slane %v404, 1
    %v406 = vmax.f32 %v404, %v405
    %v407 = vsel %vm357, %v393, -inf
    %v408 = vrot.slane %v407, 4
    %v409 = vmax.f32 %v407, %v408
    %v410 = vrot.slane %v409, 2
    %v411 = vmax.f32 %v409, %v410
    %v412 = vrot.slane %v411, 1
    %v413 = vmax.f32 %v411, %v412
    %v414 = vsel %vm357, %v394, -inf
    %v415 = vrot.slane %v414, 4
    %v416 = vmax.f32 %v414, %v415
    %v417 = vrot.slane %v416, 2
    %v418 = vmax.f32 %v416, %v417
    %v419 = vrot.slane %v418, 1
    %v420 = vmax.f32 %v418, %v419
    %v421 = vsel %vm357, %v395, -inf
    %v422 = vrot.slane %v421, 4
    %v423 = vmax.f32 %v421, %v422
    %v424 = vrot.slane %v423, 2
    %v425 = vmax.f32 %v423, %v424
    %v426 = vrot.slane %v425, 1
    %v427 = vmax.f32 %v425, %v426
    %v428 = vsel %vm357, %v396, -inf
    %v429 = vrot.slane %v428, 4
    %v430 = vmax.f32 %v428, %v429
    %v431 = vrot.slane %v430, 2
    %v432 = vmax.f32 %v430, %v431
    %v433 = vrot.slane %v432, 1
    %v434 = vmax.f32 %v432, %v433
    %v435 = vsel %vm357, %v397, -inf
    %v436 = vrot.slane %v435, 4
    %v437 = vmax.f32 %v435, %v436
    %v438 = vrot.slane %v437, 2
    %v439 = vmax.f32 %v437, %v438
    %v440 = vrot.slane %v439, 1
    %v441 = vmax.f32 %v439, %v440
    %v442 = vsel %vm357, %v398, -inf
    %v443 = vrot.slane %v442, 4
    %v444 = vmax.f32 %v442, %v443
    %v445 = vrot.slane %v444, 2
    %v446 = vmax.f32 %v444, %v445
    %v447 = vrot.slane %v446, 1
    %v448 = vmax.f32 %v446, %v447
    %v449 = vsel %vm357, %v399, -inf
    %v450 = vrot.slane %v449, 4
    %v451 = vmax.f32 %v449, %v450
    %v452 = vrot.slane %v451, 2
    %v453 = vmax.f32 %v451, %v452
    %v454 = vrot.slane %v453, 1
    %v455 = vmax.f32 %v453, %v454
    %v456 = vsub.f32 %v392, %v406
    %v457 = vsub.f32 %v393, %v413
    %v458 = vsub.f32 %v394, %v420
    %v459 = vsub.f32 %v395, %v427
    %v460 = vsub.f32 %v396, %v434
    %v461 = vsub.f32 %v397, %v441
    %v462 = vsub.f32 %v398, %v448
    %v463 = vsub.f32 %v399, %v455
    %v464 = vmul.f32 %v456, 1.442695
    %v465 = vpow.pop %v464
    %v466 = vmul.f32 %v457, 1.442695
    %v467 = vpow.pop %v466
    %v468 = vmul.f32 %v458, 1.442695
    %v469 = vpow.pop %v468
    %v470 = vmul.f32 %v459, 1.442695
    %v471 = vpow.pop %v470
    %v472 = vmul.f32 %v460, 1.442695
    %v473 = vpow.pop %v472
    %v474 = vmul.f32 %v461, 1.442695
    %v475 = vpow.pop %v474
    %v476 = vmul.f32 %v462, 1.442695
    %v477 = vpow.pop %v476
    %v478 = vmul.f32 %v463, 1.442695
    %v479 = vpow.pop %v478
    %v480 = vsel %vm357, %v465, 0.0
    %v481 = vrot.slane %v480, 4
    %v482 = vadd.f32 %v480, %v481
    %v483 = vrot.slane %v482, 2
    %v484 = vadd.f32 %v482, %v483
    %v485 = vrot.slane %v484, 1
    %v486 = vadd.f32 %v484, %v485
    %v487 = vsel %vm357, %v467, 0.0
    %v488 = vrot.slane %v487, 4
    %v489 = vadd.f32 %v487, %v488
    %v490 = vrot.slane %v489, 2
    %v491 = vadd.f32 %v489, %v490
    %v492 = vrot.slane %v491, 1
    %v493 = vadd.f32 %v491, %v492
    %v494 = vsel %vm357, %v469, 0.0
    %v495 = vrot.slane %v494, 4
    %v496 = vadd.f32 %v494, %v495
    %v497 = vrot.slane %v496, 2
    %v498 = vadd.f32 %v496, %v497
    %v499 = vrot.slane %v498, 1
    %v500 = vadd.f32 %v498, %v499
    %v501 = vsel %vm357, %v471, 0.0
    %v502 = vrot.slane %v501, 4
    %v503 = vadd.f32 %v501, %v502
    %v504 = vrot.slane %v503, 2
    %v505 = vadd.f32 %v503, %v504
    %v506 = vrot.slane %v505, 1
    %v507 = vadd.f32 %v505, %v506
    %v508 = vsel %vm357, %v473, 0.0
    %v509 = vrot.slane %v508, 4
    %v510 = vadd.f32 %v508, %v509
    %v511 = vrot.slane %v510, 2
    %v512 = vadd.f32 %v510, %v511
    %v513 = vrot.slane %v512, 1
    %v514 = vadd.f32 %v512, %v513
    %v515 = vsel %vm357, %v475, 0.0
    %v516 = vrot.slane %v515, 4
    %v517 = vadd.f32 %v515, %v516
    %v518 = vrot.slane %v517, 2
    %v519 = vadd.f32 %v517, %v518
    %v520 = vrot.slane %v519, 1
    %v521 = vadd.f32 %v519, %v520
    %v522 = vsel %vm357, %v477, 0.0
    %v523 = vrot.slane %v522, 4
    %v524 = vadd.f32 %v522, %v523
    %v525 = vrot.slane %v524, 2
    %v526 = vadd.f32 %v524, %v525
    %v527 = vrot.slane %v526, 1
    %v528 = vadd.f32 %v526, %v527
    %v529 = vsel %vm357, %v479, 0.0
    %v530 = vrot.slane %v529, 4
    %v531 = vadd.f32 %v529, %v530
    %v532 = vrot.slane %v531, 2
    %v533 = vadd.f32 %v531, %v532
    %v534 = vrot.slane %v533, 1
    %v535 = vadd.f32 %v533, %v534
    %v536 = vlog2.pop %v486
    %v537 = vmul.f32 %v536, 0.6931472
    %v538 = vlog2.pop %v493
    %v539 = vmul.f32 %v538, 0.6931472
    %v540 = vlog2.pop %v500
    %v541 = vmul.f32 %v540, 0.6931472
    %v542 = vlog2.pop %v507
    %v543 = vmul.f32 %v542, 0.6931472
    %v544 = vlog2.pop %v514
    %v545 = vmul.f32 %v544, 0.6931472
    %v546 = vlog2.pop %v521
    %v547 = vmul.f32 %v546, 0.6931472
    %v548 = vlog2.pop %v528
    %v549 = vmul.f32 %v548, 0.6931472
    %v550 = vlog2.pop %v535
    %v551 = vmul.f32 %v550, 0.6931472
    %v552 = vadd.f32 %v406, %v537
    %v553 = vadd.f32 %v413, %v539
    %v554 = vadd.f32 %v420, %v541
    %v555 = vadd.f32 %v427, %v543
    %v556 = vadd.f32 %v434, %v545
    %v557 = vadd.f32 %v441, %v547
    %v558 = vadd.f32 %v448, %v549
    %v559 = vadd.f32 %v455, %v551
    %v561 = vrot.slane %v368, 1
    %v562 = vrot.slane %v368, 2
    %v563 = vrot.slane %v368, 3
    %v564 = vrot.slane %v368, 4
    %v565 = vrot.slane %v368, 5
    %v566 = vrot.slane %v368, 6
    %v567 = vrot.slane %v368, 7
    %v576 = vadd.f32 %v552, %v368
    %v577 = vadd.f32 %v553, %v561
    %v578 = vadd.f32 %v554, %v562
    %v579 = vadd.f32 %v555, %v563
    %v580 = vadd.f32 %v556, %v564
    %v581 = vadd.f32 %v557, %v565
    %v582 = vadd.f32 %v558, %v566
    %v583 = vadd.f32 %v559, %v567
    %v592 = vrot.slane %v360, 7
    %v593 = vsel %vm342, %v592, %v359
    %v594 = vrot.slane %v361, 6
    %v595 = vsel %vm344, %v594, %v593
    %v596 = vrot.slane %v362, 5
    %v597 = vsel %vm346, %v596, %v595
    %v598 = vrot.slane %v363, 4
    %v599 = vsel %vm348, %v598, %v597
    %v600 = vrot.slane %v364, 3
    %v601 = vsel %vm350, %v600, %v599
    %v602 = vrot.slane %v365, 2
    %v603 = vsel %vm352, %v602, %v601
    %v604 = vrot.slane %v366, 1
    %v605 = vsel %vm354, %v604, %v603
    %v607 = vadd.f32 %v22, %v605
    %v608 = vadd.f32 %v29, %v605
    %v609 = vadd.f32 %v36, %v605
    %v610 = vadd.f32 %v43, %v605
    %v611 = vadd.f32 %v50, %v605
    %v612 = vadd.f32 %v57, %v605
    %v613 = vadd.f32 %v64, %v605
    %v614 = vadd.f32 %v71, %v605
    %v615 = vsel %vm357, %v607, -inf
    %v616 = vrot.slane %v615, 4
    %v617 = vmax.f32 %v615, %v616
    %v618 = vrot.slane %v617, 2
    %v619 = vmax.f32 %v617, %v618
    %v620 = vrot.slane %v619, 1
    %v621 = vmax.f32 %v619, %v620
    %v622 = vsel %vm357, %v608, -inf
    %v623 = vrot.slane %v622, 4
    %v624 = vmax.f32 %v622, %v623
    %v625 = vrot.slane %v624, 2
    %v626 = vmax.f32 %v624, %v625
    %v627 = vrot.slane %v626, 1
    %v628 = vmax.f32 %v626, %v627
    %v629 = vsel %vm357, %v609, -inf
    %v630 = vrot.slane %v629, 4
    %v631 = vmax.f32 %v629, %v630
    %v632 = vrot.slane %v631, 2
    %v633 = vmax.f32 %v631, %v632
    %v634 = vrot.slane %v633, 1
    %v635 = vmax.f32 %v633, %v634
    %v636 = vsel %vm357, %v610, -inf
    %v637 = vrot.slane %v636, 4
    %v638 = vmax.f32 %v636, %v637
    %v639 = vrot.slane %v638, 2
    %v640 = vmax.f32 %v638, %v639
    %v641 = vrot.slane %v640, 1
    %v642 = vmax.f32 %v640, %v641
    %v643 = vsel %vm357, %v611, -inf
    %v644 = vrot.slane %v643, 4
    %v645 = vmax.f32 %v643, %v644
    %v646 = vrot.slane %v645, 2
    %v647 = vmax.f32 %v645, %v646
    %v648 = vrot.slane %v647, 1
    %v649 = vmax.f32 %v647, %v648
    %v650 = vsel %vm357, %v612, -inf
    %v651 = vrot.slane %v650, 4
    %v652 = vmax.f32 %v650, %v651
    %v653 = vrot.slane %v652, 2
    %v654 = vmax.f32 %v652, %v653
    %v655 = vrot.slane %v654, 1
    %v656 = vmax.f32 %v654, %v655
    %v657 = vsel %vm357, %v613, -inf
    %v658 = vrot.slane %v657, 4
    %v659 = vmax.f32 %v657, %v658
    %v660 = vrot.slane %v659, 2
    %v661 = vmax.f32 %v659, %v660
    %v662 = vrot.slane %v661, 1
    %v663 = vmax.f32 %v661, %v662
    %v664 = vsel %vm357, %v614, -inf
    %v665 = vrot.slane %v664, 4
    %v666 = vmax.f32 %v664, %v665
    %v667 = vrot.slane %v666, 2
    %v668 = vmax.f32 %v666, %v667
    %v669 = vrot.slane %v668, 1
    %v670 = vmax.f32 %v668, %v669
    %vm671 = vcmp.eq.f32.partialorder %v607, %v621
    %vm672 = vcmp.eq.f32.partialorder %v608, %v628
    %vm673 = vcmp.eq.f32.partialorder %v609, %v635
    %vm674 = vcmp.eq.f32.partialorder %v610, %v642
    %vm675 = vcmp.eq.f32.partialorder %v611, %v649
    %vm676 = vcmp.eq.f32.partialorder %v612, %v656
    %vm677 = vcmp.eq.f32.partialorder %v613, %v663
    %vm678 = vcmp.eq.f32.partialorder %v614, %v670
    %v679 = vsel %vm671, %v73, 8
    %v680 = vsel %vm672, %v73, 8
    %v681 = vsel %vm673, %v73, 8
    %v682 = vsel %vm674, %v73, 8
    %v683 = vsel %vm675, %v73, 8
    %v684 = vsel %vm676, %v73, 8
    %v685 = vsel %vm677, %v73, 8
    %v686 = vsel %vm678, %v73, 8
    %v687 = vsel %vm357, %v679, 2147483647
    %v688 = vrot.slane %v687, 4
    %vm689 = vcmp.lt.s32.totalorder %v687, %v688
    %v690 = vsel %vm689, %v687, %v688
    %v691 = vrot.slane %v690, 2
    %vm692 = vcmp.lt.s32.totalorder %v690, %v691
    %v693 = vsel %vm692, %v690, %v691
    %v694 = vrot.slane %v693, 1
    %vm695 = vcmp.lt.s32.totalorder %v693, %v694
    %v696 = vsel %vm695, %v693, %v694
    %v697 = vsel %vm357, %v680, 2147483647
    %v698 = vrot.slane %v697, 4
    %vm699 = vcmp.lt.s32.totalorder %v697, %v698
    %v700 = vsel %vm699, %v697, %v698
    %v701 = vrot.slane %v700, 2
    %vm702 = vcmp.lt.s32.totalorder %v700, %v701
    %v703 = vsel %vm702, %v700, %v701
    %v704 = vrot.slane %v703, 1
    %vm705 = vcmp.lt.s32.totalorder %v703, %v704
    %v706 = vsel %vm705, %v703, %v704
    %v707 = vsel %vm357, %v681, 2147483647
    %v708 = vrot.slane %v707, 4
    %vm709 = vcmp.lt.s32.totalorder %v707, %v708
    %v710 = vsel %vm709, %v707, %v708
    %v711 = vrot.slane %v710, 2
    %vm712 = vcmp.lt.s32.totalorder %v710, %v711
    %v713 = vsel %vm712, %v710, %v711
    %v714 = vrot.slane %v713, 1
    %vm715 = vcmp.lt.s32.totalorder %v713, %v714
    %v716 = vsel %vm715, %v713, %v714
    %v717 = vsel %vm357, %v682, 2147483647
    %v718 = vrot.slane %v717, 4
    %vm719 = vcmp.lt.s32.totalorder %v717, %v718
    %v720 = vsel %vm719, %v717, %v718
    %v721 = vrot.slane %v720, 2
    %vm722 = vcmp.lt.s32.totalorder %v720, %v721
    %v723 = vsel %vm722, %v720, %v721
    %v724 = vrot.slane %v723, 1
    %vm725 = vcmp.lt.s32.totalorder %v723, %v724
    %v726 = vsel %vm725, %v723, %v724
    %v727 = vsel %vm357, %v683, 2147483647
    %v728 = vrot.slane %v727, 4
    %vm729 = vcmp.lt.s32.totalorder %v727, %v728
    %v730 = vsel %vm729, %v727, %v728
    %v731 = vrot.slane %v730, 2
    %vm732 = vcmp.lt.s32.totalorder %v730, %v731
    %v733 = vsel %vm732, %v730, %v731
    %v734 = vrot.slane %v733, 1
    %vm735 = vcmp.lt.s32.totalorder %v733, %v734
    %v736 = vsel %vm735, %v733, %v734
    %v737 = vsel %vm357, %v684, 2147483647
    %v738 = vrot.slane %v737, 4
    %vm739 = vcmp.lt.s32.totalorder %v737, %v738
    %v740 = vsel %vm739, %v737, %v738
    %v741 = vrot.slane %v740, 2
    %vm742 = vcmp.lt.s32.totalorder %v740, %v741
    %v743 = vsel %vm742, %v740, %v741
    %v744 = vrot.slane %v743, 1
    %vm745 = vcmp.lt.s32.totalorder %v743, %v744
    %v746 = vsel %vm745, %v743, %v744
    %v747 = vsel %vm357, %v685, 2147483647
    %v748 = vrot.slane %v747, 4
    %vm749 = vcmp.lt.s32.totalorder %v747, %v748
    %v750 = vsel %vm749, %v747, %v748
    %v751 = vrot.slane %v750, 2
    %vm752 = vcmp.lt.s32.totalorder %v750, %v751
    %v753 = vsel %vm752, %v750, %v751
    %v754 = vrot.slane %v753, 1
    %vm755 = vcmp.lt.s32.totalorder %v753, %v754
    %v756 = vsel %vm755, %v753, %v754
    %v757 = vsel %vm357, %v686, 2147483647
    %v758 = vrot.slane %v757, 4
    %vm759 = vcmp.lt.s32.totalorder %v757, %v758
    %v760 = vsel %vm759, %v757, %v758
    %v761 = vrot.slane %v760, 2
    %vm762 = vcmp.lt.s32.totalorder %v760, %v761
    %v763 = vsel %vm762, %v760, %v761
    %v764 = vrot.slane %v763, 1
    %vm765 = vcmp.lt.s32.totalorder %v763, %v764
    %v766 = vsel %vm765, %v763, %v764
    %v767 = vsel %vm342, %v706, %v696
    %v768 = vsel %vm344, %v716, %v767
    %v769 = vsel %vm346, %v726, %v768
    %v770 = vsel %vm348, %v736, %v769
    %v771 = vsel %vm350, %v746, %v770
    %v772 = vsel %vm352, %v756, %v771
    %v773 = vsel %vm354, %v766, %v772
    %s774 = scalar_lea.vmem [#allocation2], 16
    %775 = vst.msk [vmem:[%s774] sm:$0xff] %vm357, %v773
    %v776 = vadd.f32 %v621, %v368
    %v777 = vadd.f32 %v628, %v561
    %v778 = vadd.f32 %v635, %v562
    %v779 = vadd.f32 %v642, %v563
    %v780 = vadd.f32 %v649, %v564
    %v781 = vadd.f32 %v656, %v565
    %v782 = vadd.f32 %v663, %v566
    %v783 = vadd.f32 %v670, %v567
    %s784 = scalar_lea.vmem %s0, 24
    %v785 = vld [vmem:[%s784] sm:$0xff]
    %v794 = vrot.slane %v577, 7
    %v795 = vsel %vm342, %v794, %v576
    %v796 = vrot.slane %v578, 6
    %v797 = vsel %vm344, %v796, %v795
    %v798 = vrot.slane %v579, 5
    %v799 = vsel %vm346, %v798, %v797
    %v800 = vrot.slane %v580, 4
    %v801 = vsel %vm348, %v800, %v799
    %v802 = vrot.slane %v581, 3
    %v803 = vsel %vm350, %v802, %v801
    %v804 = vrot.slane %v582, 2
    %v805 = vsel %vm352, %v804, %v803
    %v806 = vrot.slane %v583, 1
    %v807 = vsel %vm354, %v806, %v805
    %v809 = vadd.f32 %v22, %v807
    %v810 = vadd.f32 %v29, %v807
    %v811 = vadd.f32 %v36, %v807
    %v812 = vadd.f32 %v43, %v807
    %v813 = vadd.f32 %v50, %v807
    %v814 = vadd.f32 %v57, %v807
    %v815 = vadd.f32 %v64, %v807
    %v816 = vadd.f32 %v71, %v807
    %v817 = vsel %vm357, %v809, -inf
    %v818 = vrot.slane %v817, 4
    %v819 = vmax.f32 %v817, %v818
    %v820 = vrot.slane %v819, 2
    %v821 = vmax.f32 %v819, %v820
    %v822 = vrot.slane %v821, 1
    %v823 = vmax.f32 %v821, %v822
    %v824 = vsel %vm357, %v810, -inf
    %v825 = vrot.slane %v824, 4
    %v826 = vmax.f32 %v824, %v825
    %v827 = vrot.slane %v826, 2
    %v828 = vmax.f32 %v826, %v827
    %v829 = vrot.slane %v828, 1
    %v830 = vmax.f32 %v828, %v829
    %v831 = vsel %vm357, %v811, -inf
    %v832 = vrot.slane %v831, 4
    %v833 = vmax.f32 %v831, %v832
    %v834 = vrot.slane %v833, 2
    %v835 = vmax.f32 %v833, %v834
    %v836 = vrot.slane %v835, 1
    %v837 = vmax.f32 %v835, %v836
    %v838 = vsel %vm357, %v812, -inf
    %v839 = vrot.slane %v838, 4
    %v840 = vmax.f32 %v838, %v839
    %v841 = vrot.slane %v840, 2
    %v842 = vmax.f32 %v840, %v841
    %v843 = vrot.slane %v842, 1
    %v844 = vmax.f32 %v842, %v843
    %v845 = vsel %vm357, %v813, -inf
    %v846 = vrot.slane %v845, 4
    %v847 = vmax.f32 %v845, %v846
    %v848 = vrot.slane %v847, 2
    %v849 = vmax.f32 %v847, %v848
    %v850 = vrot.slane %v849, 1
    %v851 = vmax.f32 %v849, %v850
    %v852 = vsel %vm357, %v814, -inf
    %v853 = vrot.slane %v852, 4
    %v854 = vmax.f32 %v852, %v853
    %v855 = vrot.slane %v854, 2
    %v856 = vmax.f32 %v854, %v855
    %v857 = vrot.slane %v856, 1
    %v858 = vmax.f32 %v856, %v857
    %v859 = vsel %vm357, %v815, -inf
    %v860 = vrot.slane %v859, 4
    %v861 = vmax.f32 %v859, %v860
    %v862 = vrot.slane %v861, 2
    %v863 = vmax.f32 %v861, %v862
    %v864 = vrot.slane %v863, 1
    %v865 = vmax.f32 %v863, %v864
    %v866 = vsel %vm357, %v816, -inf
    %v867 = vrot.slane %v866, 4
    %v868 = vmax.f32 %v866, %v867
    %v869 = vrot.slane %v868, 2
    %v870 = vmax.f32 %v868, %v869
    %v871 = vrot.slane %v870, 1
    %v872 = vmax.f32 %v870, %v871
    %v873 = vsub.f32 %v809, %v823
    %v874 = vsub.f32 %v810, %v830
    %v875 = vsub.f32 %v811, %v837
    %v876 = vsub.f32 %v812, %v844
    %v877 = vsub.f32 %v813, %v851
    %v878 = vsub.f32 %v814, %v858
    %v879 = vsub.f32 %v815, %v865
    %v880 = vsub.f32 %v816, %v872
    %v881 = vmul.f32 %v873, 1.442695
    %v882 = vpow.pop %v881
    %v883 = vmul.f32 %v874, 1.442695
    %v884 = vpow.pop %v883
    %v885 = vmul.f32 %v875, 1.442695
    %v886 = vpow.pop %v885
    %v887 = vmul.f32 %v876, 1.442695
    %v888 = vpow.pop %v887
    %v889 = vmul.f32 %v877, 1.442695
    %v890 = vpow.pop %v889
    %v891 = vmul.f32 %v878, 1.442695
    %v892 = vpow.pop %v891
    %v893 = vmul.f32 %v879, 1.442695
    %v894 = vpow.pop %v893
    %v895 = vmul.f32 %v880, 1.442695
    %v896 = vpow.pop %v895
    %v897 = vsel %vm357, %v882, 0.0
    %v898 = vrot.slane %v897, 4
    %v899 = vadd.f32 %v897, %v898
    %v900 = vrot.slane %v899, 2
    %v901 = vadd.f32 %v899, %v900
    %v902 = vrot.slane %v901, 1
    %v903 = vadd.f32 %v901, %v902
    %v904 = vsel %vm357, %v884, 0.0
    %v905 = vrot.slane %v904, 4
    %v906 = vadd.f32 %v904, %v905
    %v907 = vrot.slane %v906, 2
    %v908 = vadd.f32 %v906, %v907
    %v909 = vrot.slane %v908, 1
    %v910 = vadd.f32 %v908, %v909
    %v911 = vsel %vm357, %v886, 0.0
    %v912 = vrot.slane %v911, 4
    %v913 = vadd.f32 %v911, %v912
    %v914 = vrot.slane %v913, 2
    %v915 = vadd.f32 %v913, %v914
    %v916 = vrot.slane %v915, 1
    %v917 = vadd.f32 %v915, %v916
    %v918 = vsel %vm357, %v888, 0.0
    %v919 = vrot.slane %v918, 4
    %v920 = vadd.f32 %v918, %v919
    %v921 = vrot.slane %v920, 2
    %v922 = vadd.f32 %v920, %v921
    %v923 = vrot.slane %v922, 1
    %v924 = vadd.f32 %v922, %v923
    %v925 = vsel %vm357, %v890, 0.0
    %v926 = vrot.slane %v925, 4
    %v927 = vadd.f32 %v925, %v926
    %v928 = vrot.slane %v927, 2
    %v929 = vadd.f32 %v927, %v928
    %v930 = vrot.slane %v929, 1
    %v931 = vadd.f32 %v929, %v930
    %v932 = vsel %vm357, %v892, 0.0
    %v933 = vrot.slane %v932, 4
    %v934 = vadd.f32 %v932, %v933
    %v935 = vrot.slane %v934, 2
    %v936 = vadd.f32 %v934, %v935
    %v937 = vrot.slane %v936, 1
    %v938 = vadd.f32 %v936, %v937
    %v939 = vsel %vm357, %v894, 0.0
    %v940 = vrot.slane %v939, 4
    %v941 = vadd.f32 %v939, %v940
    %v942 = vrot.slane %v941, 2
    %v943 = vadd.f32 %v941, %v942
    %v944 = vrot.slane %v943, 1
    %v945 = vadd.f32 %v943, %v944
    %v946 = vsel %vm357, %v896, 0.0
    %v947 = vrot.slane %v946, 4
    %v948 = vadd.f32 %v946, %v947
    %v949 = vrot.slane %v948, 2
    %v950 = vadd.f32 %v948, %v949
    %v951 = vrot.slane %v950, 1
    %v952 = vadd.f32 %v950, %v951
    %v953 = vlog2.pop %v903
    %v954 = vmul.f32 %v953, 0.6931472
    %v955 = vlog2.pop %v910
    %v956 = vmul.f32 %v955, 0.6931472
    %v957 = vlog2.pop %v917
    %v958 = vmul.f32 %v957, 0.6931472
    %v959 = vlog2.pop %v924
    %v960 = vmul.f32 %v959, 0.6931472
    %v961 = vlog2.pop %v931
    %v962 = vmul.f32 %v961, 0.6931472
    %v963 = vlog2.pop %v938
    %v964 = vmul.f32 %v963, 0.6931472
    %v965 = vlog2.pop %v945
    %v966 = vmul.f32 %v965, 0.6931472
    %v967 = vlog2.pop %v952
    %v968 = vmul.f32 %v967, 0.6931472
    %v969 = vadd.f32 %v823, %v954
    %v970 = vadd.f32 %v830, %v956
    %v971 = vadd.f32 %v837, %v958
    %v972 = vadd.f32 %v844, %v960
    %v973 = vadd.f32 %v851, %v962
    %v974 = vadd.f32 %v858, %v964
    %v975 = vadd.f32 %v865, %v966
    %v976 = vadd.f32 %v872, %v968
    %v978 = vrot.slane %v785, 1
    %v979 = vrot.slane %v785, 2
    %v980 = vrot.slane %v785, 3
    %v981 = vrot.slane %v785, 4
    %v982 = vrot.slane %v785, 5
    %v983 = vrot.slane %v785, 6
    %v984 = vrot.slane %v785, 7
    %v993 = vadd.f32 %v969, %v785
    %v994 = vadd.f32 %v970, %v978
    %v995 = vadd.f32 %v971, %v979
    %v996 = vadd.f32 %v972, %v980
    %v997 = vadd.f32 %v973, %v981
    %v998 = vadd.f32 %v974, %v982
    %v999 = vadd.f32 %v975, %v983
    %v1000 = vadd.f32 %v976, %v984
    %v1009 = vrot.slane %v777, 7
    %v1010 = vsel %vm342, %v1009, %v776
    %v1011 = vrot.slane %v778, 6
    %v1012 = vsel %vm344, %v1011, %v1010
    %v1013 = vrot.slane %v779, 5
    %v1014 = vsel %vm346, %v1013, %v1012
    %v1015 = vrot.slane %v780, 4
    %v1016 = vsel %vm348, %v1015, %v1014
    %v1017 = vrot.slane %v781, 3
    %v1018 = vsel %vm350, %v1017, %v1016
    %v1019 = vrot.slane %v782, 2
    %v1020 = vsel %vm352, %v1019, %v1018
    %v1021 = vrot.slane %v783, 1
    %v1022 = vsel %vm354, %v1021, %v1020
    %v1024 = vadd.f32 %v22, %v1022
    %v1025 = vadd.f32 %v29, %v1022
    %v1026 = vadd.f32 %v36, %v1022
    %v1027 = vadd.f32 %v43, %v1022
    %v1028 = vadd.f32 %v50, %v1022
    %v1029 = vadd.f32 %v57, %v1022
    %v1030 = vadd.f32 %v64, %v1022
    %v1031 = vadd.f32 %v71, %v1022
    %v1032 = vsel %vm357, %v1024, -inf
    %v1033 = vrot.slane %v1032, 4
    %v1034 = vmax.f32 %v1032, %v1033
    %v1035 = vrot.slane %v1034, 2
    %v1036 = vmax.f32 %v1034, %v1035
    %v1037 = vrot.slane %v1036, 1
    %v1038 = vmax.f32 %v1036, %v1037
    %v1039 = vsel %vm357, %v1025, -inf
    %v1040 = vrot.slane %v1039, 4
    %v1041 = vmax.f32 %v1039, %v1040
    %v1042 = vrot.slane %v1041, 2
    %v1043 = vmax.f32 %v1041, %v1042
    %v1044 = vrot.slane %v1043, 1
    %v1045 = vmax.f32 %v1043, %v1044
    %v1046 = vsel %vm357, %v1026, -inf
    %v1047 = vrot.slane %v1046, 4
    %v1048 = vmax.f32 %v1046, %v1047
    %v1049 = vrot.slane %v1048, 2
    %v1050 = vmax.f32 %v1048, %v1049
    %v1051 = vrot.slane %v1050, 1
    %v1052 = vmax.f32 %v1050, %v1051
    %v1053 = vsel %vm357, %v1027, -inf
    %v1054 = vrot.slane %v1053, 4
    %v1055 = vmax.f32 %v1053, %v1054
    %v1056 = vrot.slane %v1055, 2
    %v1057 = vmax.f32 %v1055, %v1056
    %v1058 = vrot.slane %v1057, 1
    %v1059 = vmax.f32 %v1057, %v1058
    %v1060 = vsel %vm357, %v1028, -inf
    %v1061 = vrot.slane %v1060, 4
    %v1062 = vmax.f32 %v1060, %v1061
    %v1063 = vrot.slane %v1062, 2
    %v1064 = vmax.f32 %v1062, %v1063
    %v1065 = vrot.slane %v1064, 1
    %v1066 = vmax.f32 %v1064, %v1065
    %v1067 = vsel %vm357, %v1029, -inf
    %v1068 = vrot.slane %v1067, 4
    %v1069 = vmax.f32 %v1067, %v1068
    %v1070 = vrot.slane %v1069, 2
    %v1071 = vmax.f32 %v1069, %v1070
    %v1072 = vrot.slane %v1071, 1
    %v1073 = vmax.f32 %v1071, %v1072
    %v1074 = vsel %vm357, %v1030, -inf
    %v1075 = vrot.slane %v1074, 4
    %v1076 = vmax.f32 %v1074, %v1075
    %v1077 = vrot.slane %v1076, 2
    %v1078 = vmax.f32 %v1076, %v1077
    %v1079 = vrot.slane %v1078, 1
    %v1080 = vmax.f32 %v1078, %v1079
    %v1081 = vsel %vm357, %v1031, -inf
    %v1082 = vrot.slane %v1081, 4
    %v1083 = vmax.f32 %v1081, %v1082
    %v1084 = vrot.slane %v1083, 2
    %v1085 = vmax.f32 %v1083, %v1084
    %v1086 = vrot.slane %v1085, 1
    %v1087 = vmax.f32 %v1085, %v1086
    %vm1088 = vcmp.eq.f32.partialorder %v1024, %v1038
    %vm1089 = vcmp.eq.f32.partialorder %v1025, %v1045
    %vm1090 = vcmp.eq.f32.partialorder %v1026, %v1052
    %vm1091 = vcmp.eq.f32.partialorder %v1027, %v1059
    %vm1092 = vcmp.eq.f32.partialorder %v1028, %v1066
    %vm1093 = vcmp.eq.f32.partialorder %v1029, %v1073
    %vm1094 = vcmp.eq.f32.partialorder %v1030, %v1080
    %vm1095 = vcmp.eq.f32.partialorder %v1031, %v1087
    %v1096 = vsel %vm1088, %v73, 8
    %v1097 = vsel %vm1089, %v73, 8
    %v1098 = vsel %vm1090, %v73, 8
    %v1099 = vsel %vm1091, %v73, 8
    %v1100 = vsel %vm1092, %v73, 8
    %v1101 = vsel %vm1093, %v73, 8
    %v1102 = vsel %vm1094, %v73, 8
    %v1103 = vsel %vm1095, %v73, 8
    %v1104 = vsel %vm357, %v1096, 2147483647
    %v1105 = vrot.slane %v1104, 4
    %vm1106 = vcmp.lt.s32.totalorder %v1104, %v1105
    %v1107 = vsel %vm1106, %v1104, %v1105
    %v1108 = vrot.slane %v1107, 2
    %vm1109 = vcmp.lt.s32.totalorder %v1107, %v1108
    %v1110 = vsel %vm1109, %v1107, %v1108
    %v1111 = vrot.slane %v1110, 1
    %vm1112 = vcmp.lt.s32.totalorder %v1110, %v1111
    %v1113 = vsel %vm1112, %v1110, %v1111
    %v1114 = vsel %vm357, %v1097, 2147483647
    %v1115 = vrot.slane %v1114, 4
    %vm1116 = vcmp.lt.s32.totalorder %v1114, %v1115
    %v1117 = vsel %vm1116, %v1114, %v1115
    %v1118 = vrot.slane %v1117, 2
    %vm1119 = vcmp.lt.s32.totalorder %v1117, %v1118
    %v1120 = vsel %vm1119, %v1117, %v1118
    %v1121 = vrot.slane %v1120, 1
    %vm1122 = vcmp.lt.s32.totalorder %v1120, %v1121
    %v1123 = vsel %vm1122, %v1120, %v1121
    %v1124 = vsel %vm357, %v1098, 2147483647
    %v1125 = vrot.slane %v1124, 4
    %vm1126 = vcmp.lt.s32.totalorder %v1124, %v1125
    %v1127 = vsel %vm1126, %v1124, %v1125
    %v1128 = vrot.slane %v1127, 2
    %vm1129 = vcmp.lt.s32.totalorder %v1127, %v1128
    %v1130 = vsel %vm1129, %v1127, %v1128
    %v1131 = vrot.slane %v1130, 1
    %vm1132 = vcmp.lt.s32.totalorder %v1130, %v1131
    %v1133 = vsel %vm1132, %v1130, %v1131
    %v1134 = vsel %vm357, %v1099, 2147483647
    %v1135 = vrot.slane %v1134, 4
    %vm1136 = vcmp.lt.s32.totalorder %v1134, %v1135
    %v1137 = vsel %vm1136, %v1134, %v1135
    %v1138 = vrot.slane %v1137, 2
    %vm1139 = vcmp.lt.s32.totalorder %v1137, %v1138
    %v1140 = vsel %vm1139, %v1137, %v1138
    %v1141 = vrot.slane %v1140, 1
    %vm1142 = vcmp.lt.s32.totalorder %v1140, %v1141
    %v1143 = vsel %vm1142, %v1140, %v1141
    %v1144 = vsel %vm357, %v1100, 2147483647
    %v1145 = vrot.slane %v1144, 4
    %vm1146 = vcmp.lt.s32.totalorder %v1144, %v1145
    %v1147 = vsel %vm1146, %v1144, %v1145
    %v1148 = vrot.slane %v1147, 2
    %vm1149 = vcmp.lt.s32.totalorder %v1147, %v1148
    %v1150 = vsel %vm1149, %v1147, %v1148
    %v1151 = vrot.slane %v1150, 1
    %vm1152 = vcmp.lt.s32.totalorder %v1150, %v1151
    %v1153 = vsel %vm1152, %v1150, %v1151
    %v1154 = vsel %vm357, %v1101, 2147483647
    %v1155 = vrot.slane %v1154, 4
    %vm1156 = vcmp.lt.s32.totalorder %v1154, %v1155
    %v1157 = vsel %vm1156, %v1154, %v1155
    %v1158 = vrot.slane %v1157, 2
    %vm1159 = vcmp.lt.s32.totalorder %v1157, %v1158
    %v1160 = vsel %vm1159, %v1157, %v1158
    %v1161 = vrot.slane %v1160, 1
    %vm1162 = vcmp.lt.s32.totalorder %v1160, %v1161
    %v1163 = vsel %vm1162, %v1160, %v1161
    %v1164 = vsel %vm357, %v1102, 2147483647
    %v1165 = vrot.slane %v1164, 4
    %vm1166 = vcmp.lt.s32.totalorder %v1164, %v1165
    %v1167 = vsel %vm1166, %v1164, %v1165
    %v1168 = vrot.slane %v1167, 2
    %vm1169 = vcmp.lt.s32.totalorder %v1167, %v1168
    %v1170 = vsel %vm1169, %v1167, %v1168
    %v1171 = vrot.slane %v1170, 1
    %vm1172 = vcmp.lt.s32.totalorder %v1170, %v1171
    %v1173 = vsel %vm1172, %v1170, %v1171
    %v1174 = vsel %vm357, %v1103, 2147483647
    %v1175 = vrot.slane %v1174, 4
    %vm1176 = vcmp.lt.s32.totalorder %v1174, %v1175
    %v1177 = vsel %vm1176, %v1174, %v1175
    %v1178 = vrot.slane %v1177, 2
    %vm1179 = vcmp.lt.s32.totalorder %v1177, %v1178
    %v1180 = vsel %vm1179, %v1177, %v1178
    %v1181 = vrot.slane %v1180, 1
    %vm1182 = vcmp.lt.s32.totalorder %v1180, %v1181
    %v1183 = vsel %vm1182, %v1180, %v1181
    %v1184 = vsel %vm342, %v1123, %v1113
    %v1185 = vsel %vm344, %v1133, %v1184
    %v1186 = vsel %vm346, %v1143, %v1185
    %v1187 = vsel %vm348, %v1153, %v1186
    %v1188 = vsel %vm350, %v1163, %v1187
    %v1189 = vsel %vm352, %v1173, %v1188
    %v1190 = vsel %vm354, %v1183, %v1189
    %s1191 = scalar_lea.vmem [#allocation2], 24
    %1192 = vst.msk [vmem:[%s1191] sm:$0xff] %vm357, %v1190
    %v1193 = vadd.f32 %v1038, %v785
    %v1194 = vadd.f32 %v1045, %v978
    %v1195 = vadd.f32 %v1052, %v979
    %v1196 = vadd.f32 %v1059, %v980
    %v1197 = vadd.f32 %v1066, %v981
    %v1198 = vadd.f32 %v1073, %v982
    %v1199 = vadd.f32 %v1080, %v983
    %v1200 = vadd.f32 %v1087, %v984
    %s1201 = scalar_lea.vmem %s0, 32
    %v1202 = vld [vmem:[%s1201] sm:$0xff]
    %v1211 = vrot.slane %v994, 7
    %v1212 = vsel %vm342, %v1211, %v993
    %v1213 = vrot.slane %v995, 6
    %v1214 = vsel %vm344, %v1213, %v1212
    %v1215 = vrot.slane %v996, 5
    %v1216 = vsel %vm346, %v1215, %v1214
    %v1217 = vrot.slane %v997, 4
    %v1218 = vsel %vm348, %v1217, %v1216
    %v1219 = vrot.slane %v998, 3
    %v1220 = vsel %vm350, %v1219, %v1218
    %v1221 = vrot.slane %v999, 2
    %v1222 = vsel %vm352, %v1221, %v1220
    %v1223 = vrot.slane %v1000, 1
    %v1224 = vsel %vm354, %v1223, %v1222
    %v1226 = vadd.f32 %v22, %v1224
    %v1227 = vadd.f32 %v29, %v1224
    %v1228 = vadd.f32 %v36, %v1224
    %v1229 = vadd.f32 %v43, %v1224
    %v1230 = vadd.f32 %v50, %v1224
    %v1231 = vadd.f32 %v57, %v1224
    %v1232 = vadd.f32 %v64, %v1224
    %v1233 = vadd.f32 %v71, %v1224
    %v1234 = vsel %vm357, %v1226, -inf
    %v1235 = vrot.slane %v1234, 4
    %v1236 = vmax.f32 %v1234, %v1235
    %v1237 = vrot.slane %v1236, 2
    %v1238 = vmax.f32 %v1236, %v1237
    %v1239 = vrot.slane %v1238, 1
    %v1240 = vmax.f32 %v1238, %v1239
    %v1241 = vsel %vm357, %v1227, -inf
    %v1242 = vrot.slane %v1241, 4
    %v1243 = vmax.f32 %v1241, %v1242
    %v1244 = vrot.slane %v1243, 2
    %v1245 = vmax.f32 %v1243, %v1244
    %v1246 = vrot.slane %v1245, 1
    %v1247 = vmax.f32 %v1245, %v1246
    %v1248 = vsel %vm357, %v1228, -inf
    %v1249 = vrot.slane %v1248, 4
    %v1250 = vmax.f32 %v1248, %v1249
    %v1251 = vrot.slane %v1250, 2
    %v1252 = vmax.f32 %v1250, %v1251
    %v1253 = vrot.slane %v1252, 1
    %v1254 = vmax.f32 %v1252, %v1253
    %v1255 = vsel %vm357, %v1229, -inf
    %v1256 = vrot.slane %v1255, 4
    %v1257 = vmax.f32 %v1255, %v1256
    %v1258 = vrot.slane %v1257, 2
    %v1259 = vmax.f32 %v1257, %v1258
    %v1260 = vrot.slane %v1259, 1
    %v1261 = vmax.f32 %v1259, %v1260
    %v1262 = vsel %vm357, %v1230, -inf
    %v1263 = vrot.slane %v1262, 4
    %v1264 = vmax.f32 %v1262, %v1263
    %v1265 = vrot.slane %v1264, 2
    %v1266 = vmax.f32 %v1264, %v1265
    %v1267 = vrot.slane %v1266, 1
    %v1268 = vmax.f32 %v1266, %v1267
    %v1269 = vsel %vm357, %v1231, -inf
    %v1270 = vrot.slane %v1269, 4
    %v1271 = vmax.f32 %v1269, %v1270
    %v1272 = vrot.slane %v1271, 2
    %v1273 = vmax.f32 %v1271, %v1272
    %v1274 = vrot.slane %v1273, 1
    %v1275 = vmax.f32 %v1273, %v1274
    %v1276 = vsel %vm357, %v1232, -inf
    %v1277 = vrot.slane %v1276, 4
    %v1278 = vmax.f32 %v1276, %v1277
    %v1279 = vrot.slane %v1278, 2
    %v1280 = vmax.f32 %v1278, %v1279
    %v1281 = vrot.slane %v1280, 1
    %v1282 = vmax.f32 %v1280, %v1281
    %v1283 = vsel %vm357, %v1233, -inf
    %v1284 = vrot.slane %v1283, 4
    %v1285 = vmax.f32 %v1283, %v1284
    %v1286 = vrot.slane %v1285, 2
    %v1287 = vmax.f32 %v1285, %v1286
    %v1288 = vrot.slane %v1287, 1
    %v1289 = vmax.f32 %v1287, %v1288
    %v1290 = vsub.f32 %v1226, %v1240
    %v1291 = vsub.f32 %v1227, %v1247
    %v1292 = vsub.f32 %v1228, %v1254
    %v1293 = vsub.f32 %v1229, %v1261
    %v1294 = vsub.f32 %v1230, %v1268
    %v1295 = vsub.f32 %v1231, %v1275
    %v1296 = vsub.f32 %v1232, %v1282
    %v1297 = vsub.f32 %v1233, %v1289
    %v1298 = vmul.f32 %v1290, 1.442695
    %v1299 = vpow.pop %v1298
    %v1300 = vmul.f32 %v1291, 1.442695
    %v1301 = vpow.pop %v1300
    %v1302 = vmul.f32 %v1292, 1.442695
    %v1303 = vpow.pop %v1302
    %v1304 = vmul.f32 %v1293, 1.442695
    %v1305 = vpow.pop %v1304
    %v1306 = vmul.f32 %v1294, 1.442695
    %v1307 = vpow.pop %v1306
    %v1308 = vmul.f32 %v1295, 1.442695
    %v1309 = vpow.pop %v1308
    %v1310 = vmul.f32 %v1296, 1.442695
    %v1311 = vpow.pop %v1310
    %v1312 = vmul.f32 %v1297, 1.442695
    %v1313 = vpow.pop %v1312
    %v1314 = vsel %vm357, %v1299, 0.0
    %v1315 = vrot.slane %v1314, 4
    %v1316 = vadd.f32 %v1314, %v1315
    %v1317 = vrot.slane %v1316, 2
    %v1318 = vadd.f32 %v1316, %v1317
    %v1319 = vrot.slane %v1318, 1
    %v1320 = vadd.f32 %v1318, %v1319
    %v1321 = vsel %vm357, %v1301, 0.0
    %v1322 = vrot.slane %v1321, 4
    %v1323 = vadd.f32 %v1321, %v1322
    %v1324 = vrot.slane %v1323, 2
    %v1325 = vadd.f32 %v1323, %v1324
    %v1326 = vrot.slane %v1325, 1
    %v1327 = vadd.f32 %v1325, %v1326
    %v1328 = vsel %vm357, %v1303, 0.0
    %v1329 = vrot.slane %v1328, 4
    %v1330 = vadd.f32 %v1328, %v1329
    %v1331 = vrot.slane %v1330, 2
    %v1332 = vadd.f32 %v1330, %v1331
    %v1333 = vrot.slane %v1332, 1
    %v1334 = vadd.f32 %v1332, %v1333
    %v1335 = vsel %vm357, %v1305, 0.0
    %v1336 = vrot.slane %v1335, 4
    %v1337 = vadd.f32 %v1335, %v1336
    %v1338 = vrot.slane %v1337, 2
    %v1339 = vadd.f32 %v1337, %v1338
    %v1340 = vrot.slane %v1339, 1
    %v1341 = vadd.f32 %v1339, %v1340
    %v1342 = vsel %vm357, %v1307, 0.0
    %v1343 = vrot.slane %v1342, 4
    %v1344 = vadd.f32 %v1342, %v1343
    %v1345 = vrot.slane %v1344, 2
    %v1346 = vadd.f32 %v1344, %v1345
    %v1347 = vrot.slane %v1346, 1
    %v1348 = vadd.f32 %v1346, %v1347
    %v1349 = vsel %vm357, %v1309, 0.0
    %v1350 = vrot.slane %v1349, 4
    %v1351 = vadd.f32 %v1349, %v1350
    %v1352 = vrot.slane %v1351, 2
    %v1353 = vadd.f32 %v1351, %v1352
    %v1354 = vrot.slane %v1353, 1
    %v1355 = vadd.f32 %v1353, %v1354
    %v1356 = vsel %vm357, %v1311, 0.0
    %v1357 = vrot.slane %v1356, 4
    %v1358 = vadd.f32 %v1356, %v1357
    %v1359 = vrot.slane %v1358, 2
    %v1360 = vadd.f32 %v1358, %v1359
    %v1361 = vrot.slane %v1360, 1
    %v1362 = vadd.f32 %v1360, %v1361
    %v1363 = vsel %vm357, %v1313, 0.0
    %v1364 = vrot.slane %v1363, 4
    %v1365 = vadd.f32 %v1363, %v1364
    %v1366 = vrot.slane %v1365, 2
    %v1367 = vadd.f32 %v1365, %v1366
    %v1368 = vrot.slane %v1367, 1
    %v1369 = vadd.f32 %v1367, %v1368
    %v1370 = vlog2.pop %v1320
    %v1371 = vmul.f32 %v1370, 0.6931472
    %v1372 = vlog2.pop %v1327
    %v1373 = vmul.f32 %v1372, 0.6931472
    %v1374 = vlog2.pop %v1334
    %v1375 = vmul.f32 %v1374, 0.6931472
    %v1376 = vlog2.pop %v1341
    %v1377 = vmul.f32 %v1376, 0.6931472
    %v1378 = vlog2.pop %v1348
    %v1379 = vmul.f32 %v1378, 0.6931472
    %v1380 = vlog2.pop %v1355
    %v1381 = vmul.f32 %v1380, 0.6931472
    %v1382 = vlog2.pop %v1362
    %v1383 = vmul.f32 %v1382, 0.6931472
    %v1384 = vlog2.pop %v1369
    %v1385 = vmul.f32 %v1384, 0.6931472
    %v1386 = vadd.f32 %v1240, %v1371
    %v1387 = vadd.f32 %v1247, %v1373
    %v1388 = vadd.f32 %v1254, %v1375
    %v1389 = vadd.f32 %v1261, %v1377
    %v1390 = vadd.f32 %v1268, %v1379
    %v1391 = vadd.f32 %v1275, %v1381
    %v1392 = vadd.f32 %v1282, %v1383
    %v1393 = vadd.f32 %v1289, %v1385
    %v1395 = vrot.slane %v1202, 1
    %v1396 = vrot.slane %v1202, 2
    %v1397 = vrot.slane %v1202, 3
    %v1398 = vrot.slane %v1202, 4
    %v1399 = vrot.slane %v1202, 5
    %v1400 = vrot.slane %v1202, 6
    %v1401 = vrot.slane %v1202, 7
    %v1410 = vadd.f32 %v1386, %v1202
    %v1411 = vadd.f32 %v1387, %v1395
    %v1412 = vadd.f32 %v1388, %v1396
    %v1413 = vadd.f32 %v1389, %v1397
    %v1414 = vadd.f32 %v1390, %v1398
    %v1415 = vadd.f32 %v1391, %v1399
    %v1416 = vadd.f32 %v1392, %v1400
    %v1417 = vadd.f32 %v1393, %v1401
    %v1426 = vrot.slane %v1194, 7
    %v1427 = vsel %vm342, %v1426, %v1193
    %v1428 = vrot.slane %v1195, 6
    %v1429 = vsel %vm344, %v1428, %v1427
    %v1430 = vrot.slane %v1196, 5
    %v1431 = vsel %vm346, %v1430, %v1429
    %v1432 = vrot.slane %v1197, 4
    %v1433 = vsel %vm348, %v1432, %v1431
    %v1434 = vrot.slane %v1198, 3
    %v1435 = vsel %vm350, %v1434, %v1433
    %v1436 = vrot.slane %v1199, 2
    %v1437 = vsel %vm352, %v1436, %v1435
    %v1438 = vrot.slane %v1200, 1
    %v1439 = vsel %vm354, %v1438, %v1437
    %v1441 = vadd.f32 %v22, %v1439
    %v1442 = vadd.f32 %v29, %v1439
    %v1443 = vadd.f32 %v36, %v1439
    %v1444 = vadd.f32 %v43, %v1439
    %v1445 = vadd.f32 %v50, %v1439
    %v1446 = vadd.f32 %v57, %v1439
    %v1447 = vadd.f32 %v64, %v1439
    %v1448 = vadd.f32 %v71, %v1439
    %v1449 = vsel %vm357, %v1441, -inf
    %v1450 = vrot.slane %v1449, 4
    %v1451 = vmax.f32 %v1449, %v1450
    %v1452 = vrot.slane %v1451, 2
    %v1453 = vmax.f32 %v1451, %v1452
    %v1454 = vrot.slane %v1453, 1
    %v1455 = vmax.f32 %v1453, %v1454
    %v1456 = vsel %vm357, %v1442, -inf
    %v1457 = vrot.slane %v1456, 4
    %v1458 = vmax.f32 %v1456, %v1457
    %v1459 = vrot.slane %v1458, 2
    %v1460 = vmax.f32 %v1458, %v1459
    %v1461 = vrot.slane %v1460, 1
    %v1462 = vmax.f32 %v1460, %v1461
    %v1463 = vsel %vm357, %v1443, -inf
    %v1464 = vrot.slane %v1463, 4
    %v1465 = vmax.f32 %v1463, %v1464
    %v1466 = vrot.slane %v1465, 2
    %v1467 = vmax.f32 %v1465, %v1466
    %v1468 = vrot.slane %v1467, 1
    %v1469 = vmax.f32 %v1467, %v1468
    %v1470 = vsel %vm357, %v1444, -inf
    %v1471 = vrot.slane %v1470, 4
    %v1472 = vmax.f32 %v1470, %v1471
    %v1473 = vrot.slane %v1472, 2
    %v1474 = vmax.f32 %v1472, %v1473
    %v1475 = vrot.slane %v1474, 1
    %v1476 = vmax.f32 %v1474, %v1475
    %v1477 = vsel %vm357, %v1445, -inf
    %v1478 = vrot.slane %v1477, 4
    %v1479 = vmax.f32 %v1477, %v1478
    %v1480 = vrot.slane %v1479, 2
    %v1481 = vmax.f32 %v1479, %v1480
    %v1482 = vrot.slane %v1481, 1
    %v1483 = vmax.f32 %v1481, %v1482
    %v1484 = vsel %vm357, %v1446, -inf
    %v1485 = vrot.slane %v1484, 4
    %v1486 = vmax.f32 %v1484, %v1485
    %v1487 = vrot.slane %v1486, 2
    %v1488 = vmax.f32 %v1486, %v1487
    %v1489 = vrot.slane %v1488, 1
    %v1490 = vmax.f32 %v1488, %v1489
    %v1491 = vsel %vm357, %v1447, -inf
    %v1492 = vrot.slane %v1491, 4
    %v1493 = vmax.f32 %v1491, %v1492
    %v1494 = vrot.slane %v1493, 2
    %v1495 = vmax.f32 %v1493, %v1494
    %v1496 = vrot.slane %v1495, 1
    %v1497 = vmax.f32 %v1495, %v1496
    %v1498 = vsel %vm357, %v1448, -inf
    %v1499 = vrot.slane %v1498, 4
    %v1500 = vmax.f32 %v1498, %v1499
    %v1501 = vrot.slane %v1500, 2
    %v1502 = vmax.f32 %v1500, %v1501
    %v1503 = vrot.slane %v1502, 1
    %v1504 = vmax.f32 %v1502, %v1503
    %vm1505 = vcmp.eq.f32.partialorder %v1441, %v1455
    %vm1506 = vcmp.eq.f32.partialorder %v1442, %v1462
    %vm1507 = vcmp.eq.f32.partialorder %v1443, %v1469
    %vm1508 = vcmp.eq.f32.partialorder %v1444, %v1476
    %vm1509 = vcmp.eq.f32.partialorder %v1445, %v1483
    %vm1510 = vcmp.eq.f32.partialorder %v1446, %v1490
    %vm1511 = vcmp.eq.f32.partialorder %v1447, %v1497
    %vm1512 = vcmp.eq.f32.partialorder %v1448, %v1504
    %v1513 = vsel %vm1505, %v73, 8
    %v1514 = vsel %vm1506, %v73, 8
    %v1515 = vsel %vm1507, %v73, 8
    %v1516 = vsel %vm1508, %v73, 8
    %v1517 = vsel %vm1509, %v73, 8
    %v1518 = vsel %vm1510, %v73, 8
    %v1519 = vsel %vm1511, %v73, 8
    %v1520 = vsel %vm1512, %v73, 8
    %v1521 = vsel %vm357, %v1513, 2147483647
    %v1522 = vrot.slane %v1521, 4
    %vm1523 = vcmp.lt.s32.totalorder %v1521, %v1522
    %v1524 = vsel %vm1523, %v1521, %v1522
    %v1525 = vrot.slane %v1524, 2
    %vm1526 = vcmp.lt.s32.totalorder %v1524, %v1525
    %v1527 = vsel %vm1526, %v1524, %v1525
    %v1528 = vrot.slane %v1527, 1
    %vm1529 = vcmp.lt.s32.totalorder %v1527, %v1528
    %v1530 = vsel %vm1529, %v1527, %v1528
    %v1531 = vsel %vm357, %v1514, 2147483647
    %v1532 = vrot.slane %v1531, 4
    %vm1533 = vcmp.lt.s32.totalorder %v1531, %v1532
    %v1534 = vsel %vm1533, %v1531, %v1532
    %v1535 = vrot.slane %v1534, 2
    %vm1536 = vcmp.lt.s32.totalorder %v1534, %v1535
    %v1537 = vsel %vm1536, %v1534, %v1535
    %v1538 = vrot.slane %v1537, 1
    %vm1539 = vcmp.lt.s32.totalorder %v1537, %v1538
    %v1540 = vsel %vm1539, %v1537, %v1538
    %v1541 = vsel %vm357, %v1515, 2147483647
    %v1542 = vrot.slane %v1541, 4
    %vm1543 = vcmp.lt.s32.totalorder %v1541, %v1542
    %v1544 = vsel %vm1543, %v1541, %v1542
    %v1545 = vrot.slane %v1544, 2
    %vm1546 = vcmp.lt.s32.totalorder %v1544, %v1545
    %v1547 = vsel %vm1546, %v1544, %v1545
    %v1548 = vrot.slane %v1547, 1
    %vm1549 = vcmp.lt.s32.totalorder %v1547, %v1548
    %v1550 = vsel %vm1549, %v1547, %v1548
    %v1551 = vsel %vm357, %v1516, 2147483647
    %v1552 = vrot.slane %v1551, 4
    %vm1553 = vcmp.lt.s32.totalorder %v1551, %v1552
    %v1554 = vsel %vm1553, %v1551, %v1552
    %v1555 = vrot.slane %v1554, 2
    %vm1556 = vcmp.lt.s32.totalorder %v1554, %v1555
    %v1557 = vsel %vm1556, %v1554, %v1555
    %v1558 = vrot.slane %v1557, 1
    %vm1559 = vcmp.lt.s32.totalorder %v1557, %v1558
    %v1560 = vsel %vm1559, %v1557, %v1558
    %v1561 = vsel %vm357, %v1517, 2147483647
    %v1562 = vrot.slane %v1561, 4
    %vm1563 = vcmp.lt.s32.totalorder %v1561, %v1562
    %v1564 = vsel %vm1563, %v1561, %v1562
    %v1565 = vrot.slane %v1564, 2
    %vm1566 = vcmp.lt.s32.totalorder %v1564, %v1565
    %v1567 = vsel %vm1566, %v1564, %v1565
    %v1568 = vrot.slane %v1567, 1
    %vm1569 = vcmp.lt.s32.totalorder %v1567, %v1568
    %v1570 = vsel %vm1569, %v1567, %v1568
    %v1571 = vsel %vm357, %v1518, 2147483647
    %v1572 = vrot.slane %v1571, 4
    %vm1573 = vcmp.lt.s32.totalorder %v1571, %v1572
    %v1574 = vsel %vm1573, %v1571, %v1572
    %v1575 = vrot.slane %v1574, 2
    %vm1576 = vcmp.lt.s32.totalorder %v1574, %v1575
    %v1577 = vsel %vm1576, %v1574, %v1575
    %v1578 = vrot.slane %v1577, 1
    %vm1579 = vcmp.lt.s32.totalorder %v1577, %v1578
    %v1580 = vsel %vm1579, %v1577, %v1578
    %v1581 = vsel %vm357, %v1519, 2147483647
    %v1582 = vrot.slane %v1581, 4
    %vm1583 = vcmp.lt.s32.totalorder %v1581, %v1582
    %v1584 = vsel %vm1583, %v1581, %v1582
    %v1585 = vrot.slane %v1584, 2
    %vm1586 = vcmp.lt.s32.totalorder %v1584, %v1585
    %v1587 = vsel %vm1586, %v1584, %v1585
    %v1588 = vrot.slane %v1587, 1
    %vm1589 = vcmp.lt.s32.totalorder %v1587, %v1588
    %v1590 = vsel %vm1589, %v1587, %v1588
    %v1591 = vsel %vm357, %v1520, 2147483647
    %v1592 = vrot.slane %v1591, 4
    %vm1593 = vcmp.lt.s32.totalorder %v1591, %v1592
    %v1594 = vsel %vm1593, %v1591, %v1592
    %v1595 = vrot.slane %v1594, 2
    %vm1596 = vcmp.lt.s32.totalorder %v1594, %v1595
    %v1597 = vsel %vm1596, %v1594, %v1595
    %v1598 = vrot.slane %v1597, 1
    %vm1599 = vcmp.lt.s32.totalorder %v1597, %v1598
    %v1600 = vsel %vm1599, %v1597, %v1598
    %v1601 = vsel %vm342, %v1540, %v1530
    %v1602 = vsel %vm344, %v1550, %v1601
    %v1603 = vsel %vm346, %v1560, %v1602
    %v1604 = vsel %vm348, %v1570, %v1603
    %v1605 = vsel %vm350, %v1580, %v1604
    %v1606 = vsel %vm352, %v1590, %v1605
    %v1607 = vsel %vm354, %v1600, %v1606
    %s1608 = scalar_lea.vmem [#allocation2], 32
    %1609 = vst.msk [vmem:[%s1608] sm:$0xff] %vm357, %v1607
    %v1610 = vadd.f32 %v1455, %v1202
    %v1611 = vadd.f32 %v1462, %v1395
    %v1612 = vadd.f32 %v1469, %v1396
    %v1613 = vadd.f32 %v1476, %v1397
    %v1614 = vadd.f32 %v1483, %v1398
    %v1615 = vadd.f32 %v1490, %v1399
    %v1616 = vadd.f32 %v1497, %v1400
    %v1617 = vadd.f32 %v1504, %v1401
    %s1618 = scalar_lea.vmem %s0, 40
    %v1619 = vld [vmem:[%s1618] sm:$0xff]
    %v1628 = vrot.slane %v1411, 7
    %v1629 = vsel %vm342, %v1628, %v1410
    %v1630 = vrot.slane %v1412, 6
    %v1631 = vsel %vm344, %v1630, %v1629
    %v1632 = vrot.slane %v1413, 5
    %v1633 = vsel %vm346, %v1632, %v1631
    %v1634 = vrot.slane %v1414, 4
    %v1635 = vsel %vm348, %v1634, %v1633
    %v1636 = vrot.slane %v1415, 3
    %v1637 = vsel %vm350, %v1636, %v1635
    %v1638 = vrot.slane %v1416, 2
    %v1639 = vsel %vm352, %v1638, %v1637
    %v1640 = vrot.slane %v1417, 1
    %v1641 = vsel %vm354, %v1640, %v1639
    %v1643 = vadd.f32 %v22, %v1641
    %v1644 = vadd.f32 %v29, %v1641
    %v1645 = vadd.f32 %v36, %v1641
    %v1646 = vadd.f32 %v43, %v1641
    %v1647 = vadd.f32 %v50, %v1641
    %v1648 = vadd.f32 %v57, %v1641
    %v1649 = vadd.f32 %v64, %v1641
    %v1650 = vadd.f32 %v71, %v1641
    %v1651 = vsel %vm357, %v1643, -inf
    %v1652 = vrot.slane %v1651, 4
    %v1653 = vmax.f32 %v1651, %v1652
    %v1654 = vrot.slane %v1653, 2
    %v1655 = vmax.f32 %v1653, %v1654
    %v1656 = vrot.slane %v1655, 1
    %v1657 = vmax.f32 %v1655, %v1656
    %v1658 = vsel %vm357, %v1644, -inf
    %v1659 = vrot.slane %v1658, 4
    %v1660 = vmax.f32 %v1658, %v1659
    %v1661 = vrot.slane %v1660, 2
    %v1662 = vmax.f32 %v1660, %v1661
    %v1663 = vrot.slane %v1662, 1
    %v1664 = vmax.f32 %v1662, %v1663
    %v1665 = vsel %vm357, %v1645, -inf
    %v1666 = vrot.slane %v1665, 4
    %v1667 = vmax.f32 %v1665, %v1666
    %v1668 = vrot.slane %v1667, 2
    %v1669 = vmax.f32 %v1667, %v1668
    %v1670 = vrot.slane %v1669, 1
    %v1671 = vmax.f32 %v1669, %v1670
    %v1672 = vsel %vm357, %v1646, -inf
    %v1673 = vrot.slane %v1672, 4
    %v1674 = vmax.f32 %v1672, %v1673
    %v1675 = vrot.slane %v1674, 2
    %v1676 = vmax.f32 %v1674, %v1675
    %v1677 = vrot.slane %v1676, 1
    %v1678 = vmax.f32 %v1676, %v1677
    %v1679 = vsel %vm357, %v1647, -inf
    %v1680 = vrot.slane %v1679, 4
    %v1681 = vmax.f32 %v1679, %v1680
    %v1682 = vrot.slane %v1681, 2
    %v1683 = vmax.f32 %v1681, %v1682
    %v1684 = vrot.slane %v1683, 1
    %v1685 = vmax.f32 %v1683, %v1684
    %v1686 = vsel %vm357, %v1648, -inf
    %v1687 = vrot.slane %v1686, 4
    %v1688 = vmax.f32 %v1686, %v1687
    %v1689 = vrot.slane %v1688, 2
    %v1690 = vmax.f32 %v1688, %v1689
    %v1691 = vrot.slane %v1690, 1
    %v1692 = vmax.f32 %v1690, %v1691
    %v1693 = vsel %vm357, %v1649, -inf
    %v1694 = vrot.slane %v1693, 4
    %v1695 = vmax.f32 %v1693, %v1694
    %v1696 = vrot.slane %v1695, 2
    %v1697 = vmax.f32 %v1695, %v1696
    %v1698 = vrot.slane %v1697, 1
    %v1699 = vmax.f32 %v1697, %v1698
    %v1700 = vsel %vm357, %v1650, -inf
    %v1701 = vrot.slane %v1700, 4
    %v1702 = vmax.f32 %v1700, %v1701
    %v1703 = vrot.slane %v1702, 2
    %v1704 = vmax.f32 %v1702, %v1703
    %v1705 = vrot.slane %v1704, 1
    %v1706 = vmax.f32 %v1704, %v1705
    %v1707 = vsub.f32 %v1643, %v1657
    %v1708 = vsub.f32 %v1644, %v1664
    %v1709 = vsub.f32 %v1645, %v1671
    %v1710 = vsub.f32 %v1646, %v1678
    %v1711 = vsub.f32 %v1647, %v1685
    %v1712 = vsub.f32 %v1648, %v1692
    %v1713 = vsub.f32 %v1649, %v1699
    %v1714 = vsub.f32 %v1650, %v1706
    %v1715 = vmul.f32 %v1707, 1.442695
    %v1716 = vpow.pop %v1715
    %v1717 = vmul.f32 %v1708, 1.442695
    %v1718 = vpow.pop %v1717
    %v1719 = vmul.f32 %v1709, 1.442695
    %v1720 = vpow.pop %v1719
    %v1721 = vmul.f32 %v1710, 1.442695
    %v1722 = vpow.pop %v1721
    %v1723 = vmul.f32 %v1711, 1.442695
    %v1724 = vpow.pop %v1723
    %v1725 = vmul.f32 %v1712, 1.442695
    %v1726 = vpow.pop %v1725
    %v1727 = vmul.f32 %v1713, 1.442695
    %v1728 = vpow.pop %v1727
    %v1729 = vmul.f32 %v1714, 1.442695
    %v1730 = vpow.pop %v1729
    %v1731 = vsel %vm357, %v1716, 0.0
    %v1732 = vrot.slane %v1731, 4
    %v1733 = vadd.f32 %v1731, %v1732
    %v1734 = vrot.slane %v1733, 2
    %v1735 = vadd.f32 %v1733, %v1734
    %v1736 = vrot.slane %v1735, 1
    %v1737 = vadd.f32 %v1735, %v1736
    %v1738 = vsel %vm357, %v1718, 0.0
    %v1739 = vrot.slane %v1738, 4
    %v1740 = vadd.f32 %v1738, %v1739
    %v1741 = vrot.slane %v1740, 2
    %v1742 = vadd.f32 %v1740, %v1741
    %v1743 = vrot.slane %v1742, 1
    %v1744 = vadd.f32 %v1742, %v1743
    %v1745 = vsel %vm357, %v1720, 0.0
    %v1746 = vrot.slane %v1745, 4
    %v1747 = vadd.f32 %v1745, %v1746
    %v1748 = vrot.slane %v1747, 2
    %v1749 = vadd.f32 %v1747, %v1748
    %v1750 = vrot.slane %v1749, 1
    %v1751 = vadd.f32 %v1749, %v1750
    %v1752 = vsel %vm357, %v1722, 0.0
    %v1753 = vrot.slane %v1752, 4
    %v1754 = vadd.f32 %v1752, %v1753
    %v1755 = vrot.slane %v1754, 2
    %v1756 = vadd.f32 %v1754, %v1755
    %v1757 = vrot.slane %v1756, 1
    %v1758 = vadd.f32 %v1756, %v1757
    %v1759 = vsel %vm357, %v1724, 0.0
    %v1760 = vrot.slane %v1759, 4
    %v1761 = vadd.f32 %v1759, %v1760
    %v1762 = vrot.slane %v1761, 2
    %v1763 = vadd.f32 %v1761, %v1762
    %v1764 = vrot.slane %v1763, 1
    %v1765 = vadd.f32 %v1763, %v1764
    %v1766 = vsel %vm357, %v1726, 0.0
    %v1767 = vrot.slane %v1766, 4
    %v1768 = vadd.f32 %v1766, %v1767
    %v1769 = vrot.slane %v1768, 2
    %v1770 = vadd.f32 %v1768, %v1769
    %v1771 = vrot.slane %v1770, 1
    %v1772 = vadd.f32 %v1770, %v1771
    %v1773 = vsel %vm357, %v1728, 0.0
    %v1774 = vrot.slane %v1773, 4
    %v1775 = vadd.f32 %v1773, %v1774
    %v1776 = vrot.slane %v1775, 2
    %v1777 = vadd.f32 %v1775, %v1776
    %v1778 = vrot.slane %v1777, 1
    %v1779 = vadd.f32 %v1777, %v1778
    %v1780 = vsel %vm357, %v1730, 0.0
    %v1781 = vrot.slane %v1780, 4
    %v1782 = vadd.f32 %v1780, %v1781
    %v1783 = vrot.slane %v1782, 2
    %v1784 = vadd.f32 %v1782, %v1783
    %v1785 = vrot.slane %v1784, 1
    %v1786 = vadd.f32 %v1784, %v1785
    %v1787 = vlog2.pop %v1737
    %v1788 = vmul.f32 %v1787, 0.6931472
    %v1789 = vlog2.pop %v1744
    %v1790 = vmul.f32 %v1789, 0.6931472
    %v1791 = vlog2.pop %v1751
    %v1792 = vmul.f32 %v1791, 0.6931472
    %v1793 = vlog2.pop %v1758
    %v1794 = vmul.f32 %v1793, 0.6931472
    %v1795 = vlog2.pop %v1765
    %v1796 = vmul.f32 %v1795, 0.6931472
    %v1797 = vlog2.pop %v1772
    %v1798 = vmul.f32 %v1797, 0.6931472
    %v1799 = vlog2.pop %v1779
    %v1800 = vmul.f32 %v1799, 0.6931472
    %v1801 = vlog2.pop %v1786
    %v1802 = vmul.f32 %v1801, 0.6931472
    %v1803 = vadd.f32 %v1657, %v1788
    %v1804 = vadd.f32 %v1664, %v1790
    %v1805 = vadd.f32 %v1671, %v1792
    %v1806 = vadd.f32 %v1678, %v1794
    %v1807 = vadd.f32 %v1685, %v1796
    %v1808 = vadd.f32 %v1692, %v1798
    %v1809 = vadd.f32 %v1699, %v1800
    %v1810 = vadd.f32 %v1706, %v1802
    %v1812 = vrot.slane %v1619, 1
    %v1813 = vrot.slane %v1619, 2
    %v1814 = vrot.slane %v1619, 3
    %v1815 = vrot.slane %v1619, 4
    %v1816 = vrot.slane %v1619, 5
    %v1817 = vrot.slane %v1619, 6
    %v1818 = vrot.slane %v1619, 7
    %v1827 = vadd.f32 %v1803, %v1619
    %v1828 = vadd.f32 %v1804, %v1812
    %v1829 = vadd.f32 %v1805, %v1813
    %v1830 = vadd.f32 %v1806, %v1814
    %v1831 = vadd.f32 %v1807, %v1815
    %v1832 = vadd.f32 %v1808, %v1816
    %v1833 = vadd.f32 %v1809, %v1817
    %v1834 = vadd.f32 %v1810, %v1818
    %v1843 = vrot.slane %v1611, 7
    %v1844 = vsel %vm342, %v1843, %v1610
    %v1845 = vrot.slane %v1612, 6
    %v1846 = vsel %vm344, %v1845, %v1844
    %v1847 = vrot.slane %v1613, 5
    %v1848 = vsel %vm346, %v1847, %v1846
    %v1849 = vrot.slane %v1614, 4
    %v1850 = vsel %vm348, %v1849, %v1848
    %v1851 = vrot.slane %v1615, 3
    %v1852 = vsel %vm350, %v1851, %v1850
    %v1853 = vrot.slane %v1616, 2
    %v1854 = vsel %vm352, %v1853, %v1852
    %v1855 = vrot.slane %v1617, 1
    %v1856 = vsel %vm354, %v1855, %v1854
    %v1858 = vadd.f32 %v22, %v1856
    %v1859 = vadd.f32 %v29, %v1856
    %v1860 = vadd.f32 %v36, %v1856
    %v1861 = vadd.f32 %v43, %v1856
    %v1862 = vadd.f32 %v50, %v1856
    %v1863 = vadd.f32 %v57, %v1856
    %v1864 = vadd.f32 %v64, %v1856
    %v1865 = vadd.f32 %v71, %v1856
    %v1866 = vsel %vm357, %v1858, -inf
    %v1867 = vrot.slane %v1866, 4
    %v1868 = vmax.f32 %v1866, %v1867
    %v1869 = vrot.slane %v1868, 2
    %v1870 = vmax.f32 %v1868, %v1869
    %v1871 = vrot.slane %v1870, 1
    %v1872 = vmax.f32 %v1870, %v1871
    %v1873 = vsel %vm357, %v1859, -inf
    %v1874 = vrot.slane %v1873, 4
    %v1875 = vmax.f32 %v1873, %v1874
    %v1876 = vrot.slane %v1875, 2
    %v1877 = vmax.f32 %v1875, %v1876
    %v1878 = vrot.slane %v1877, 1
    %v1879 = vmax.f32 %v1877, %v1878
    %v1880 = vsel %vm357, %v1860, -inf
    %v1881 = vrot.slane %v1880, 4
    %v1882 = vmax.f32 %v1880, %v1881
    %v1883 = vrot.slane %v1882, 2
    %v1884 = vmax.f32 %v1882, %v1883
    %v1885 = vrot.slane %v1884, 1
    %v1886 = vmax.f32 %v1884, %v1885
    %v1887 = vsel %vm357, %v1861, -inf
    %v1888 = vrot.slane %v1887, 4
    %v1889 = vmax.f32 %v1887, %v1888
    %v1890 = vrot.slane %v1889, 2
    %v1891 = vmax.f32 %v1889, %v1890
    %v1892 = vrot.slane %v1891, 1
    %v1893 = vmax.f32 %v1891, %v1892
    %v1894 = vsel %vm357, %v1862, -inf
    %v1895 = vrot.slane %v1894, 4
    %v1896 = vmax.f32 %v1894, %v1895
    %v1897 = vrot.slane %v1896, 2
    %v1898 = vmax.f32 %v1896, %v1897
    %v1899 = vrot.slane %v1898, 1
    %v1900 = vmax.f32 %v1898, %v1899
    %v1901 = vsel %vm357, %v1863, -inf
    %v1902 = vrot.slane %v1901, 4
    %v1903 = vmax.f32 %v1901, %v1902
    %v1904 = vrot.slane %v1903, 2
    %v1905 = vmax.f32 %v1903, %v1904
    %v1906 = vrot.slane %v1905, 1
    %v1907 = vmax.f32 %v1905, %v1906
    %v1908 = vsel %vm357, %v1864, -inf
    %v1909 = vrot.slane %v1908, 4
    %v1910 = vmax.f32 %v1908, %v1909
    %v1911 = vrot.slane %v1910, 2
    %v1912 = vmax.f32 %v1910, %v1911
    %v1913 = vrot.slane %v1912, 1
    %v1914 = vmax.f32 %v1912, %v1913
    %v1915 = vsel %vm357, %v1865, -inf
    %v1916 = vrot.slane %v1915, 4
    %v1917 = vmax.f32 %v1915, %v1916
    %v1918 = vrot.slane %v1917, 2
    %v1919 = vmax.f32 %v1917, %v1918
    %v1920 = vrot.slane %v1919, 1
    %v1921 = vmax.f32 %v1919, %v1920
    %vm1922 = vcmp.eq.f32.partialorder %v1858, %v1872
    %vm1923 = vcmp.eq.f32.partialorder %v1859, %v1879
    %vm1924 = vcmp.eq.f32.partialorder %v1860, %v1886
    %vm1925 = vcmp.eq.f32.partialorder %v1861, %v1893
    %vm1926 = vcmp.eq.f32.partialorder %v1862, %v1900
    %vm1927 = vcmp.eq.f32.partialorder %v1863, %v1907
    %vm1928 = vcmp.eq.f32.partialorder %v1864, %v1914
    %vm1929 = vcmp.eq.f32.partialorder %v1865, %v1921
    %v1930 = vsel %vm1922, %v73, 8
    %v1931 = vsel %vm1923, %v73, 8
    %v1932 = vsel %vm1924, %v73, 8
    %v1933 = vsel %vm1925, %v73, 8
    %v1934 = vsel %vm1926, %v73, 8
    %v1935 = vsel %vm1927, %v73, 8
    %v1936 = vsel %vm1928, %v73, 8
    %v1937 = vsel %vm1929, %v73, 8
    %v1938 = vsel %vm357, %v1930, 2147483647
    %v1939 = vrot.slane %v1938, 4
    %vm1940 = vcmp.lt.s32.totalorder %v1938, %v1939
    %v1941 = vsel %vm1940, %v1938, %v1939
    %v1942 = vrot.slane %v1941, 2
    %vm1943 = vcmp.lt.s32.totalorder %v1941, %v1942
    %v1944 = vsel %vm1943, %v1941, %v1942
    %v1945 = vrot.slane %v1944, 1
    %vm1946 = vcmp.lt.s32.totalorder %v1944, %v1945
    %v1947 = vsel %vm1946, %v1944, %v1945
    %v1948 = vsel %vm357, %v1931, 2147483647
    %v1949 = vrot.slane %v1948, 4
    %vm1950 = vcmp.lt.s32.totalorder %v1948, %v1949
    %v1951 = vsel %vm1950, %v1948, %v1949
    %v1952 = vrot.slane %v1951, 2
    %vm1953 = vcmp.lt.s32.totalorder %v1951, %v1952
    %v1954 = vsel %vm1953, %v1951, %v1952
    %v1955 = vrot.slane %v1954, 1
    %vm1956 = vcmp.lt.s32.totalorder %v1954, %v1955
    %v1957 = vsel %vm1956, %v1954, %v1955
    %v1958 = vsel %vm357, %v1932, 2147483647
    %v1959 = vrot.slane %v1958, 4
    %vm1960 = vcmp.lt.s32.totalorder %v1958, %v1959
    %v1961 = vsel %vm1960, %v1958, %v1959
    %v1962 = vrot.slane %v1961, 2
    %vm1963 = vcmp.lt.s32.totalorder %v1961, %v1962
    %v1964 = vsel %vm1963, %v1961, %v1962
    %v1965 = vrot.slane %v1964, 1
    %vm1966 = vcmp.lt.s32.totalorder %v1964, %v1965
    %v1967 = vsel %vm1966, %v1964, %v1965
    %v1968 = vsel %vm357, %v1933, 2147483647
    %v1969 = vrot.slane %v1968, 4
    %vm1970 = vcmp.lt.s32.totalorder %v1968, %v1969
    %v1971 = vsel %vm1970, %v1968, %v1969
    %v1972 = vrot.slane %v1971, 2
    %vm1973 = vcmp.lt.s32.totalorder %v1971, %v1972
    %v1974 = vsel %vm1973, %v1971, %v1972
    %v1975 = vrot.slane %v1974, 1
    %vm1976 = vcmp.lt.s32.totalorder %v1974, %v1975
    %v1977 = vsel %vm1976, %v1974, %v1975
    %v1978 = vsel %vm357, %v1934, 2147483647
    %v1979 = vrot.slane %v1978, 4
    %vm1980 = vcmp.lt.s32.totalorder %v1978, %v1979
    %v1981 = vsel %vm1980, %v1978, %v1979
    %v1982 = vrot.slane %v1981, 2
    %vm1983 = vcmp.lt.s32.totalorder %v1981, %v1982
    %v1984 = vsel %vm1983, %v1981, %v1982
    %v1985 = vrot.slane %v1984, 1
    %vm1986 = vcmp.lt.s32.totalorder %v1984, %v1985
    %v1987 = vsel %vm1986, %v1984, %v1985
    %v1988 = vsel %vm357, %v1935, 2147483647
    %v1989 = vrot.slane %v1988, 4
    %vm1990 = vcmp.lt.s32.totalorder %v1988, %v1989
    %v1991 = vsel %vm1990, %v1988, %v1989
    %v1992 = vrot.slane %v1991, 2
    %vm1993 = vcmp.lt.s32.totalorder %v1991, %v1992
    %v1994 = vsel %vm1993, %v1991, %v1992
    %v1995 = vrot.slane %v1994, 1
    %vm1996 = vcmp.lt.s32.totalorder %v1994, %v1995
    %v1997 = vsel %vm1996, %v1994, %v1995
    %v1998 = vsel %vm357, %v1936, 2147483647
    %v1999 = vrot.slane %v1998, 4
    %vm2000 = vcmp.lt.s32.totalorder %v1998, %v1999
    %v2001 = vsel %vm2000, %v1998, %v1999
    %v2002 = vrot.slane %v2001, 2
    %vm2003 = vcmp.lt.s32.totalorder %v2001, %v2002
    %v2004 = vsel %vm2003, %v2001, %v2002
    %v2005 = vrot.slane %v2004, 1
    %vm2006 = vcmp.lt.s32.totalorder %v2004, %v2005
    %v2007 = vsel %vm2006, %v2004, %v2005
    %v2008 = vsel %vm357, %v1937, 2147483647
    %v2009 = vrot.slane %v2008, 4
    %vm2010 = vcmp.lt.s32.totalorder %v2008, %v2009
    %v2011 = vsel %vm2010, %v2008, %v2009
    %v2012 = vrot.slane %v2011, 2
    %vm2013 = vcmp.lt.s32.totalorder %v2011, %v2012
    %v2014 = vsel %vm2013, %v2011, %v2012
    %v2015 = vrot.slane %v2014, 1
    %vm2016 = vcmp.lt.s32.totalorder %v2014, %v2015
    %v2017 = vsel %vm2016, %v2014, %v2015
    %v2018 = vsel %vm342, %v1957, %v1947
    %v2019 = vsel %vm344, %v1967, %v2018
    %v2020 = vsel %vm346, %v1977, %v2019
    %v2021 = vsel %vm348, %v1987, %v2020
    %v2022 = vsel %vm350, %v1997, %v2021
    %v2023 = vsel %vm352, %v2007, %v2022
    %v2024 = vsel %vm354, %v2017, %v2023
    %s2025 = scalar_lea.vmem [#allocation2], 40
    %2026 = vst.msk [vmem:[%s2025] sm:$0xff] %vm357, %v2024
    %v2027 = vadd.f32 %v1872, %v1619
    %v2028 = vadd.f32 %v1879, %v1812
    %v2029 = vadd.f32 %v1886, %v1813
    %v2030 = vadd.f32 %v1893, %v1814
    %v2031 = vadd.f32 %v1900, %v1815
    %v2032 = vadd.f32 %v1907, %v1816
    %v2033 = vadd.f32 %v1914, %v1817
    %v2034 = vadd.f32 %v1921, %v1818
    %s2035 = scalar_lea.vmem %s0, 48
    %v2036 = vld [vmem:[%s2035] sm:$0xff]
    %v2045 = vrot.slane %v1828, 7
    %v2046 = vsel %vm342, %v2045, %v1827
    %v2047 = vrot.slane %v1829, 6
    %v2048 = vsel %vm344, %v2047, %v2046
    %v2049 = vrot.slane %v1830, 5
    %v2050 = vsel %vm346, %v2049, %v2048
    %v2051 = vrot.slane %v1831, 4
    %v2052 = vsel %vm348, %v2051, %v2050
    %v2053 = vrot.slane %v1832, 3
    %v2054 = vsel %vm350, %v2053, %v2052
    %v2055 = vrot.slane %v1833, 2
    %v2056 = vsel %vm352, %v2055, %v2054
    %v2057 = vrot.slane %v1834, 1
    %v2058 = vsel %vm354, %v2057, %v2056
    %v2060 = vadd.f32 %v22, %v2058
    %v2061 = vadd.f32 %v29, %v2058
    %v2062 = vadd.f32 %v36, %v2058
    %v2063 = vadd.f32 %v43, %v2058
    %v2064 = vadd.f32 %v50, %v2058
    %v2065 = vadd.f32 %v57, %v2058
    %v2066 = vadd.f32 %v64, %v2058
    %v2067 = vadd.f32 %v71, %v2058
    %v2068 = vsel %vm357, %v2060, -inf
    %v2069 = vrot.slane %v2068, 4
    %v2070 = vmax.f32 %v2068, %v2069
    %v2071 = vrot.slane %v2070, 2
    %v2072 = vmax.f32 %v2070, %v2071
    %v2073 = vrot.slane %v2072, 1
    %v2074 = vmax.f32 %v2072, %v2073
    %v2075 = vsel %vm357, %v2061, -inf
    %v2076 = vrot.slane %v2075, 4
    %v2077 = vmax.f32 %v2075, %v2076
    %v2078 = vrot.slane %v2077, 2
    %v2079 = vmax.f32 %v2077, %v2078
    %v2080 = vrot.slane %v2079, 1
    %v2081 = vmax.f32 %v2079, %v2080
    %v2082 = vsel %vm357, %v2062, -inf
    %v2083 = vrot.slane %v2082, 4
    %v2084 = vmax.f32 %v2082, %v2083
    %v2085 = vrot.slane %v2084, 2
    %v2086 = vmax.f32 %v2084, %v2085
    %v2087 = vrot.slane %v2086, 1
    %v2088 = vmax.f32 %v2086, %v2087
    %v2089 = vsel %vm357, %v2063, -inf
    %v2090 = vrot.slane %v2089, 4
    %v2091 = vmax.f32 %v2089, %v2090
    %v2092 = vrot.slane %v2091, 2
    %v2093 = vmax.f32 %v2091, %v2092
    %v2094 = vrot.slane %v2093, 1
    %v2095 = vmax.f32 %v2093, %v2094
    %v2096 = vsel %vm357, %v2064, -inf
    %v2097 = vrot.slane %v2096, 4
    %v2098 = vmax.f32 %v2096, %v2097
    %v2099 = vrot.slane %v2098, 2
    %v2100 = vmax.f32 %v2098, %v2099
    %v2101 = vrot.slane %v2100, 1
    %v2102 = vmax.f32 %v2100, %v2101
    %v2103 = vsel %vm357, %v2065, -inf
    %v2104 = vrot.slane %v2103, 4
    %v2105 = vmax.f32 %v2103, %v2104
    %v2106 = vrot.slane %v2105, 2
    %v2107 = vmax.f32 %v2105, %v2106
    %v2108 = vrot.slane %v2107, 1
    %v2109 = vmax.f32 %v2107, %v2108
    %v2110 = vsel %vm357, %v2066, -inf
    %v2111 = vrot.slane %v2110, 4
    %v2112 = vmax.f32 %v2110, %v2111
    %v2113 = vrot.slane %v2112, 2
    %v2114 = vmax.f32 %v2112, %v2113
    %v2115 = vrot.slane %v2114, 1
    %v2116 = vmax.f32 %v2114, %v2115
    %v2117 = vsel %vm357, %v2067, -inf
    %v2118 = vrot.slane %v2117, 4
    %v2119 = vmax.f32 %v2117, %v2118
    %v2120 = vrot.slane %v2119, 2
    %v2121 = vmax.f32 %v2119, %v2120
    %v2122 = vrot.slane %v2121, 1
    %v2123 = vmax.f32 %v2121, %v2122
    %v2124 = vsub.f32 %v2060, %v2074
    %v2125 = vsub.f32 %v2061, %v2081
    %v2126 = vsub.f32 %v2062, %v2088
    %v2127 = vsub.f32 %v2063, %v2095
    %v2128 = vsub.f32 %v2064, %v2102
    %v2129 = vsub.f32 %v2065, %v2109
    %v2130 = vsub.f32 %v2066, %v2116
    %v2131 = vsub.f32 %v2067, %v2123
    %v2132 = vmul.f32 %v2124, 1.442695
    %v2133 = vpow.pop %v2132
    %v2134 = vmul.f32 %v2125, 1.442695
    %v2135 = vpow.pop %v2134
    %v2136 = vmul.f32 %v2126, 1.442695
    %v2137 = vpow.pop %v2136
    %v2138 = vmul.f32 %v2127, 1.442695
    %v2139 = vpow.pop %v2138
    %v2140 = vmul.f32 %v2128, 1.442695
    %v2141 = vpow.pop %v2140
    %v2142 = vmul.f32 %v2129, 1.442695
    %v2143 = vpow.pop %v2142
    %v2144 = vmul.f32 %v2130, 1.442695
    %v2145 = vpow.pop %v2144
    %v2146 = vmul.f32 %v2131, 1.442695
    %v2147 = vpow.pop %v2146
    %v2148 = vsel %vm357, %v2133, 0.0
    %v2149 = vrot.slane %v2148, 4
    %v2150 = vadd.f32 %v2148, %v2149
    %v2151 = vrot.slane %v2150, 2
    %v2152 = vadd.f32 %v2150, %v2151
    %v2153 = vrot.slane %v2152, 1
    %v2154 = vadd.f32 %v2152, %v2153
    %v2155 = vsel %vm357, %v2135, 0.0
    %v2156 = vrot.slane %v2155, 4
    %v2157 = vadd.f32 %v2155, %v2156
    %v2158 = vrot.slane %v2157, 2
    %v2159 = vadd.f32 %v2157, %v2158
    %v2160 = vrot.slane %v2159, 1
    %v2161 = vadd.f32 %v2159, %v2160
    %v2162 = vsel %vm357, %v2137, 0.0
    %v2163 = vrot.slane %v2162, 4
    %v2164 = vadd.f32 %v2162, %v2163
    %v2165 = vrot.slane %v2164, 2
    %v2166 = vadd.f32 %v2164, %v2165
    %v2167 = vrot.slane %v2166, 1
    %v2168 = vadd.f32 %v2166, %v2167
    %v2169 = vsel %vm357, %v2139, 0.0
    %v2170 = vrot.slane %v2169, 4
    %v2171 = vadd.f32 %v2169, %v2170
    %v2172 = vrot.slane %v2171, 2
    %v2173 = vadd.f32 %v2171, %v2172
    %v2174 = vrot.slane %v2173, 1
    %v2175 = vadd.f32 %v2173, %v2174
    %v2176 = vsel %vm357, %v2141, 0.0
    %v2177 = vrot.slane %v2176, 4
    %v2178 = vadd.f32 %v2176, %v2177
    %v2179 = vrot.slane %v2178, 2
    %v2180 = vadd.f32 %v2178, %v2179
    %v2181 = vrot.slane %v2180, 1
    %v2182 = vadd.f32 %v2180, %v2181
    %v2183 = vsel %vm357, %v2143, 0.0
    %v2184 = vrot.slane %v2183, 4
    %v2185 = vadd.f32 %v2183, %v2184
    %v2186 = vrot.slane %v2185, 2
    %v2187 = vadd.f32 %v2185, %v2186
    %v2188 = vrot.slane %v2187, 1
    %v2189 = vadd.f32 %v2187, %v2188
    %v2190 = vsel %vm357, %v2145, 0.0
    %v2191 = vrot.slane %v2190, 4
    %v2192 = vadd.f32 %v2190, %v2191
    %v2193 = vrot.slane %v2192, 2
    %v2194 = vadd.f32 %v2192, %v2193
    %v2195 = vrot.slane %v2194, 1
    %v2196 = vadd.f32 %v2194, %v2195
    %v2197 = vsel %vm357, %v2147, 0.0
    %v2198 = vrot.slane %v2197, 4
    %v2199 = vadd.f32 %v2197, %v2198
    %v2200 = vrot.slane %v2199, 2
    %v2201 = vadd.f32 %v2199, %v2200
    %v2202 = vrot.slane %v2201, 1
    %v2203 = vadd.f32 %v2201, %v2202
    %v2204 = vlog2.pop %v2154
    %v2205 = vmul.f32 %v2204, 0.6931472
    %v2206 = vlog2.pop %v2161
    %v2207 = vmul.f32 %v2206, 0.6931472
    %v2208 = vlog2.pop %v2168
    %v2209 = vmul.f32 %v2208, 0.6931472
    %v2210 = vlog2.pop %v2175
    %v2211 = vmul.f32 %v2210, 0.6931472
    %v2212 = vlog2.pop %v2182
    %v2213 = vmul.f32 %v2212, 0.6931472
    %v2214 = vlog2.pop %v2189
    %v2215 = vmul.f32 %v2214, 0.6931472
    %v2216 = vlog2.pop %v2196
    %v2217 = vmul.f32 %v2216, 0.6931472
    %v2218 = vlog2.pop %v2203
    %v2219 = vmul.f32 %v2218, 0.6931472
    %v2220 = vadd.f32 %v2074, %v2205
    %v2221 = vadd.f32 %v2081, %v2207
    %v2222 = vadd.f32 %v2088, %v2209
    %v2223 = vadd.f32 %v2095, %v2211
    %v2224 = vadd.f32 %v2102, %v2213
    %v2225 = vadd.f32 %v2109, %v2215
    %v2226 = vadd.f32 %v2116, %v2217
    %v2227 = vadd.f32 %v2123, %v2219
    %v2229 = vrot.slane %v2036, 1
    %v2230 = vrot.slane %v2036, 2
    %v2231 = vrot.slane %v2036, 3
    %v2232 = vrot.slane %v2036, 4
    %v2233 = vrot.slane %v2036, 5
    %v2234 = vrot.slane %v2036, 6
    %v2235 = vrot.slane %v2036, 7
    %v2244 = vadd.f32 %v2220, %v2036
    %v2245 = vadd.f32 %v2221, %v2229
    %v2246 = vadd.f32 %v2222, %v2230
    %v2247 = vadd.f32 %v2223, %v2231
    %v2248 = vadd.f32 %v2224, %v2232
    %v2249 = vadd.f32 %v2225, %v2233
    %v2250 = vadd.f32 %v2226, %v2234
    %v2251 = vadd.f32 %v2227, %v2235
    %v2260 = vrot.slane %v2028, 7
    %v2261 = vsel %vm342, %v2260, %v2027
    %v2262 = vrot.slane %v2029, 6
    %v2263 = vsel %vm344, %v2262, %v2261
    %v2264 = vrot.slane %v2030, 5
    %v2265 = vsel %vm346, %v2264, %v2263
    %v2266 = vrot.slane %v2031, 4
    %v2267 = vsel %vm348, %v2266, %v2265
    %v2268 = vrot.slane %v2032, 3
    %v2269 = vsel %vm350, %v2268, %v2267
    %v2270 = vrot.slane %v2033, 2
    %v2271 = vsel %vm352, %v2270, %v2269
    %v2272 = vrot.slane %v2034, 1
    %v2273 = vsel %vm354, %v2272, %v2271
    %v2275 = vadd.f32 %v22, %v2273
    %v2276 = vadd.f32 %v29, %v2273
    %v2277 = vadd.f32 %v36, %v2273
    %v2278 = vadd.f32 %v43, %v2273
    %v2279 = vadd.f32 %v50, %v2273
    %v2280 = vadd.f32 %v57, %v2273
    %v2281 = vadd.f32 %v64, %v2273
    %v2282 = vadd.f32 %v71, %v2273
    %v2283 = vsel %vm357, %v2275, -inf
    %v2284 = vrot.slane %v2283, 4
    %v2285 = vmax.f32 %v2283, %v2284
    %v2286 = vrot.slane %v2285, 2
    %v2287 = vmax.f32 %v2285, %v2286
    %v2288 = vrot.slane %v2287, 1
    %v2289 = vmax.f32 %v2287, %v2288
    %v2290 = vsel %vm357, %v2276, -inf
    %v2291 = vrot.slane %v2290, 4
    %v2292 = vmax.f32 %v2290, %v2291
    %v2293 = vrot.slane %v2292, 2
    %v2294 = vmax.f32 %v2292, %v2293
    %v2295 = vrot.slane %v2294, 1
    %v2296 = vmax.f32 %v2294, %v2295
    %v2297 = vsel %vm357, %v2277, -inf
    %v2298 = vrot.slane %v2297, 4
    %v2299 = vmax.f32 %v2297, %v2298
    %v2300 = vrot.slane %v2299, 2
    %v2301 = vmax.f32 %v2299, %v2300
    %v2302 = vrot.slane %v2301, 1
    %v2303 = vmax.f32 %v2301, %v2302
    %v2304 = vsel %vm357, %v2278, -inf
    %v2305 = vrot.slane %v2304, 4
    %v2306 = vmax.f32 %v2304, %v2305
    %v2307 = vrot.slane %v2306, 2
    %v2308 = vmax.f32 %v2306, %v2307
    %v2309 = vrot.slane %v2308, 1
    %v2310 = vmax.f32 %v2308, %v2309
    %v2311 = vsel %vm357, %v2279, -inf
    %v2312 = vrot.slane %v2311, 4
    %v2313 = vmax.f32 %v2311, %v2312
    %v2314 = vrot.slane %v2313, 2
    %v2315 = vmax.f32 %v2313, %v2314
    %v2316 = vrot.slane %v2315, 1
    %v2317 = vmax.f32 %v2315, %v2316
    %v2318 = vsel %vm357, %v2280, -inf
    %v2319 = vrot.slane %v2318, 4
    %v2320 = vmax.f32 %v2318, %v2319
    %v2321 = vrot.slane %v2320, 2
    %v2322 = vmax.f32 %v2320, %v2321
    %v2323 = vrot.slane %v2322, 1
    %v2324 = vmax.f32 %v2322, %v2323
    %v2325 = vsel %vm357, %v2281, -inf
    %v2326 = vrot.slane %v2325, 4
    %v2327 = vmax.f32 %v2325, %v2326
    %v2328 = vrot.slane %v2327, 2
    %v2329 = vmax.f32 %v2327, %v2328
    %v2330 = vrot.slane %v2329, 1
    %v2331 = vmax.f32 %v2329, %v2330
    %v2332 = vsel %vm357, %v2282, -inf
    %v2333 = vrot.slane %v2332, 4
    %v2334 = vmax.f32 %v2332, %v2333
    %v2335 = vrot.slane %v2334, 2
    %v2336 = vmax.f32 %v2334, %v2335
    %v2337 = vrot.slane %v2336, 1
    %v2338 = vmax.f32 %v2336, %v2337
    %vm2339 = vcmp.eq.f32.partialorder %v2275, %v2289
    %vm2340 = vcmp.eq.f32.partialorder %v2276, %v2296
    %vm2341 = vcmp.eq.f32.partialorder %v2277, %v2303
    %vm2342 = vcmp.eq.f32.partialorder %v2278, %v2310
    %vm2343 = vcmp.eq.f32.partialorder %v2279, %v2317
    %vm2344 = vcmp.eq.f32.partialorder %v2280, %v2324
    %vm2345 = vcmp.eq.f32.partialorder %v2281, %v2331
    %vm2346 = vcmp.eq.f32.partialorder %v2282, %v2338
    %v2347 = vsel %vm2339, %v73, 8
    %v2348 = vsel %vm2340, %v73, 8
    %v2349 = vsel %vm2341, %v73, 8
    %v2350 = vsel %vm2342, %v73, 8
    %v2351 = vsel %vm2343, %v73, 8
    %v2352 = vsel %vm2344, %v73, 8
    %v2353 = vsel %vm2345, %v73, 8
    %v2354 = vsel %vm2346, %v73, 8
    %v2355 = vsel %vm357, %v2347, 2147483647
    %v2356 = vrot.slane %v2355, 4
    %vm2357 = vcmp.lt.s32.totalorder %v2355, %v2356
    %v2358 = vsel %vm2357, %v2355, %v2356
    %v2359 = vrot.slane %v2358, 2
    %vm2360 = vcmp.lt.s32.totalorder %v2358, %v2359
    %v2361 = vsel %vm2360, %v2358, %v2359
    %v2362 = vrot.slane %v2361, 1
    %vm2363 = vcmp.lt.s32.totalorder %v2361, %v2362
    %v2364 = vsel %vm2363, %v2361, %v2362
    %v2365 = vsel %vm357, %v2348, 2147483647
    %v2366 = vrot.slane %v2365, 4
    %vm2367 = vcmp.lt.s32.totalorder %v2365, %v2366
    %v2368 = vsel %vm2367, %v2365, %v2366
    %v2369 = vrot.slane %v2368, 2
    %vm2370 = vcmp.lt.s32.totalorder %v2368, %v2369
    %v2371 = vsel %vm2370, %v2368, %v2369
    %v2372 = vrot.slane %v2371, 1
    %vm2373 = vcmp.lt.s32.totalorder %v2371, %v2372
    %v2374 = vsel %vm2373, %v2371, %v2372
    %v2375 = vsel %vm357, %v2349, 2147483647
    %v2376 = vrot.slane %v2375, 4
    %vm2377 = vcmp.lt.s32.totalorder %v2375, %v2376
    %v2378 = vsel %vm2377, %v2375, %v2376
    %v2379 = vrot.slane %v2378, 2
    %vm2380 = vcmp.lt.s32.totalorder %v2378, %v2379
    %v2381 = vsel %vm2380, %v2378, %v2379
    %v2382 = vrot.slane %v2381, 1
    %vm2383 = vcmp.lt.s32.totalorder %v2381, %v2382
    %v2384 = vsel %vm2383, %v2381, %v2382
    %v2385 = vsel %vm357, %v2350, 2147483647
    %v2386 = vrot.slane %v2385, 4
    %vm2387 = vcmp.lt.s32.totalorder %v2385, %v2386
    %v2388 = vsel %vm2387, %v2385, %v2386
    %v2389 = vrot.slane %v2388, 2
    %vm2390 = vcmp.lt.s32.totalorder %v2388, %v2389
    %v2391 = vsel %vm2390, %v2388, %v2389
    %v2392 = vrot.slane %v2391, 1
    %vm2393 = vcmp.lt.s32.totalorder %v2391, %v2392
    %v2394 = vsel %vm2393, %v2391, %v2392
    %v2395 = vsel %vm357, %v2351, 2147483647
    %v2396 = vrot.slane %v2395, 4
    %vm2397 = vcmp.lt.s32.totalorder %v2395, %v2396
    %v2398 = vsel %vm2397, %v2395, %v2396
    %v2399 = vrot.slane %v2398, 2
    %vm2400 = vcmp.lt.s32.totalorder %v2398, %v2399
    %v2401 = vsel %vm2400, %v2398, %v2399
    %v2402 = vrot.slane %v2401, 1
    %vm2403 = vcmp.lt.s32.totalorder %v2401, %v2402
    %v2404 = vsel %vm2403, %v2401, %v2402
    %v2405 = vsel %vm357, %v2352, 2147483647
    %v2406 = vrot.slane %v2405, 4
    %vm2407 = vcmp.lt.s32.totalorder %v2405, %v2406
    %v2408 = vsel %vm2407, %v2405, %v2406
    %v2409 = vrot.slane %v2408, 2
    %vm2410 = vcmp.lt.s32.totalorder %v2408, %v2409
    %v2411 = vsel %vm2410, %v2408, %v2409
    %v2412 = vrot.slane %v2411, 1
    %vm2413 = vcmp.lt.s32.totalorder %v2411, %v2412
    %v2414 = vsel %vm2413, %v2411, %v2412
    %v2415 = vsel %vm357, %v2353, 2147483647
    %v2416 = vrot.slane %v2415, 4
    %vm2417 = vcmp.lt.s32.totalorder %v2415, %v2416
    %v2418 = vsel %vm2417, %v2415, %v2416
    %v2419 = vrot.slane %v2418, 2
    %vm2420 = vcmp.lt.s32.totalorder %v2418, %v2419
    %v2421 = vsel %vm2420, %v2418, %v2419
    %v2422 = vrot.slane %v2421, 1
    %vm2423 = vcmp.lt.s32.totalorder %v2421, %v2422
    %v2424 = vsel %vm2423, %v2421, %v2422
    %v2425 = vsel %vm357, %v2354, 2147483647
    %v2426 = vrot.slane %v2425, 4
    %vm2427 = vcmp.lt.s32.totalorder %v2425, %v2426
    %v2428 = vsel %vm2427, %v2425, %v2426
    %v2429 = vrot.slane %v2428, 2
    %vm2430 = vcmp.lt.s32.totalorder %v2428, %v2429
    %v2431 = vsel %vm2430, %v2428, %v2429
    %v2432 = vrot.slane %v2431, 1
    %vm2433 = vcmp.lt.s32.totalorder %v2431, %v2432
    %v2434 = vsel %vm2433, %v2431, %v2432
    %v2435 = vsel %vm342, %v2374, %v2364
    %v2436 = vsel %vm344, %v2384, %v2435
    %v2437 = vsel %vm346, %v2394, %v2436
    %v2438 = vsel %vm348, %v2404, %v2437
    %v2439 = vsel %vm350, %v2414, %v2438
    %v2440 = vsel %vm352, %v2424, %v2439
    %v2441 = vsel %vm354, %v2434, %v2440
    %s2442 = scalar_lea.vmem [#allocation2], 48
    %2443 = vst.msk [vmem:[%s2442] sm:$0xff] %vm357, %v2441
    %v2444 = vadd.f32 %v2289, %v2036
    %v2445 = vadd.f32 %v2296, %v2229
    %v2446 = vadd.f32 %v2303, %v2230
    %v2447 = vadd.f32 %v2310, %v2231
    %v2448 = vadd.f32 %v2317, %v2232
    %v2449 = vadd.f32 %v2324, %v2233
    %v2450 = vadd.f32 %v2331, %v2234
    %v2451 = vadd.f32 %v2338, %v2235
    %s2452 = scalar_lea.vmem %s0, 56
    %v2453 = vld [vmem:[%s2452] sm:$0xff]
    %v2462 = vrot.slane %v2245, 7
    %v2463 = vsel %vm342, %v2462, %v2244
    %v2464 = vrot.slane %v2246, 6
    %v2465 = vsel %vm344, %v2464, %v2463
    %v2466 = vrot.slane %v2247, 5
    %v2467 = vsel %vm346, %v2466, %v2465
    %v2468 = vrot.slane %v2248, 4
    %v2469 = vsel %vm348, %v2468, %v2467
    %v2470 = vrot.slane %v2249, 3
    %v2471 = vsel %vm350, %v2470, %v2469
    %v2472 = vrot.slane %v2250, 2
    %v2473 = vsel %vm352, %v2472, %v2471
    %v2474 = vrot.slane %v2251, 1
    %v2475 = vsel %vm354, %v2474, %v2473
    %v2477 = vadd.f32 %v22, %v2475
    %v2478 = vadd.f32 %v29, %v2475
    %v2479 = vadd.f32 %v36, %v2475
    %v2480 = vadd.f32 %v43, %v2475
    %v2481 = vadd.f32 %v50, %v2475
    %v2482 = vadd.f32 %v57, %v2475
    %v2483 = vadd.f32 %v64, %v2475
    %v2484 = vadd.f32 %v71, %v2475
    %v2485 = vsel %vm357, %v2477, -inf
    %v2486 = vrot.slane %v2485, 4
    %v2487 = vmax.f32 %v2485, %v2486
    %v2488 = vrot.slane %v2487, 2
    %v2489 = vmax.f32 %v2487, %v2488
    %v2490 = vrot.slane %v2489, 1
    %v2491 = vmax.f32 %v2489, %v2490
    %v2492 = vsel %vm357, %v2478, -inf
    %v2493 = vrot.slane %v2492, 4
    %v2494 = vmax.f32 %v2492, %v2493
    %v2495 = vrot.slane %v2494, 2
    %v2496 = vmax.f32 %v2494, %v2495
    %v2497 = vrot.slane %v2496, 1
    %v2498 = vmax.f32 %v2496, %v2497
    %v2499 = vsel %vm357, %v2479, -inf
    %v2500 = vrot.slane %v2499, 4
    %v2501 = vmax.f32 %v2499, %v2500
    %v2502 = vrot.slane %v2501, 2
    %v2503 = vmax.f32 %v2501, %v2502
    %v2504 = vrot.slane %v2503, 1
    %v2505 = vmax.f32 %v2503, %v2504
    %v2506 = vsel %vm357, %v2480, -inf
    %v2507 = vrot.slane %v2506, 4
    %v2508 = vmax.f32 %v2506, %v2507
    %v2509 = vrot.slane %v2508, 2
    %v2510 = vmax.f32 %v2508, %v2509
    %v2511 = vrot.slane %v2510, 1
    %v2512 = vmax.f32 %v2510, %v2511
    %v2513 = vsel %vm357, %v2481, -inf
    %v2514 = vrot.slane %v2513, 4
    %v2515 = vmax.f32 %v2513, %v2514
    %v2516 = vrot.slane %v2515, 2
    %v2517 = vmax.f32 %v2515, %v2516
    %v2518 = vrot.slane %v2517, 1
    %v2519 = vmax.f32 %v2517, %v2518
    %v2520 = vsel %vm357, %v2482, -inf
    %v2521 = vrot.slane %v2520, 4
    %v2522 = vmax.f32 %v2520, %v2521
    %v2523 = vrot.slane %v2522, 2
    %v2524 = vmax.f32 %v2522, %v2523
    %v2525 = vrot.slane %v2524, 1
    %v2526 = vmax.f32 %v2524, %v2525
    %v2527 = vsel %vm357, %v2483, -inf
    %v2528 = vrot.slane %v2527, 4
    %v2529 = vmax.f32 %v2527, %v2528
    %v2530 = vrot.slane %v2529, 2
    %v2531 = vmax.f32 %v2529, %v2530
    %v2532 = vrot.slane %v2531, 1
    %v2533 = vmax.f32 %v2531, %v2532
    %v2534 = vsel %vm357, %v2484, -inf
    %v2535 = vrot.slane %v2534, 4
    %v2536 = vmax.f32 %v2534, %v2535
    %v2537 = vrot.slane %v2536, 2
    %v2538 = vmax.f32 %v2536, %v2537
    %v2539 = vrot.slane %v2538, 1
    %v2540 = vmax.f32 %v2538, %v2539
    %v2541 = vsub.f32 %v2477, %v2491
    %v2542 = vsub.f32 %v2478, %v2498
    %v2543 = vsub.f32 %v2479, %v2505
    %v2544 = vsub.f32 %v2480, %v2512
    %v2545 = vsub.f32 %v2481, %v2519
    %v2546 = vsub.f32 %v2482, %v2526
    %v2547 = vsub.f32 %v2483, %v2533
    %v2548 = vsub.f32 %v2484, %v2540
    %v2549 = vmul.f32 %v2541, 1.442695
    %v2550 = vpow.pop %v2549
    %v2551 = vmul.f32 %v2542, 1.442695
    %v2552 = vpow.pop %v2551
    %v2553 = vmul.f32 %v2543, 1.442695
    %v2554 = vpow.pop %v2553
    %v2555 = vmul.f32 %v2544, 1.442695
    %v2556 = vpow.pop %v2555
    %v2557 = vmul.f32 %v2545, 1.442695
    %v2558 = vpow.pop %v2557
    %v2559 = vmul.f32 %v2546, 1.442695
    %v2560 = vpow.pop %v2559
    %v2561 = vmul.f32 %v2547, 1.442695
    %v2562 = vpow.pop %v2561
    %v2563 = vmul.f32 %v2548, 1.442695
    %v2564 = vpow.pop %v2563
    %v2565 = vsel %vm357, %v2550, 0.0
    %v2566 = vrot.slane %v2565, 4
    %v2567 = vadd.f32 %v2565, %v2566
    %v2568 = vrot.slane %v2567, 2
    %v2569 = vadd.f32 %v2567, %v2568
    %v2570 = vrot.slane %v2569, 1
    %v2571 = vadd.f32 %v2569, %v2570
    %v2572 = vsel %vm357, %v2552, 0.0
    %v2573 = vrot.slane %v2572, 4
    %v2574 = vadd.f32 %v2572, %v2573
    %v2575 = vrot.slane %v2574, 2
    %v2576 = vadd.f32 %v2574, %v2575
    %v2577 = vrot.slane %v2576, 1
    %v2578 = vadd.f32 %v2576, %v2577
    %v2579 = vsel %vm357, %v2554, 0.0
    %v2580 = vrot.slane %v2579, 4
    %v2581 = vadd.f32 %v2579, %v2580
    %v2582 = vrot.slane %v2581, 2
    %v2583 = vadd.f32 %v2581, %v2582
    %v2584 = vrot.slane %v2583, 1
    %v2585 = vadd.f32 %v2583, %v2584
    %v2586 = vsel %vm357, %v2556, 0.0
    %v2587 = vrot.slane %v2586, 4
    %v2588 = vadd.f32 %v2586, %v2587
    %v2589 = vrot.slane %v2588, 2
    %v2590 = vadd.f32 %v2588, %v2589
    %v2591 = vrot.slane %v2590, 1
    %v2592 = vadd.f32 %v2590, %v2591
    %v2593 = vsel %vm357, %v2558, 0.0
    %v2594 = vrot.slane %v2593, 4
    %v2595 = vadd.f32 %v2593, %v2594
    %v2596 = vrot.slane %v2595, 2
    %v2597 = vadd.f32 %v2595, %v2596
    %v2598 = vrot.slane %v2597, 1
    %v2599 = vadd.f32 %v2597, %v2598
    %v2600 = vsel %vm357, %v2560, 0.0
    %v2601 = vrot.slane %v2600, 4
    %v2602 = vadd.f32 %v2600, %v2601
    %v2603 = vrot.slane %v2602, 2
    %v2604 = vadd.f32 %v2602, %v2603
    %v2605 = vrot.slane %v2604, 1
    %v2606 = vadd.f32 %v2604, %v2605
    %v2607 = vsel %vm357, %v2562, 0.0
    %v2608 = vrot.slane %v2607, 4
    %v2609 = vadd.f32 %v2607, %v2608
    %v2610 = vrot.slane %v2609, 2
    %v2611 = vadd.f32 %v2609, %v2610
    %v2612 = vrot.slane %v2611, 1
    %v2613 = vadd.f32 %v2611, %v2612
    %v2614 = vsel %vm357, %v2564, 0.0
    %v2615 = vrot.slane %v2614, 4
    %v2616 = vadd.f32 %v2614, %v2615
    %v2617 = vrot.slane %v2616, 2
    %v2618 = vadd.f32 %v2616, %v2617
    %v2619 = vrot.slane %v2618, 1
    %v2620 = vadd.f32 %v2618, %v2619
    %v2621 = vlog2.pop %v2571
    %v2622 = vmul.f32 %v2621, 0.6931472
    %v2623 = vlog2.pop %v2578
    %v2624 = vmul.f32 %v2623, 0.6931472
    %v2625 = vlog2.pop %v2585
    %v2626 = vmul.f32 %v2625, 0.6931472
    %v2627 = vlog2.pop %v2592
    %v2628 = vmul.f32 %v2627, 0.6931472
    %v2629 = vlog2.pop %v2599
    %v2630 = vmul.f32 %v2629, 0.6931472
    %v2631 = vlog2.pop %v2606
    %v2632 = vmul.f32 %v2631, 0.6931472
    %v2633 = vlog2.pop %v2613
    %v2634 = vmul.f32 %v2633, 0.6931472
    %v2635 = vlog2.pop %v2620
    %v2636 = vmul.f32 %v2635, 0.6931472
    %v2637 = vadd.f32 %v2491, %v2622
    %v2638 = vadd.f32 %v2498, %v2624
    %v2639 = vadd.f32 %v2505, %v2626
    %v2640 = vadd.f32 %v2512, %v2628
    %v2641 = vadd.f32 %v2519, %v2630
    %v2642 = vadd.f32 %v2526, %v2632
    %v2643 = vadd.f32 %v2533, %v2634
    %v2644 = vadd.f32 %v2540, %v2636
    %v2646 = vrot.slane %v2453, 1
    %v2647 = vrot.slane %v2453, 2
    %v2648 = vrot.slane %v2453, 3
    %v2649 = vrot.slane %v2453, 4
    %v2650 = vrot.slane %v2453, 5
    %v2651 = vrot.slane %v2453, 6
    %v2652 = vrot.slane %v2453, 7
    %v2661 = vadd.f32 %v2637, %v2453
    %v2662 = vadd.f32 %v2638, %v2646
    %v2663 = vadd.f32 %v2639, %v2647
    %v2664 = vadd.f32 %v2640, %v2648
    %v2665 = vadd.f32 %v2641, %v2649
    %v2666 = vadd.f32 %v2642, %v2650
    %v2667 = vadd.f32 %v2643, %v2651
    %v2668 = vadd.f32 %v2644, %v2652
    %v2677 = vrot.slane %v2445, 7
    %v2678 = vsel %vm342, %v2677, %v2444
    %v2679 = vrot.slane %v2446, 6
    %v2680 = vsel %vm344, %v2679, %v2678
    %v2681 = vrot.slane %v2447, 5
    %v2682 = vsel %vm346, %v2681, %v2680
    %v2683 = vrot.slane %v2448, 4
    %v2684 = vsel %vm348, %v2683, %v2682
    %v2685 = vrot.slane %v2449, 3
    %v2686 = vsel %vm350, %v2685, %v2684
    %v2687 = vrot.slane %v2450, 2
    %v2688 = vsel %vm352, %v2687, %v2686
    %v2689 = vrot.slane %v2451, 1
    %v2690 = vsel %vm354, %v2689, %v2688
    %v2692 = vadd.f32 %v22, %v2690
    %v2693 = vadd.f32 %v29, %v2690
    %v2694 = vadd.f32 %v36, %v2690
    %v2695 = vadd.f32 %v43, %v2690
    %v2696 = vadd.f32 %v50, %v2690
    %v2697 = vadd.f32 %v57, %v2690
    %v2698 = vadd.f32 %v64, %v2690
    %v2699 = vadd.f32 %v71, %v2690
    %v2700 = vsel %vm357, %v2692, -inf
    %v2701 = vrot.slane %v2700, 4
    %v2702 = vmax.f32 %v2700, %v2701
    %v2703 = vrot.slane %v2702, 2
    %v2704 = vmax.f32 %v2702, %v2703
    %v2705 = vrot.slane %v2704, 1
    %v2706 = vmax.f32 %v2704, %v2705
    %v2707 = vsel %vm357, %v2693, -inf
    %v2708 = vrot.slane %v2707, 4
    %v2709 = vmax.f32 %v2707, %v2708
    %v2710 = vrot.slane %v2709, 2
    %v2711 = vmax.f32 %v2709, %v2710
    %v2712 = vrot.slane %v2711, 1
    %v2713 = vmax.f32 %v2711, %v2712
    %v2714 = vsel %vm357, %v2694, -inf
    %v2715 = vrot.slane %v2714, 4
    %v2716 = vmax.f32 %v2714, %v2715
    %v2717 = vrot.slane %v2716, 2
    %v2718 = vmax.f32 %v2716, %v2717
    %v2719 = vrot.slane %v2718, 1
    %v2720 = vmax.f32 %v2718, %v2719
    %v2721 = vsel %vm357, %v2695, -inf
    %v2722 = vrot.slane %v2721, 4
    %v2723 = vmax.f32 %v2721, %v2722
    %v2724 = vrot.slane %v2723, 2
    %v2725 = vmax.f32 %v2723, %v2724
    %v2726 = vrot.slane %v2725, 1
    %v2727 = vmax.f32 %v2725, %v2726
    %v2728 = vsel %vm357, %v2696, -inf
    %v2729 = vrot.slane %v2728, 4
    %v2730 = vmax.f32 %v2728, %v2729
    %v2731 = vrot.slane %v2730, 2
    %v2732 = vmax.f32 %v2730, %v2731
    %v2733 = vrot.slane %v2732, 1
    %v2734 = vmax.f32 %v2732, %v2733
    %v2735 = vsel %vm357, %v2697, -inf
    %v2736 = vrot.slane %v2735, 4
    %v2737 = vmax.f32 %v2735, %v2736
    %v2738 = vrot.slane %v2737, 2
    %v2739 = vmax.f32 %v2737, %v2738
    %v2740 = vrot.slane %v2739, 1
    %v2741 = vmax.f32 %v2739, %v2740
    %v2742 = vsel %vm357, %v2698, -inf
    %v2743 = vrot.slane %v2742, 4
    %v2744 = vmax.f32 %v2742, %v2743
    %v2745 = vrot.slane %v2744, 2
    %v2746 = vmax.f32 %v2744, %v2745
    %v2747 = vrot.slane %v2746, 1
    %v2748 = vmax.f32 %v2746, %v2747
    %v2749 = vsel %vm357, %v2699, -inf
    %v2750 = vrot.slane %v2749, 4
    %v2751 = vmax.f32 %v2749, %v2750
    %v2752 = vrot.slane %v2751, 2
    %v2753 = vmax.f32 %v2751, %v2752
    %v2754 = vrot.slane %v2753, 1
    %v2755 = vmax.f32 %v2753, %v2754
    %vm2756 = vcmp.eq.f32.partialorder %v2692, %v2706
    %vm2757 = vcmp.eq.f32.partialorder %v2693, %v2713
    %vm2758 = vcmp.eq.f32.partialorder %v2694, %v2720
    %vm2759 = vcmp.eq.f32.partialorder %v2695, %v2727
    %vm2760 = vcmp.eq.f32.partialorder %v2696, %v2734
    %vm2761 = vcmp.eq.f32.partialorder %v2697, %v2741
    %vm2762 = vcmp.eq.f32.partialorder %v2698, %v2748
    %vm2763 = vcmp.eq.f32.partialorder %v2699, %v2755
    %v2764 = vsel %vm2756, %v73, 8
    %v2765 = vsel %vm2757, %v73, 8
    %v2766 = vsel %vm2758, %v73, 8
    %v2767 = vsel %vm2759, %v73, 8
    %v2768 = vsel %vm2760, %v73, 8
    %v2769 = vsel %vm2761, %v73, 8
    %v2770 = vsel %vm2762, %v73, 8
    %v2771 = vsel %vm2763, %v73, 8
    %v2772 = vsel %vm357, %v2764, 2147483647
    %v2773 = vrot.slane %v2772, 4
    %vm2774 = vcmp.lt.s32.totalorder %v2772, %v2773
    %v2775 = vsel %vm2774, %v2772, %v2773
    %v2776 = vrot.slane %v2775, 2
    %vm2777 = vcmp.lt.s32.totalorder %v2775, %v2776
    %v2778 = vsel %vm2777, %v2775, %v2776
    %v2779 = vrot.slane %v2778, 1
    %vm2780 = vcmp.lt.s32.totalorder %v2778, %v2779
    %v2781 = vsel %vm2780, %v2778, %v2779
    %v2782 = vsel %vm357, %v2765, 2147483647
    %v2783 = vrot.slane %v2782, 4
    %vm2784 = vcmp.lt.s32.totalorder %v2782, %v2783
    %v2785 = vsel %vm2784, %v2782, %v2783
    %v2786 = vrot.slane %v2785, 2
    %vm2787 = vcmp.lt.s32.totalorder %v2785, %v2786
    %v2788 = vsel %vm2787, %v2785, %v2786
    %v2789 = vrot.slane %v2788, 1
    %vm2790 = vcmp.lt.s32.totalorder %v2788, %v2789
    %v2791 = vsel %vm2790, %v2788, %v2789
    %v2792 = vsel %vm357, %v2766, 2147483647
    %v2793 = vrot.slane %v2792, 4
    %vm2794 = vcmp.lt.s32.totalorder %v2792, %v2793
    %v2795 = vsel %vm2794, %v2792, %v2793
    %v2796 = vrot.slane %v2795, 2
    %vm2797 = vcmp.lt.s32.totalorder %v2795, %v2796
    %v2798 = vsel %vm2797, %v2795, %v2796
    %v2799 = vrot.slane %v2798, 1
    %vm2800 = vcmp.lt.s32.totalorder %v2798, %v2799
    %v2801 = vsel %vm2800, %v2798, %v2799
    %v2802 = vsel %vm357, %v2767, 2147483647
    %v2803 = vrot.slane %v2802, 4
    %vm2804 = vcmp.lt.s32.totalorder %v2802, %v2803
    %v2805 = vsel %vm2804, %v2802, %v2803
    %v2806 = vrot.slane %v2805, 2
    %vm2807 = vcmp.lt.s32.totalorder %v2805, %v2806
    %v2808 = vsel %vm2807, %v2805, %v2806
    %v2809 = vrot.slane %v2808, 1
    %vm2810 = vcmp.lt.s32.totalorder %v2808, %v2809
    %v2811 = vsel %vm2810, %v2808, %v2809
    %v2812 = vsel %vm357, %v2768, 2147483647
    %v2813 = vrot.slane %v2812, 4
    %vm2814 = vcmp.lt.s32.totalorder %v2812, %v2813
    %v2815 = vsel %vm2814, %v2812, %v2813
    %v2816 = vrot.slane %v2815, 2
    %vm2817 = vcmp.lt.s32.totalorder %v2815, %v2816
    %v2818 = vsel %vm2817, %v2815, %v2816
    %v2819 = vrot.slane %v2818, 1
    %vm2820 = vcmp.lt.s32.totalorder %v2818, %v2819
    %v2821 = vsel %vm2820, %v2818, %v2819
    %v2822 = vsel %vm357, %v2769, 2147483647
    %v2823 = vrot.slane %v2822, 4
    %vm2824 = vcmp.lt.s32.totalorder %v2822, %v2823
    %v2825 = vsel %vm2824, %v2822, %v2823
    %v2826 = vrot.slane %v2825, 2
    %vm2827 = vcmp.lt.s32.totalorder %v2825, %v2826
    %v2828 = vsel %vm2827, %v2825, %v2826
    %v2829 = vrot.slane %v2828, 1
    %vm2830 = vcmp.lt.s32.totalorder %v2828, %v2829
    %v2831 = vsel %vm2830, %v2828, %v2829
    %v2832 = vsel %vm357, %v2770, 2147483647
    %v2833 = vrot.slane %v2832, 4
    %vm2834 = vcmp.lt.s32.totalorder %v2832, %v2833
    %v2835 = vsel %vm2834, %v2832, %v2833
    %v2836 = vrot.slane %v2835, 2
    %vm2837 = vcmp.lt.s32.totalorder %v2835, %v2836
    %v2838 = vsel %vm2837, %v2835, %v2836
    %v2839 = vrot.slane %v2838, 1
    %vm2840 = vcmp.lt.s32.totalorder %v2838, %v2839
    %v2841 = vsel %vm2840, %v2838, %v2839
    %v2842 = vsel %vm357, %v2771, 2147483647
    %v2843 = vrot.slane %v2842, 4
    %vm2844 = vcmp.lt.s32.totalorder %v2842, %v2843
    %v2845 = vsel %vm2844, %v2842, %v2843
    %v2846 = vrot.slane %v2845, 2
    %vm2847 = vcmp.lt.s32.totalorder %v2845, %v2846
    %v2848 = vsel %vm2847, %v2845, %v2846
    %v2849 = vrot.slane %v2848, 1
    %vm2850 = vcmp.lt.s32.totalorder %v2848, %v2849
    %v2851 = vsel %vm2850, %v2848, %v2849
    %v2852 = vsel %vm342, %v2791, %v2781
    %v2853 = vsel %vm344, %v2801, %v2852
    %v2854 = vsel %vm346, %v2811, %v2853
    %v2855 = vsel %vm348, %v2821, %v2854
    %v2856 = vsel %vm350, %v2831, %v2855
    %v2857 = vsel %vm352, %v2841, %v2856
    %v2858 = vsel %vm354, %v2851, %v2857
    %s2859 = scalar_lea.vmem [#allocation2], 56
    %2860 = vst.msk [vmem:[%s2859] sm:$0xff] %vm357, %v2858
    %v2861 = vadd.f32 %v2706, %v2453
    %v2862 = vadd.f32 %v2713, %v2646
    %v2863 = vadd.f32 %v2720, %v2647
    %v2864 = vadd.f32 %v2727, %v2648
    %v2865 = vadd.f32 %v2734, %v2649
    %v2866 = vadd.f32 %v2741, %v2650
    %v2867 = vadd.f32 %v2748, %v2651
    %v2868 = vadd.f32 %v2755, %v2652
    %vm2869 = vcmask 8192
    %v2870 = vsel %vm2869, %v2661, -inf
    %v2871 = vsel %vm2869, %v2662, -inf
    %v2872 = vsel %vm2869, %v2663, -inf
    %v2873 = vsel %vm2869, %v2664, -inf
    %v2874 = vsel %vm2869, %v2665, -inf
    %v2875 = vmax.f32 %v2870, %v2874
    %v2876 = vsel %vm2869, %v2666, -inf
    %v2877 = vmax.f32 %v2871, %v2876
    %v2878 = vsel %vm2869, %v2667, -inf
    %v2879 = vmax.f32 %v2872, %v2878
    %v2880 = vsel %vm2869, %v2668, -inf
    %v2881 = vmax.f32 %v2873, %v2880
    %v2882 = vmax.f32 %v2875, %v2877
    %v2883 = vmax.f32 %v2879, %v2881
    %v2884 = vmax.f32 %v2882, %v2883
    %v2885 = vperm.slane %v2884, 0
    %v2886 = vsub.f32 %v2661, %v2885
    %v2887 = vsub.f32 %v2662, %v2885
    %v2888 = vsub.f32 %v2663, %v2885
    %v2889 = vsub.f32 %v2664, %v2885
    %v2890 = vsub.f32 %v2665, %v2885
    %v2891 = vsub.f32 %v2666, %v2885
    %v2892 = vsub.f32 %v2667, %v2885
    %v2893 = vsub.f32 %v2668, %v2885
    %v2894 = vmul.f32 %v2886, 1.442695
    %v2895 = vpow.pop %v2894
    %v2896 = vmul.f32 %v2887, 1.442695
    %v2897 = vpow.pop %v2896
    %v2898 = vmul.f32 %v2888, 1.442695
    %v2899 = vpow.pop %v2898
    %v2900 = vmul.f32 %v2889, 1.442695
    %v2901 = vpow.pop %v2900
    %v2902 = vmul.f32 %v2890, 1.442695
    %v2903 = vpow.pop %v2902
    %v2904 = vmul.f32 %v2891, 1.442695
    %v2905 = vpow.pop %v2904
    %v2906 = vmul.f32 %v2892, 1.442695
    %v2907 = vpow.pop %v2906
    %v2908 = vmul.f32 %v2893, 1.442695
    %v2909 = vpow.pop %v2908
    %v2918 = vrot.slane %v2897, 7
    %v2919 = vsel %vm342, %v2918, %v2895
    %v2920 = vrot.slane %v2899, 6
    %v2921 = vsel %vm344, %v2920, %v2919
    %v2922 = vrot.slane %v2901, 5
    %v2923 = vsel %vm346, %v2922, %v2921
    %v2924 = vrot.slane %v2903, 4
    %v2925 = vsel %vm348, %v2924, %v2923
    %v2926 = vrot.slane %v2905, 3
    %v2927 = vsel %vm350, %v2926, %v2925
    %v2928 = vrot.slane %v2907, 2
    %v2929 = vsel %vm352, %v2928, %v2927
    %v2930 = vrot.slane %v2909, 1
    %v2931 = vsel %vm354, %v2930, %v2929
    %v2933 = vsel %vm357, %v2931, 0.0
    %v2934 = vrot.slane %v2933, 4
    %v2935 = vadd.f32 %v2933, %v2934
    %v2936 = vrot.slane %v2935, 2
    %v2937 = vadd.f32 %v2935, %v2936
    %v2938 = vrot.slane %v2937, 1
    %v2939 = vadd.f32 %v2937, %v2938
    %v2940 = vlog2.pop %v2939
    %v2941 = vmul.f32 %v2940, 0.6931472
    %v2942 = vadd.f32 %v2884, %v2941
    %2943 = vst.msk [vmem:[%s3] sm:$0x1] %vm2869, %v2942
    %v2944 = vsel %vm2869, %v2861, -inf
    %v2945 = vsel %vm2869, %v2862, -inf
    %v2946 = vsel %vm2869, %v2863, -inf
    %v2947 = vsel %vm2869, %v2864, -inf
    %v2948 = vsel %vm2869, %v2865, -inf
    %v2949 = vmax.f32 %v2944, %v2948
    %v2950 = vsel %vm2869, %v2866, -inf
    %v2951 = vmax.f32 %v2945, %v2950
    %v2952 = vsel %vm2869, %v2867, -inf
    %v2953 = vmax.f32 %v2946, %v2952
    %v2954 = vsel %vm2869, %v2868, -inf
    %v2955 = vmax.f32 %v2947, %v2954
    %v2956 = vmax.f32 %v2949, %v2951
    %v2957 = vmax.f32 %v2953, %v2955
    %v2958 = vmax.f32 %v2956, %v2957
    %2959 = vst.msk [vmem:[#allocation3] sm:$0x1] %vm2869, %v2958
    %v2960 = vperm.slane %v2958, 0
    %vm2961 = vcmp.eq.f32.partialorder %v2861, %v2960
    %vm2962 = vcmp.eq.f32.partialorder %v2862, %v2960
    %vm2963 = vcmp.eq.f32.partialorder %v2863, %v2960
    %vm2964 = vcmp.eq.f32.partialorder %v2864, %v2960
    %vm2965 = vcmp.eq.f32.partialorder %v2865, %v2960
    %vm2966 = vcmp.eq.f32.partialorder %v2866, %v2960
    %vm2967 = vcmp.eq.f32.partialorder %v2867, %v2960
    %vm2968 = vcmp.eq.f32.partialorder %v2868, %v2960
    %v2969 = vrot.slane %v73, 1
    %v2970 = vrot.slane %v73, 2
    %v2971 = vrot.slane %v73, 3
    %v2972 = vrot.slane %v73, 4
    %v2973 = vrot.slane %v73, 5
    %v2974 = vrot.slane %v73, 6
    %v2975 = vrot.slane %v73, 7
    %v2976 = vsel %vm2961, %v73, 8
    %v2977 = vsel %vm2962, %v2969, 8
    %v2978 = vsel %vm2963, %v2970, 8
    %v2979 = vsel %vm2964, %v2971, 8
    %v2980 = vsel %vm2965, %v2972, 8
    %v2981 = vsel %vm2966, %v2973, 8
    %v2982 = vsel %vm2967, %v2974, 8
    %v2983 = vsel %vm2968, %v2975, 8
    %v2984 = vsel %vm2869, %v2976, 2147483647
    %v2985 = vsel %vm2869, %v2977, 2147483647
    %v2986 = vsel %vm2869, %v2978, 2147483647
    %v2987 = vsel %vm2869, %v2979, 2147483647
    %v2988 = vsel %vm2869, %v2980, 2147483647
    %vm2989 = vcmp.lt.s32.totalorder %v2984, %v2988
    %v2990 = vsel %vm2989, %v2984, %v2988
    %v2991 = vsel %vm2869, %v2981, 2147483647
    %vm2992 = vcmp.lt.s32.totalorder %v2985, %v2991
    %v2993 = vsel %vm2992, %v2985, %v2991
    %v2994 = vsel %vm2869, %v2982, 2147483647
    %vm2995 = vcmp.lt.s32.totalorder %v2986, %v2994
    %v2996 = vsel %vm2995, %v2986, %v2994
    %v2997 = vsel %vm2869, %v2983, 2147483647
    %vm2998 = vcmp.lt.s32.totalorder %v2987, %v2997
    %v2999 = vsel %vm2998, %v2987, %v2997
    %vm3000 = vcmp.lt.s32.totalorder %v2990, %v2993
    %v3001 = vsel %vm3000, %v2990, %v2993
    %vm3002 = vcmp.lt.s32.totalorder %v2996, %v2999
    %v3003 = vsel %vm3002, %v2996, %v2999
    %vm3004 = vcmp.lt.s32.totalorder %v3001, %v3003
    %v3005 = vsel %vm3004, %v3001, %v3003
    %3006 = vst.msk [vmem:[%s2 + $0x7] sm:$0x1] %vm2869, %v3005
    %v3007 = vld [vmem:[%s2859] sm:$0xff]
    %v3008 = vperm.slane %v3005, 0
    %vm3009 = vcmp.eq.s32.totalorder %v73, %v3008
    %v3010 = vsel %vm3009, %v3007, 0
    %v3011 = vsel %vm357, %v3010, 0
    %v3012 = vrot.slane %v3011, 4
    %v3013 = vadd.s32 %v3011, %v3012
    %v3014 = vrot.slane %v3013, 2
    %v3015 = vadd.s32 %v3013, %v3014
    %v3016 = vrot.slane %v3015, 1
    %v3017 = vadd.s32 %v3015, %v3016
    %3018 = vst.msk [vmem:[%s2 + $0x6] sm:$0x1] %vm2869, %v3017
    %v3019 = vld [vmem:[%s2442] sm:$0xff]
    %vm3020 = vcmp.eq.s32.totalorder %v73, %v3017
    %v3021 = vsel %vm3020, %v3019, 0
    %v3022 = vsel %vm357, %v3021, 0
    %v3023 = vrot.slane %v3022, 4
    %v3024 = vadd.s32 %v3022, %v3023
    %v3025 = vrot.slane %v3024, 2
    %v3026 = vadd.s32 %v3024, %v3025
    %v3027 = vrot.slane %v3026, 1
    %v3028 = vadd.s32 %v3026, %v3027
    %3029 = vst.msk [vmem:[%s2 + $0x5] sm:$0x1] %vm2869, %v3028
    %v3030 = vld [vmem:[%s2025] sm:$0xff]
    %vm3031 = vcmp.eq.s32.totalorder %v73, %v3028
    %v3032 = vsel %vm3031, %v3030, 0
    %v3033 = vsel %vm357, %v3032, 0
    %v3034 = vrot.slane %v3033, 4
    %v3035 = vadd.s32 %v3033, %v3034
    %v3036 = vrot.slane %v3035, 2
    %v3037 = vadd.s32 %v3035, %v3036
    %v3038 = vrot.slane %v3037, 1
    %v3039 = vadd.s32 %v3037, %v3038
    %3040 = vst.msk [vmem:[%s2 + $0x4] sm:$0x1] %vm2869, %v3039
    %v3041 = vld [vmem:[%s1608] sm:$0xff]
    %vm3042 = vcmp.eq.s32.totalorder %v73, %v3039
    %v3043 = vsel %vm3042, %v3041, 0
    %v3044 = vsel %vm357, %v3043, 0
    %v3045 = vrot.slane %v3044, 4
    %v3046 = vadd.s32 %v3044, %v3045
    %v3047 = vrot.slane %v3046, 2
    %v3048 = vadd.s32 %v3046, %v3047
    %v3049 = vrot.slane %v3048, 1
    %v3050 = vadd.s32 %v3048, %v3049
    %3051 = vst.msk [vmem:[%s2 + $0x3] sm:$0x1] %vm2869, %v3050
    %v3052 = vld [vmem:[%s1191] sm:$0xff]
    %vm3053 = vcmp.eq.s32.totalorder %v73, %v3050
    %v3054 = vsel %vm3053, %v3052, 0
    %v3055 = vsel %vm357, %v3054, 0
    %v3056 = vrot.slane %v3055, 4
    %v3057 = vadd.s32 %v3055, %v3056
    %v3058 = vrot.slane %v3057, 2
    %v3059 = vadd.s32 %v3057, %v3058
    %v3060 = vrot.slane %v3059, 1
    %v3061 = vadd.s32 %v3059, %v3060
    %3062 = vst.msk [vmem:[%s2 + $0x2] sm:$0x1] %vm2869, %v3061
    %v3063 = vld [vmem:[%s774] sm:$0xff]
    %vm3064 = vcmp.eq.s32.totalorder %v73, %v3061
    %v3065 = vsel %vm3064, %v3063, 0
    %v3066 = vsel %vm357, %v3065, 0
    %v3067 = vrot.slane %v3066, 4
    %v3068 = vadd.s32 %v3066, %v3067
    %v3069 = vrot.slane %v3068, 2
    %v3070 = vadd.s32 %v3068, %v3069
    %v3071 = vrot.slane %v3070, 1
    %v3072 = vadd.s32 %v3070, %v3071
    %3073 = vst.msk [vmem:[%s2 + $0x1] sm:$0x1] %vm2869, %v3072
    %v3074 = vld [vmem:[%s356] sm:$0xff]
    %vm3075 = vcmp.eq.s32.totalorder %v73, %v3072
    %v3076 = vsel %vm3075, %v3074, 0
    %v3077 = vsel %vm357, %v3076, 0
    %v3078 = vrot.slane %v3077, 4
    %v3079 = vadd.s32 %v3077, %v3078
    %v3080 = vrot.slane %v3079, 2
    %v3081 = vadd.s32 %v3079, %v3080
    %v3082 = vrot.slane %v3081, 1
    %v3083 = vadd.s32 %v3081, %v3082
    %3084 = vst.msk [vmem:[%s2] sm:$0x1] %vm2869, %v3083
    // Predicated region
    $region10: #{old_transformer_crf_forward.1} parent=1 // pred_check
      _
    $region11: #{old_transformer_crf_forward.1} parent=1 // pred_check_branch
      %3086 = sbr.rel (0) target = $region13
    $region12: #{old_transformer_crf_forward.1} parent=1 // pred_region
      _
    $region13: #{old_transformer_crf_forward.1} parent=1 // pred_fallthru
      _
    // Predicated region
    $region14: #{old_transformer_crf_forward.1} parent=1 // pred_check
      _
    $region15: #{old_transformer_crf_forward.1} parent=1 // pred_check_branch
      %3088 = sbr.rel (0) target = $region17
    $region16: #{old_transformer_crf_forward.1} parent=1 // pred_region
      _
    $region17: #{old_transformer_crf_forward.1} parent=1 // pred_fallthru
      _
    // Predicated region
    $region18: #{old_transformer_crf_forward.1} parent=1 // pred_check
      _
    $region19: #{old_transformer_crf_forward.1} parent=1 // pred_check_branch
      %3090 = sbr.rel (0) target = $region21
    $region20: #{old_transformer_crf_forward.1} parent=1 // pred_region
      %3092 = vsyncadd [#allocation4], 0
      %s3094 = sshll.u32 [#allocation3], 4
      %s3095 = int_to_ptr.vmem [resolvable:$true] %s3094
      %s3096 = sshll.u32 %s4, 4
      %s3097 = int_to_ptr.hbm [resolvable:$true] %s3096
      %3099 = dma.vmem_to_hbm [thread:$0]  %s3095, 16, %s3097, [#allocation4]
    $region21: #{old_transformer_crf_forward.1} parent=1 // pred_fallthru
      _
    // Predicated region
    $region22: #{old_transformer_crf_forward.1} parent=1 // pred_check
      _
    $region23: #{old_transformer_crf_forward.1} parent=1 // pred_check_branch
      %3101 = sbr.rel (0) target = $region25
    $region24: #{old_transformer_crf_forward.1} parent=1 // pred_region
      _
    $region25: #{old_transformer_crf_forward.1} parent=1 // pred_fallthru
      _
    // Predicated region
    $region26: #{old_transformer_crf_forward.1} parent=1 // pred_check
      _
    $region27: #{old_transformer_crf_forward.1} parent=1 // pred_check_branch
      %3103 = sbr.rel (0) target = $region29
    $region28: #{old_transformer_crf_forward.1} parent=1 // pred_region
      _
    $region29: #{old_transformer_crf_forward.1} parent=1 // pred_fallthru
      _
    // Predicated region
    $region30: #{old_transformer_crf_forward.1} parent=1 // pred_check
      _
    $region31: #{old_transformer_crf_forward.1} parent=1 // pred_check_branch
      %3105 = sbr.rel (0) target = $region33
    $region32: #{old_transformer_crf_forward.1} parent=1 // pred_region
      %3107 = dma.done [#allocation4], 16
    $region33: #{old_transformer_crf_forward.1} parent=1 // pred_fallthru
      _
    %3108 = vsyncpa [#allocation4], 1

</llo_original>
